<compile_context>
chip_gen: v7x
topology: tpu7x:2x2x1
jax: 0.10.0
libtpu: 0.0.40
codegen_flags: <defaults>
</compile_context>

<pallas_src>
import functools

import jax
import jax.numpy as jnp
from jax.experimental import pallas as pl
from jax.experimental.pallas import tpu as pltpu


def _round_up(x, m):
    return (x + m - 1) // m * m


def _pick_row_tile(Ho, Wo, target_m=256):
    """Largest divisor TH of Ho such that the matmul M = TH*Wo stays ~<= 256."""
    cap = max(Wo, target_m)
    th = 1
    for cand in range(1, Ho + 1):
        if Ho % cand == 0 and cand * Wo <= cap:
            th = cand
    return th


def _vmem_limit_bytes():
    """min(96 MiB, 3/4 of physical VMEM): ~96 MiB on v5e/v6e, ~48 MiB on v7x."""
    cap = 128 * 1024 * 1024
    try:
        cap = int(getattr(pltpu.get_tpu_info(), "vmem_capacity_bytes", cap))
    except Exception:
        pass
    return min(96 * 1024 * 1024, (cap * 3) // 4)


def _conv_bn_relu_kernel(x_ref, w_ref, shift_ref, o_ref, *, KH, KW, TH):
    """One grid step computes a (TH, Wo) output row block of one image.

    x_ref:     (1, Hp, Wp, Cin_p)       bf16 padded input, whole image; block index is
                                        constant along the row axis -> DMA'd once per
                                        image and reused across row blocks.
    w_ref:     (KH*KW, Cin_p, Cout_p)   bf16 per-tap weights with BN scale pre-folded.
    shift_ref: (1, Cout_p)              f32 folded BN shift.
    o_ref:     (1, TH, Wo, Cout_p)      output row block (lane-dense, Cout_p % 128 == 0).
    """
    _, _, Wo, Cout_p = o_ref.shape
    Cin_p = x_ref.shape[-1]
    h0 = pl.multiple_of(pl.program_id(1) * TH, TH)

    # Direct tap accumulation: KH*KW small-K MXU matmuls into an f32 register
    # accumulator.  One shifted row slab per kh, reused for every kw; no im2col
    # scratch, no masked stores.
    acc = None
    for kh in range(KH):
        rows = x_ref[:, pl.ds(h0 + kh, TH), :, :]                 # (1, TH, Wp, Cin_p)
        for kw in range(KW):
            lhs = rows[:, :, kw:kw + Wo, :].reshape(TH * Wo, Cin_p)
            contrib = jnp.dot(lhs, w_ref[kh * KW + kw],
                              preferred_element_type=jnp.float32)  # (TH*Wo, Cout_p)
            acc = contrib if acc is None else acc + contrib

    # Fused BN shift-add + ReLU epilogue (scale already folded into the weights).
    y = jnp.maximum(acc + shift_ref[...], 0.0)
    o_ref[...] = y.reshape(1, TH, Wo, Cout_p).astype(o_ref.dtype)


def basic_conv2d_nhwc(x_nhwc, weight, gamma, beta, running_mean, running_var,
                      *, padding=1, eps=1e-3, out_dtype=jnp.float32):
    """NHWC core: (N, H, W, Cin) -> (N, Ho, Wo, Cout) in `out_dtype`."""
    N, H, W, Cin = x_nhwc.shape
    Cout, Cin_w, KH, KW = weight.shape
    assert Cin_w == Cin, (Cin_w, Cin)
    Ho = H + 2 * padding - (KH - 1)
    Wo = W + 2 * padding - (KW - 1)
    Hp, Wp = H + 2 * padding, W + 2 * padding

    # Cin to a sublane-friendly multiple of 8; Cout to a lane-dense multiple of 128
    # so output stores are unmasked vst (extra channels are exact zeros).
    Cin_p = _round_up(Cin, 8)
    Cout_p = _round_up(Cout, 128)

    # ---- plain-JAX glue: halo + channel pad (single pad op), BN folding ----
    x_pad = jnp.pad(
        x_nhwc,
        ((0, 0), (padding, padding), (padding, padding), (0, Cin_p - Cin)),
    ).astype(jnp.bfloat16)

    scale = gamma / jnp.sqrt(running_var + eps)                       # (Cout,)
    shift = beta - running_mean * scale                               # (Cout,)
    # (Cout, Cin, KH, KW) -> (KH, KW, Cin, Cout), fold BN scale, pad, split into taps.
    w_t = jnp.transpose(weight, (2, 3, 1, 0)) * scale[None, None, None, :]
    w_t = jnp.pad(w_t, ((0, 0), (0, 0), (0, Cin_p - Cin), (0, Cout_p - Cout)))
    w_taps = w_t.reshape(KH * KW, Cin_p, Cout_p).astype(jnp.bfloat16)
    shift_p = jnp.pad(shift, (0, Cout_p - Cout)).reshape(1, Cout_p).astype(jnp.float32)

    TH = _pick_row_tile(Ho, Wo)
    kernel = functools.partial(_conv_bn_relu_kernel, KH=KH, KW=KW, TH=TH)

    out_itemsize = jnp.dtype(out_dtype).itemsize
    flops = 2 * N * Ho * Wo * KH * KW * Cin_p * Cout_p
    bytes_accessed = (x_pad.size * 2 + w_taps.size * 2
                      + shift_p.size * 4 + N * Ho * Wo * Cout_p * out_itemsize)

    out_padded = pl.pallas_call(
        kernel,
        out_shape=jax.ShapeDtypeStruct((N, Ho, Wo, Cout_p), out_dtype),
        grid_spec=pltpu.PrefetchScalarGridSpec(
            num_scalar_prefetch=0,
            grid=(N, Ho // TH),
            in_specs=[
                # whole padded image per batch element; constant along the row axis
                pl.BlockSpec((1, Hp, Wp, Cin_p), lambda n, h: (n, 0, 0, 0)),
                pl.BlockSpec((KH * KW, Cin_p, Cout_p), lambda n, h: (0, 0, 0)),
                pl.BlockSpec((1, Cout_p), lambda n, h: (0, 0)),
            ],
            out_specs=pl.BlockSpec((1, TH, Wo, Cout_p), lambda n, h: (n, h, 0, 0)),
        ),
        compiler_params=pltpu.CompilerParams(
            dimension_semantics=("parallel", "parallel"),
            vmem_limit_bytes=_vmem_limit_bytes(),
        ),
        cost_estimate=pl.CostEstimate(
            flops=int(flops), transcendentals=0, bytes_accessed=int(bytes_accessed)),
    )(x_pad, w_taps, shift_p)

    return out_padded[..., :Cout]


def basic_conv2d(x_nchw, weight, gamma, beta, running_mean, running_var,
                 *, padding=1, eps=1e-3, out_dtype=jnp.float32):
    """PyTorch-equivalent BasicConv2d forward (stride=1, bias=False, BN eval mode).

    x_nchw: (N, Cin, H, W); weight: (Cout, Cin, KH, KW); returns (N, Cout, Ho, Wo).
    """
    x_nhwc = jnp.transpose(x_nchw, (0, 2, 3, 1))
    out_nhwc = basic_conv2d_nhwc(x_nhwc, weight, gamma, beta, running_mean,
                                 running_var, padding=padding, eps=eps,
                                 out_dtype=out_dtype)
    return jnp.transpose(out_nhwc, (0, 3, 1, 2))


if __name__ == "__main__":
    # BasicConv2d(in_channels=4, out_channels=8, kernel_size=3, padding=1)
    # on x of shape (2, 4, 16, 16).
    N, Cin, H, W = 2, 4, 16, 16
    Cout, KH, KW, pad = 8, 3, 3, 1

    key = jax.random.PRNGKey(0)
    kx, kw, kg, kb, km, kv = jax.random.split(key, 6)

    x = jax.random.normal(kx, (N, Cin, H, W), jnp.float32)
    weight = jax.random.normal(kw, (Cout, Cin, KH, KW), jnp.float32) * 0.1
    gamma = 1.0 + 0.1 * jax.random.normal(kg, (Cout,), jnp.float32)
    beta = 0.1 * jax.random.normal(kb, (Cout,), jnp.float32)
    running_mean = 0.1 * jax.random.normal(km, (Cout,), jnp.float32)
    running_var = 1.0 + 0.1 * jax.random.uniform(kv, (Cout,), jnp.float32)

    out = basic_conv2d(x, weight, gamma, beta, running_mean, running_var,
                       padding=pad, eps=1e-3)
    out = jax.block_until_ready(out)

    # Reference: plain JAX conv (f32) + BN(eval) + ReLU.  Tolerance sized for bf16
    # MXU operands with f32 accumulation.
    ref_conv = jax.lax.conv_general_dilated(
        x, weight, window_strides=(1, 1), padding=[(pad, pad), (pad, pad)],
        dimension_numbers=("NCHW", "OIHW", "NCHW"))
    s = gamma / jnp.sqrt(running_var + 1e-3)
    ref = jnp.maximum(ref_conv * s[None, :, None, None]
                      + (beta - running_mean * s)[None, :, None, None], 0.0)

    assert out.shape == (N, Cout, H, W), out.shape
    assert jnp.allclose(out, ref, atol=5e-2, rtol=5e-2), \
        float(jnp.max(jnp.abs(out - ref)))

    print("KERNEL_OK")
</pallas_src>

<mosaic_0001>
module attributes {stable_mosaic.version = 11 : i64} {
  func.func @_conv_bn_relu_kernel(%arg0: i32, %arg1: i32, %arg2: memref<1x18x18x8xbf16, #tpu.memory_space<vmem>>, %arg3: memref<9x8x128xbf16, #tpu.memory_space<vmem>>, %arg4: memref<1x128xf32, #tpu.memory_space<vmem>>, %arg5: memref<1x16x16x128xf32, #tpu.memory_space<vmem>>) attributes {dimension_semantics = [#tpu.dimension_semantics<parallel>, #tpu.dimension_semantics<parallel>], iteration_bounds = array<i64: 2, 1>, scalar_prefetch = 0 : i64, scratch_operands = 0 : i64, tpu.core_type = #tpu.core_type<tc>, window_params = [{transform_indices = @transform_0, window_bounds = array<i64: 1, 18, 18, 8>}, {pipeline_mode = #tpu.pipeline_mode<synchronous>, transform_indices = @transform_1, window_bounds = array<i64: 9, 8, 128>}, {pipeline_mode = #tpu.pipeline_mode<synchronous>, transform_indices = @transform_2, window_bounds = array<i64: 1, 128>}, {transform_indices = @transform_3, window_bounds = array<i64: 1, 16, 16, 128>}]} {
    %c16_i32 = arith.constant 16 : i32
    %0 = arith.muli %arg1, %c16_i32 : i32
    %1 = tpu.assume_multiple %0, 16 : i32
    %c0_i32 = arith.constant 0 : i32
    %2 = arith.addi %1, %c0_i32 : i32
    %c0 = arith.constant 0 : index
    %3 = arith.index_cast %2 : i32 to index
    %c0_0 = arith.constant 0 : index
    %c0_1 = arith.constant 0 : index
    %4 = vector.load %arg2[%c0, %3, %c0_0, %c0_1] : memref<1x18x18x8xbf16, #tpu.memory_space<vmem>>, vector<1x16x18x8xbf16>
    %5 = vector.extract_strided_slice %4 {offsets = [0, 0, 0, 0], sizes = [1, 16, 16, 8], strides = [1, 1, 1, 1]} : vector<1x16x18x8xbf16> to vector<1x16x16x8xbf16>
    %6 = vector.shape_cast %5 : vector<1x16x16x8xbf16> to vector<256x8xbf16>
    %c0_2 = arith.constant 0 : index
    %c0_3 = arith.constant 0 : index
    %c0_4 = arith.constant 0 : index
    %7 = vector.load %arg3[%c0_2, %c0_3, %c0_4] : memref<9x8x128xbf16, #tpu.memory_space<vmem>>, vector<1x8x128xbf16>
    %8 = vector.shape_cast %7 : vector<1x8x128xbf16> to vector<8x128xbf16>
    %cst = arith.constant dense<0.000000e+00> : vector<256x128xf32>
    %9 = tpu.matmul %6, %8, %cst {dimension_numbers = #tpu.dot_dimension_numbers<[1], [0], [0], [1], [0, 0, 1, 1], [], []>} : vector<256x8xbf16>, vector<8x128xbf16>, vector<256x128xf32> -> vector<256x128xf32>
    %10 = vector.extract_strided_slice %4 {offsets = [0, 0, 1, 0], sizes = [1, 16, 16, 8], strides = [1, 1, 1, 1]} : vector<1x16x18x8xbf16> to vector<1x16x16x8xbf16>
    %11 = vector.shape_cast %10 : vector<1x16x16x8xbf16> to vector<256x8xbf16>
    %c1 = arith.constant 1 : index
    %c0_5 = arith.constant 0 : index
    %c0_6 = arith.constant 0 : index
    %12 = vector.load %arg3[%c1, %c0_5, %c0_6] : memref<9x8x128xbf16, #tpu.memory_space<vmem>>, vector<1x8x128xbf16>
    %13 = vector.shape_cast %12 : vector<1x8x128xbf16> to vector<8x128xbf16>
    %cst_7 = arith.constant dense<0.000000e+00> : vector<256x128xf32>
    %14 = tpu.matmul %11, %13, %cst_7 {dimension_numbers = #tpu.dot_dimension_numbers<[1], [0], [0], [1], [0, 0, 1, 1], [], []>} : vector<256x8xbf16>, vector<8x128xbf16>, vector<256x128xf32> -> vector<256x128xf32>
    %15 = arith.addf %9, %14 : vector<256x128xf32>
    %16 = vector.extract_strided_slice %4 {offsets = [0, 0, 2, 0], sizes = [1, 16, 16, 8], strides = [1, 1, 1, 1]} : vector<1x16x18x8xbf16> to vector<1x16x16x8xbf16>
    %17 = vector.shape_cast %16 : vector<1x16x16x8xbf16> to vector<256x8xbf16>
    %c2 = arith.constant 2 : index
    %c0_8 = arith.constant 0 : index
    %c0_9 = arith.constant 0 : index
    %18 = vector.load %arg3[%c2, %c0_8, %c0_9] : memref<9x8x128xbf16, #tpu.memory_space<vmem>>, vector<1x8x128xbf16>
    %19 = vector.shape_cast %18 : vector<1x8x128xbf16> to vector<8x128xbf16>
    %cst_10 = arith.constant dense<0.000000e+00> : vector<256x128xf32>
    %20 = tpu.matmul %17, %19, %cst_10 {dimension_numbers = #tpu.dot_dimension_numbers<[1], [0], [0], [1], [0, 0, 1, 1], [], []>} : vector<256x8xbf16>, vector<8x128xbf16>, vector<256x128xf32> -> vector<256x128xf32>
    %21 = arith.addf %15, %20 : vector<256x128xf32>
    %c1_i32 = arith.constant 1 : i32
    %22 = arith.addi %1, %c1_i32 : i32
    %c0_11 = arith.constant 0 : index
    %23 = arith.index_cast %22 : i32 to index
    %c0_12 = arith.constant 0 : index
    %c0_13 = arith.constant 0 : index
    %24 = vector.load %arg2[%c0_11, %23, %c0_12, %c0_13] : memref<1x18x18x8xbf16, #tpu.memory_space<vmem>>, vector<1x16x18x8xbf16>
    %25 = vector.extract_strided_slice %24 {offsets = [0, 0, 0, 0], sizes = [1, 16, 16, 8], strides = [1, 1, 1, 1]} : vector<1x16x18x8xbf16> to vector<1x16x16x8xbf16>
    %26 = vector.shape_cast %25 : vector<1x16x16x8xbf16> to vector<256x8xbf16>
    %c3 = arith.constant 3 : index
    %c0_14 = arith.constant 0 : index
    %c0_15 = arith.constant 0 : index
    %27 = vector.load %arg3[%c3, %c0_14, %c0_15] : memref<9x8x128xbf16, #tpu.memory_space<vmem>>, vector<1x8x128xbf16>
    %28 = vector.shape_cast %27 : vector<1x8x128xbf16> to vector<8x128xbf16>
    %cst_16 = arith.constant dense<0.000000e+00> : vector<256x128xf32>
    %29 = tpu.matmul %26, %28, %cst_16 {dimension_numbers = #tpu.dot_dimension_numbers<[1], [0], [0], [1], [0, 0, 1, 1], [], []>} : vector<256x8xbf16>, vector<8x128xbf16>, vector<256x128xf32> -> vector<256x128xf32>
    %30 = arith.addf %21, %29 : vector<256x128xf32>
    %31 = vector.extract_strided_slice %24 {offsets = [0, 0, 1, 0], sizes = [1, 16, 16, 8], strides = [1, 1, 1, 1]} : vector<1x16x18x8xbf16> to vector<1x16x16x8xbf16>
    %32 = vector.shape_cast %31 : vector<1x16x16x8xbf16> to vector<256x8xbf16>
    %c4 = arith.constant 4 : index
    %c0_17 = arith.constant 0 : index
    %c0_18 = arith.constant 0 : index
    %33 = vector.load %arg3[%c4, %c0_17, %c0_18] : memref<9x8x128xbf16, #tpu.memory_space<vmem>>, vector<1x8x128xbf16>
    %34 = vector.shape_cast %33 : vector<1x8x128xbf16> to vector<8x128xbf16>
    %cst_19 = arith.constant dense<0.000000e+00> : vector<256x128xf32>
    %35 = tpu.matmul %32, %34, %cst_19 {dimension_numbers = #tpu.dot_dimension_numbers<[1], [0], [0], [1], [0, 0, 1, 1], [], []>} : vector<256x8xbf16>, vector<8x128xbf16>, vector<256x128xf32> -> vector<256x128xf32>
    %36 = arith.addf %30, %35 : vector<256x128xf32>
    %37 = vector.extract_strided_slice %24 {offsets = [0, 0, 2, 0], sizes = [1, 16, 16, 8], strides = [1, 1, 1, 1]} : vector<1x16x18x8xbf16> to vector<1x16x16x8xbf16>
    %38 = vector.shape_cast %37 : vector<1x16x16x8xbf16> to vector<256x8xbf16>
    %c5 = arith.constant 5 : index
    %c0_20 = arith.constant 0 : index
    %c0_21 = arith.constant 0 : index
    %39 = vector.load %arg3[%c5, %c0_20, %c0_21] : memref<9x8x128xbf16, #tpu.memory_space<vmem>>, vector<1x8x128xbf16>
    %40 = vector.shape_cast %39 : vector<1x8x128xbf16> to vector<8x128xbf16>
    %cst_22 = arith.constant dense<0.000000e+00> : vector<256x128xf32>
    %41 = tpu.matmul %38, %40, %cst_22 {dimension_numbers = #tpu.dot_dimension_numbers<[1], [0], [0], [1], [0, 0, 1, 1], [], []>} : vector<256x8xbf16>, vector<8x128xbf16>, vector<256x128xf32> -> vector<256x128xf32>
    %42 = arith.addf %36, %41 : vector<256x128xf32>
    %c2_i32 = arith.constant 2 : i32
    %43 = arith.addi %1, %c2_i32 : i32
    %c0_23 = arith.constant 0 : index
    %44 = arith.index_cast %43 : i32 to index
    %c0_24 = arith.constant 0 : index
    %c0_25 = arith.constant 0 : index
    %45 = vector.load %arg2[%c0_23, %44, %c0_24, %c0_25] : memref<1x18x18x8xbf16, #tpu.memory_space<vmem>>, vector<1x16x18x8xbf16>
    %46 = vector.extract_strided_slice %45 {offsets = [0, 0, 0, 0], sizes = [1, 16, 16, 8], strides = [1, 1, 1, 1]} : vector<1x16x18x8xbf16> to vector<1x16x16x8xbf16>
    %47 = vector.shape_cast %46 : vector<1x16x16x8xbf16> to vector<256x8xbf16>
    %c6 = arith.constant 6 : index
    %c0_26 = arith.constant 0 : index
    %c0_27 = arith.constant 0 : index
    %48 = vector.load %arg3[%c6, %c0_26, %c0_27] : memref<9x8x128xbf16, #tpu.memory_space<vmem>>, vector<1x8x128xbf16>
    %49 = vector.shape_cast %48 : vector<1x8x128xbf16> to vector<8x128xbf16>
    %cst_28 = arith.constant dense<0.000000e+00> : vector<256x128xf32>
    %50 = tpu.matmul %47, %49, %cst_28 {dimension_numbers = #tpu.dot_dimension_numbers<[1], [0], [0], [1], [0, 0, 1, 1], [], []>} : vector<256x8xbf16>, vector<8x128xbf16>, vector<256x128xf32> -> vector<256x128xf32>
    %51 = arith.addf %42, %50 : vector<256x128xf32>
    %52 = vector.extract_strided_slice %45 {offsets = [0, 0, 1, 0], sizes = [1, 16, 16, 8], strides = [1, 1, 1, 1]} : vector<1x16x18x8xbf16> to vector<1x16x16x8xbf16>
    %53 = vector.shape_cast %52 : vector<1x16x16x8xbf16> to vector<256x8xbf16>
    %c7 = arith.constant 7 : index
    %c0_29 = arith.constant 0 : index
    %c0_30 = arith.constant 0 : index
    %54 = vector.load %arg3[%c7, %c0_29, %c0_30] : memref<9x8x128xbf16, #tpu.memory_space<vmem>>, vector<1x8x128xbf16>
    %55 = vector.shape_cast %54 : vector<1x8x128xbf16> to vector<8x128xbf16>
    %cst_31 = arith.constant dense<0.000000e+00> : vector<256x128xf32>
    %56 = tpu.matmul %53, %55, %cst_31 {dimension_numbers = #tpu.dot_dimension_numbers<[1], [0], [0], [1], [0, 0, 1, 1], [], []>} : vector<256x8xbf16>, vector<8x128xbf16>, vector<256x128xf32> -> vector<256x128xf32>
    %57 = arith.addf %51, %56 : vector<256x128xf32>
    %58 = vector.extract_strided_slice %45 {offsets = [0, 0, 2, 0], sizes = [1, 16, 16, 8], strides = [1, 1, 1, 1]} : vector<1x16x18x8xbf16> to vector<1x16x16x8xbf16>
    %59 = vector.shape_cast %58 : vector<1x16x16x8xbf16> to vector<256x8xbf16>
    %c8 = arith.constant 8 : index
    %c0_32 = arith.constant 0 : index
    %c0_33 = arith.constant 0 : index
    %60 = vector.load %arg3[%c8, %c0_32, %c0_33] : memref<9x8x128xbf16, #tpu.memory_space<vmem>>, vector<1x8x128xbf16>
    %61 = vector.shape_cast %60 : vector<1x8x128xbf16> to vector<8x128xbf16>
    %cst_34 = arith.constant dense<0.000000e+00> : vector<256x128xf32>
    %62 = tpu.matmul %59, %61, %cst_34 {dimension_numbers = #tpu.dot_dimension_numbers<[1], [0], [0], [1], [0, 0, 1, 1], [], []>} : vector<256x8xbf16>, vector<8x128xbf16>, vector<256x128xf32> -> vector<256x128xf32>
    %63 = arith.addf %57, %62 : vector<256x128xf32>
    %c0_35 = arith.constant 0 : index
    %c0_36 = arith.constant 0 : index
    %64 = vector.load %arg4[%c0_35, %c0_36] : memref<1x128xf32, #tpu.memory_space<vmem>>, vector<1x128xf32>
    %65 = vector.broadcast %64 : vector<1x128xf32> to vector<256x128xf32>
    %66 = arith.addf %63, %65 : vector<256x128xf32>
    %cst_37 = arith.constant 0.000000e+00 : f32
    %67 = vector.broadcast %cst_37 : f32 to vector<256x128xf32>
    %68 = arith.maximumf %66, %67 : vector<256x128xf32>
    %69 = vector.shape_cast %68 : vector<256x128xf32> to vector<1x16x16x128xf32>
    %c0_38 = arith.constant 0 : index
    %c0_39 = arith.constant 0 : index
    %c0_40 = arith.constant 0 : index
    %c0_41 = arith.constant 0 : index
    %70 = vector.load %arg5[%c0_38, %c0_39, %c0_40, %c0_41] : memref<1x16x16x128xf32, #tpu.memory_space<vmem>>, vector<1x16x16x128xf32>
    tpu.vector_store %arg5[%c0_38, %c0_39, %c0_40, %c0_41], %69 {strides = array<i32>} : memref<1x16x16x128xf32, #tpu.memory_space<vmem>>, vector<1x16x16x128xf32>,
    return
  }
  func.func @transform_0(%arg0: i32, %arg1: i32) -> (i32, i32, i32, i32) {
    %c0_i32 = arith.constant 0 : i32
    %c0_i32_0 = arith.constant 0 : i32
    %c0_i32_1 = arith.constant 0 : i32
    %c0_i32_2 = arith.constant 0 : i32
    return %arg0, %c0_i32, %c0_i32_0, %c0_i32_1 : i32, i32, i32, i32
  }
  func.func @transform_1(%arg0: i32, %arg1: i32) -> (i32, i32, i32) {
    %c0_i32 = arith.constant 0 : i32
    %c0_i32_0 = arith.constant 0 : i32
    %c0_i32_1 = arith.constant 0 : i32
    %c0_i32_2 = arith.constant 0 : i32
    return %c0_i32, %c0_i32_0, %c0_i32_1 : i32, i32, i32
  }
  func.func @transform_2(%arg0: i32, %arg1: i32) -> (i32, i32) {
    %c0_i32 = arith.constant 0 : i32
    %c0_i32_0 = arith.constant 0 : i32
    %c0_i32_1 = arith.constant 0 : i32
    return %c0_i32, %c0_i32_0 : i32, i32
  }
  func.func @transform_3(%arg0: i32, %arg1: i32) -> (i32, i32, i32, i32) {
    %c0_i32 = arith.constant 0 : i32
    %c0_i32_0 = arith.constant 0 : i32
    %c0_i32_1 = arith.constant 0 : i32
    return %arg0, %arg1, %c0_i32, %c0_i32_0 : i32, i32, i32, i32
  }
}

</mosaic_0001>

<llo_original>
// kernel: tpu_custom_call.1
$region0: #{tpu_custom_call.1}
  #allocation0 [shape = 'u32[]', space=smem, size = 0x4, offset = 0x4, fixed_abs, tag = 'smem constant byte address 0x4 - core index']
  #allocation1 [shape = 'u32[144,128]{1,0:T(1,128)}', space=vmem, size = 0x12000, scoped, tag = 'internal scratch']
  %s0 = inlined_call_operand.hbm [shape: bf16[2,18,18,8], index: 0, kind: input, shape index: {}]
  %s1 = inlined_call_operand.hbm [shape: bf16[9,8,128], index: 1, kind: input, shape index: {}]
  %s2 = inlined_call_operand.hbm [shape: f32[1,128], index: 2, kind: input, shape index: {}]
  %s3 = inlined_call_operand.hbm [shape: f32[2,16,16,128], index: 3, kind: output, shape index: {}]
  %s4 = sld [smem:[#allocation0]]
  $region57: #{tpu_custom_call.1} parent=0
    _
  %s6 = ssub.s32 1, %s4
  %s7 = scalar_select 0, %s6, %s4
  $region1: #{tpu_custom_call.1} parent=0
    #allocation2 [shape = 'u8[221184]{0}', space=vmem, size = 0x36000, scoped, tag = 'input window, operand 0']
    #allocation3 [shape = 's32[2]{0}', space=sflag, size = 0x8, scoped, tag = 'scoped memory for tpu_custom_call.1']
    #allocation4 [shape = 's32[2]{0}', space=sflag, size = 0x8, scoped, tag = 'scoped memory for tpu_custom_call.1']
    #allocation5 [shape = 'u8[18432]{0}', space=vmem, size = 0x4800, scoped, tag = 'input window, operand 1, single buffered']
    #allocation6 [shape = 's32[1]{0}', space=sflag, size = 0x4, scoped, tag = 'scoped memory for tpu_custom_call.1']
    #allocation7 [shape = 'u8[512]{0}', space=vmem, size = 0x400, scoped, tag = 'input window, operand 2, single buffered']
    #allocation8 [shape = 'u8[262144]{0}', space=vmem, size = 0x40000, scoped, tag = 'output window, operand 0']
    %8 = vsyncpa [#allocation3], 0
    %s9 = scalar_lea.sflag [#allocation3], 1
    %10 = vsyncpa %s9, 0
    %11 = vsyncpa [#allocation6], 0
    %12 = vsyncpa [#allocation4], 0
    %s13 = scalar_lea.sflag [#allocation4], 1
    %14 = vsyncpa %s13, 0
    loop: start=0, step=1, limit=4
    $region2: #{tpu_custom_call.1} parent=1 // loop_pre_header
      _
    $region3: #{tpu_custom_call.1} parent=1 // loop_header
      %s16 = sphi 0, %s20
      %p17 = scmp.ge.s32.totalorder %s16, 4
      %s23 = sphi 0, %s35
      %s24 = sphi 0, %s31
      %s25 = sphi 0, %s23
      %s26 = sphi 0, %s24
      %s27 = sphi 0, %s25
      %s28 = sphi 0, %s26
      %s38 = sphi 0, %s40
      %s41 = sphi 0, %s38
      %s42 = sphi 0, %s41
      %s58 = sphi 0, %s42
      %s62 = sphi 0, %s62
      %s64 = sphi 0, %s62
      %s65 = sphi 0, %s64
      %s79 = sphi 0, %s65
      %s83 = sphi 0, %s83
      %s85 = sphi 0, %s83
      %s86 = sphi 0, %s85
      %s100 = sphi 0, %s86
      %s108 = sphi 0, %s110
      %s111 = sphi 0, %s108
      %s112 = sphi 0, %s111
      %s128 = sphi 0, %s112
    $region4: #{tpu_custom_call.1} parent=1 // loop_header_branch
      %19 = sbr.rel (%p17) target = $region8
    $region5: #{tpu_custom_call.1} parent=1 // loop_body
      %s21 = ssub.s32 %s16, 1
      %s22 = ssub.s32 %s16, 2
      %s29 = sadd.s32 1, %s24
      %p30 = scmp.ge.s32.totalorder %s29, 1
      %s31 = scalar_select %p30, 0, %s29
      %s32 = sadd.s32 1, %s23
      %s33 = scalar_select %p30, %s32, %s23
      %p34 = scmp.ge.s32.totalorder %s33, 2
      %s35 = scalar_select %p34, 0, %s33
      %s36 = ssub.s32 %s23, %s35
      %p37 = scmp.eq.s32.totalorder %s36, 0
      %s39 = sadd.s32 %s38, 1
      %s40 = scalar_select %p37, %s38, %s39
      %p43 = pneg %p37
      %p44 = scmp.eq.s32.totalorder %s16, 1
      %p45 = por %p43, %p44
      %p46 = scmp.ne.s32.totalorder %s38, %s41
      %p47 = scmp.eq.s32.totalorder %s16, 0
      %p48 = por %p46, %p47
      %p49 = scmp.ne.s32.totalorder %s38, %s41
      %p50 = scmp.eq.s32.totalorder %s21, 1
      %p51 = por %p49, %p50
      %p52 = scmp.ne.s32.totalorder %s41, %s42
      %p53 = scmp.eq.s32.totalorder %s21, 0
      %p54 = por %p52, %p53
      %p55 = scmp.ne.s32.totalorder %s41, %s42
      %p56 = scmp.eq.s32.totalorder %s22, 1
      %p57 = por %p55, %p56
      %p59 = scmp.ne.s32.totalorder %s42, %s58
      %p60 = scmp.eq.s32.totalorder %s22, 0
      %p61 = por %p59, %p60
      %s63 = sadd.s32 %s62, 1
      %p66 = scmp.eq.s32.totalorder %s16, 1
      %p67 = scmp.ne.s32.totalorder %s62, %s64
      %p68 = scmp.eq.s32.totalorder %s16, 0
      %p69 = por %p67, %p68
      %p70 = scmp.ne.s32.totalorder %s62, %s64
      %p71 = scmp.eq.s32.totalorder %s21, 1
      %p72 = por %p70, %p71
      %p73 = scmp.ne.s32.totalorder %s64, %s65
      %p74 = scmp.eq.s32.totalorder %s21, 0
      %p75 = por %p73, %p74
      %p76 = scmp.ne.s32.totalorder %s64, %s65
      %p77 = scmp.eq.s32.totalorder %s22, 1
      %p78 = por %p76, %p77
      %p80 = scmp.ne.s32.totalorder %s65, %s79
      %p81 = scmp.eq.s32.totalorder %s22, 0
      %p82 = por %p80, %p81
      %s84 = sadd.s32 %s83, 1
      %p87 = scmp.eq.s32.totalorder %s16, 1
      %p88 = scmp.ne.s32.totalorder %s83, %s85
      %p89 = scmp.eq.s32.totalorder %s16, 0
      %p90 = por %p88, %p89
      %p91 = scmp.ne.s32.totalorder %s83, %s85
      %p92 = scmp.eq.s32.totalorder %s21, 1
      %p93 = por %p91, %p92
      %p94 = scmp.ne.s32.totalorder %s85, %s86
      %p95 = scmp.eq.s32.totalorder %s21, 0
      %p96 = por %p94, %p95
      %p97 = scmp.ne.s32.totalorder %s85, %s86
      %p98 = scmp.eq.s32.totalorder %s22, 1
      %p99 = por %p97, %p98
      %p101 = scmp.ne.s32.totalorder %s86, %s100
      %p102 = scmp.eq.s32.totalorder %s22, 0
      %p103 = por %p101, %p102
      %s104 = ssub.s32 %s23, %s35
      %s105 = ssub.s32 %s24, %s31
      %s106 = sor.u32 %s104, %s105
      %p107 = scmp.eq.s32.totalorder %s106, 0
      %s109 = sadd.s32 %s108, 1
      %s110 = scalar_select %p107, %s108, %s109
      %p113 = pneg %p107
      %p114 = scmp.eq.s32.totalorder %s16, 1
      %p115 = por %p113, %p114
      %p116 = scmp.ne.s32.totalorder %s108, %s111
      %p117 = scmp.eq.s32.totalorder %s16, 0
      %p118 = por %p116, %p117
      %p119 = scmp.ne.s32.totalorder %s108, %s111
      %p120 = scmp.eq.s32.totalorder %s21, 1
      %p121 = por %p119, %p120
      %p122 = scmp.ne.s32.totalorder %s111, %s112
      %p123 = scmp.eq.s32.totalorder %s21, 0
      %p124 = por %p122, %p123
      %p125 = scmp.ne.s32.totalorder %s111, %s112
      %p126 = scmp.eq.s32.totalorder %s22, 1
      %p127 = por %p125, %p126
      %p129 = scmp.ne.s32.totalorder %s112, %s128
      %p130 = scmp.eq.s32.totalorder %s22, 0
      %p131 = por %p129, %p130
      %p132 = scmp.le.s32.totalorder 1, %s16
      %p133 = scmp.lt.s32.totalorder %s16, 3
      %p134 = pnand %p132, %p133
      %p135 = pneg %p134
      // Predicated region
      $region9: #{tpu_custom_call.1} parent=5 // pred_check
        _
      $region10: #{tpu_custom_call.1} parent=5 // pred_check_branch
        %137 = sbr.rel (%p134) target = $region12
      $region11: #{tpu_custom_call.1} parent=5 // pred_region
        %s138 = ssub.s32 %s16, 1
        // Predicated region
        $region13: #{tpu_custom_call.1} parent=11 // pred_check
          %p139 = pneg %p75
        $region14: #{tpu_custom_call.1} parent=11 // pred_check_branch
          %141 = sbr.rel (%p139) target = $region16
        $region15: #{tpu_custom_call.1} parent=11 // pred_region
          %s143 = ssub.s32 576, 576
          %144 = vsyncadd [#allocation6], %s143
          %s145 = sshll.u32 [#allocation5], 4
          %s146 = int_to_ptr.vmem [resolvable:$true] %s145
          %151 = dma.hbm_to_vmem [thread:$0]  %s1, 576, %s146, [#allocation6], 64, 64, 4
        $region16: #{tpu_custom_call.1} parent=11 // pred_fallthru
          _
        // Predicated region
        $region17: #{tpu_custom_call.1} parent=11 // pred_check
          %p152 = pneg %p96
        $region18: #{tpu_custom_call.1} parent=11 // pred_check_branch
          %154 = sbr.rel (%p152) target = $region20
        $region19: #{tpu_custom_call.1} parent=11 // pred_region
          %s156 = ssub.s32 16, 16
          %157 = vsyncadd [#allocation6], %s156
          %s159 = sshll.u32 [#allocation7], 4
          %s160 = int_to_ptr.vmem [resolvable:$true] %s159
          %162 = dma.hbm_to_vmem [thread:$0]  %s2, 16, %s160, [#allocation6]
        $region20: #{tpu_custom_call.1} parent=11 // pred_fallthru
          _
      $region12: #{tpu_custom_call.1} parent=5 // pred_fallthru
        _
      %p163 = scmp.lt.s32.totalorder %s16, 2
      // Predicated region
      $region21: #{tpu_custom_call.1} parent=5 // pred_check
        %p164 = pneg %p163
      $region22: #{tpu_custom_call.1} parent=5 // pred_check_branch
        %166 = sbr.rel (%p164) target = $region24
      $region23: #{tpu_custom_call.1} parent=5 // pred_region
        // Predicated region
        $region25: #{tpu_custom_call.1} parent=23 // pred_check
          %p167 = pneg %p48
        $region26: #{tpu_custom_call.1} parent=23 // pred_check_branch
          %169 = sbr.rel (%p167) target = $region28
        $region27: #{tpu_custom_call.1} parent=23 // pred_region
          %s170 = sand.u32 %s38, 1
          %s171 = scalar_lea.sflag [#allocation3], %s170
          %s172 = sand.u32 %s38, 1
          %s173 = smul.addr %s172, 216
          %s174 = scalar_lea.vmem [#allocation2], %s173
          %s176 = ssub.s32 3456, 3456
          %177 = vsyncadd %s171, %s176
          %s178 = smul.addr %s23, 54
          %s179 = smul.addr %s178, 64
          %s180 = scalar_lea.hbm %s0, %s179
          %s181 = sshll.u32 %s174, 4
          %s182 = int_to_ptr.vmem [resolvable:$true] %s181
          %187 = dma.hbm_to_vmem [thread:$0]  %s180, 3456, %s182, %s171, 64, 64, 4
        $region28: #{tpu_custom_call.1} parent=23 // pred_fallthru
          _
      $region24: #{tpu_custom_call.1} parent=5 // pred_fallthru
        _
      %p188 = scmp.le.s32.totalorder 1, %s16
      %p189 = scmp.lt.s32.totalorder %s16, 3
      %p190 = pnand %p188, %p189
      %p191 = pneg %p190
      // Predicated region
      $region29: #{tpu_custom_call.1} parent=5 // pred_check
        _
      $region30: #{tpu_custom_call.1} parent=5 // pred_check_branch
        %193 = sbr.rel (%p190) target = $region32
      $region31: #{tpu_custom_call.1} parent=5 // pred_region
        %s194 = ssub.s32 %s16, 1
        %s195 = sand.u32 %s41, 1
        %s196 = scalar_lea.sflag [#allocation3], %s195
        %s197 = sand.u32 %s41, 1
        %s198 = smul.addr %s197, 216
        %s199 = scalar_lea.vmem [#allocation2], %s198
        // Predicated region
        $region33: #{tpu_custom_call.1} parent=31 // pred_check
          %p200 = pneg %p54
        $region34: #{tpu_custom_call.1} parent=31 // pred_check_branch
          %202 = sbr.rel (%p200) target = $region36
        $region35: #{tpu_custom_call.1} parent=31 // pred_region
          %203 = dma.done %s196, 3456
        $region36: #{tpu_custom_call.1} parent=31 // pred_fallthru
          _
        // Predicated region
        $region37: #{tpu_custom_call.1} parent=31 // pred_check
          %p204 = pneg %p75
        $region38: #{tpu_custom_call.1} parent=31 // pred_check_branch
          %206 = sbr.rel (%p204) target = $region40
        $region39: #{tpu_custom_call.1} parent=31 // pred_region
          %207 = dma.done [#allocation6], 576
        $region40: #{tpu_custom_call.1} parent=31 // pred_fallthru
          _
        // Predicated region
        $region41: #{tpu_custom_call.1} parent=31 // pred_check
          %p208 = pneg %p96
        $region42: #{tpu_custom_call.1} parent=31 // pred_check_branch
          %210 = sbr.rel (%p208) target = $region44
        $region43: #{tpu_custom_call.1} parent=31 // pred_region
          %211 = dma.done [#allocation6], 16
        $region44: #{tpu_custom_call.1} parent=31 // pred_fallthru
          _
        %s212 = sand.u32 %s41, 1
        %s213 = scalar_lea.sflag [#allocation3], %s212
        %s214 = sand.u32 %s41, 1
        %s215 = smul.addr %s214, 216
        %s216 = scalar_lea.vmem [#allocation2], %s215
        %p217 = pneg %p54
        %p218 = pneg %p51
        %p219 = pneg %p75
        %p220 = pneg %p72
        %p221 = pneg %p96
        %p222 = pneg %p93
        %p223 = pneg %p124
        %p224 = pneg %p121
        %s225 = sand.u32 %s111, 1
        %s226 = scalar_lea.sflag [#allocation4], %s225
        %s227 = sand.u32 %s111, 1
        %s228 = smul.addr %s227, 256
        %s229 = scalar_lea.vmem [#allocation8], %s228
        %s230 = smul.u32 16, %s26
        %s232 = smul.u32 %s26, 16
        %s233 = smul.u32 %s232, 3
        %s234 = smul.addr %s233, 4
        %s235 = scalar_lea.vmem %s199, %s234 [#allocation2]
        %v236 = vld [vmem:[%s235] sm:$0xf]
        %v237 = vld [vmem:[%s235 + $0x4] sm:$0xf]
        %v238 = vld [vmem:[%s235 + $0x8] sm:$0x1]
        %v239 = vld [vmem:[%s235 + $0xc] sm:$0xf]
        %v240 = vld [vmem:[%s235 + $0x10] sm:$0xf]
        %v241 = vld [vmem:[%s235 + $0x14] sm:$0x1]
        %v242 = vld [vmem:[%s235 + $0x18] sm:$0xf]
        %v243 = vld [vmem:[%s235 + $0x1c] sm:$0xf]
        %v244 = vld [vmem:[%s235 + $0x20] sm:$0x1]
        %v245 = vld [vmem:[%s235 + $0x24] sm:$0xf]
        %v246 = vld [vmem:[%s235 + $0x28] sm:$0xf]
        %v247 = vld [vmem:[%s235 + $0x2c] sm:$0x1]
        %v248 = vld [vmem:[%s235 + $0x30] sm:$0xf]
        %v249 = vld [vmem:[%s235 + $0x34] sm:$0xf]
        %v250 = vld [vmem:[%s235 + $0x38] sm:$0x1]
        %v251 = vld [vmem:[%s235 + $0x3c] sm:$0xf]
        %v252 = vld [vmem:[%s235 + $0x40] sm:$0xf]
        %v253 = vld [vmem:[%s235 + $0x44] sm:$0x1]
        %v254 = vld [vmem:[%s235 + $0x48] sm:$0xf]
        %v255 = vld [vmem:[%s235 + $0x4c] sm:$0xf]
        %v256 = vld [vmem:[%s235 + $0x50] sm:$0x1]
        %v257 = vld [vmem:[%s235 + $0x54] sm:$0xf]
        %v258 = vld [vmem:[%s235 + $0x58] sm:$0xf]
        %v259 = vld [vmem:[%s235 + $0x5c] sm:$0x1]
        %v260 = vld [vmem:[%s235 + $0x60] sm:$0xf]
        %v261 = vld [vmem:[%s235 + $0x64] sm:$0xf]
        %v262 = vld [vmem:[%s235 + $0x68] sm:$0x1]
        %v263 = vld [vmem:[%s235 + $0x6c] sm:$0xf]
        %v264 = vld [vmem:[%s235 + $0x70] sm:$0xf]
        %v265 = vld [vmem:[%s235 + $0x74] sm:$0x1]
        %v266 = vld [vmem:[%s235 + $0x78] sm:$0xf]
        %v267 = vld [vmem:[%s235 + $0x7c] sm:$0xf]
        %v268 = vld [vmem:[%s235 + $0x80] sm:$0x1]
        %v269 = vld [vmem:[%s235 + $0x84] sm:$0xf]
        %v270 = vld [vmem:[%s235 + $0x88] sm:$0xf]
        %v271 = vld [vmem:[%s235 + $0x8c] sm:$0x1]
        %v272 = vld [vmem:[%s235 + $0x90] sm:$0xf]
        %v273 = vld [vmem:[%s235 + $0x94] sm:$0xf]
        %v274 = vld [vmem:[%s235 + $0x98] sm:$0x1]
        %v275 = vld [vmem:[%s235 + $0x9c] sm:$0xf]
        %v276 = vld [vmem:[%s235 + $0xa0] sm:$0xf]
        %v277 = vld [vmem:[%s235 + $0xa4] sm:$0x1]
        %v278 = vld [vmem:[%s235 + $0xa8] sm:$0xf]
        %v279 = vld [vmem:[%s235 + $0xac] sm:$0xf]
        %v280 = vld [vmem:[%s235 + $0xb0] sm:$0x1]
        %v281 = vld [vmem:[%s235 + $0xb4] sm:$0xf]
        %v282 = vld [vmem:[%s235 + $0xb8] sm:$0xf]
        %v283 = vld [vmem:[%s235 + $0xbc] sm:$0x1]
        %v284 = vld [vmem:[#allocation5] sm:$0xf]
        %vm285 = vsmask.f32 3328
        %vm286 = vsmask.f32 7440
        %vm287 = vmor %vm285, %vm286
        %v289 = vshrl.u32 %v236, 16
        %v291 = vrot.slane %v289, 4
        %v292 = vshll.u32 %v236, 16
        %v294 = vrot.slane %v292, 5
        %v295 = vor.u32 %v291, %v294
        %v296 = vrot.slane %v295, 4
        %v298 = vshll.u32 %v237, 16
        %v300 = vrot.slane %v298, 5
        %v301 = vsel %vm287, %v296, %v300
        %v302 = vshrl.u32 %v237, 16
        %v304 = vrot.slane %v302, 4
        %v305 = vor.u32 %v304, %v300
        %v306 = vrot.slane %v305, 4
        %v308 = vshll.u32 %v238, 16
        %v310 = vrot.slane %v308, 5
        %v311 = vsel %vm287, %v306, %v310
        %v313 = vshrl.u32 %v239, 16
        %v315 = vrot.slane %v313, 4
        %v316 = vshll.u32 %v239, 16
        %v318 = vrot.slane %v316, 5
        %v319 = vor.u32 %v315, %v318
        %v320 = vrot.slane %v319, 4
        %v322 = vshll.u32 %v240, 16
        %v324 = vrot.slane %v322, 5
        %v325 = vsel %vm287, %v320, %v324
        %v326 = vshrl.u32 %v240, 16
        %v328 = vrot.slane %v326, 4
        %v329 = vor.u32 %v328, %v324
        %v330 = vrot.slane %v329, 4
        %v332 = vshll.u32 %v241, 16
        %v334 = vrot.slane %v332, 5
        %v335 = vsel %vm287, %v330, %v334
        %v337 = vshrl.u32 %v242, 16
        %v339 = vrot.slane %v337, 4
        %v340 = vshll.u32 %v242, 16
        %v342 = vrot.slane %v340, 5
        %v343 = vor.u32 %v339, %v342
        %v344 = vrot.slane %v343, 4
        %v346 = vshll.u32 %v243, 16
        %v348 = vrot.slane %v346, 5
        %v349 = vsel %vm287, %v344, %v348
        %v350 = vshrl.u32 %v243, 16
        %v352 = vrot.slane %v350, 4
        %v353 = vor.u32 %v352, %v348
        %v354 = vrot.slane %v353, 4
        %v356 = vshll.u32 %v244, 16
        %v358 = vrot.slane %v356, 5
        %v359 = vsel %vm287, %v354, %v358
        %v361 = vshrl.u32 %v245, 16
        %v363 = vrot.slane %v361, 4
        %v364 = vshll.u32 %v245, 16
        %v366 = vrot.slane %v364, 5
        %v367 = vor.u32 %v363, %v366
        %v368 = vrot.slane %v367, 4
        %v370 = vshll.u32 %v246, 16
        %v372 = vrot.slane %v370, 5
        %v373 = vsel %vm287, %v368, %v372
        %v374 = vshrl.u32 %v246, 16
        %v376 = vrot.slane %v374, 4
        %v377 = vor.u32 %v376, %v372
        %v378 = vrot.slane %v377, 4
        %v380 = vshll.u32 %v247, 16
        %v382 = vrot.slane %v380, 5
        %v383 = vsel %vm287, %v378, %v382
        %v385 = vshrl.u32 %v248, 16
        %v387 = vrot.slane %v385, 4
        %v388 = vshll.u32 %v248, 16
        %v390 = vrot.slane %v388, 5
        %v391 = vor.u32 %v387, %v390
        %v392 = vrot.slane %v391, 4
        %v394 = vshll.u32 %v249, 16
        %v396 = vrot.slane %v394, 5
        %v397 = vsel %vm287, %v392, %v396
        %v398 = vshrl.u32 %v249, 16
        %v400 = vrot.slane %v398, 4
        %v401 = vor.u32 %v400, %v396
        %v402 = vrot.slane %v401, 4
        %v404 = vshll.u32 %v250, 16
        %v406 = vrot.slane %v404, 5
        %v407 = vsel %vm287, %v402, %v406
        %v409 = vshrl.u32 %v251, 16
        %v411 = vrot.slane %v409, 4
        %v412 = vshll.u32 %v251, 16
        %v414 = vrot.slane %v412, 5
        %v415 = vor.u32 %v411, %v414
        %v416 = vrot.slane %v415, 4
        %v418 = vshll.u32 %v252, 16
        %v420 = vrot.slane %v418, 5
        %v421 = vsel %vm287, %v416, %v420
        %v422 = vshrl.u32 %v252, 16
        %v424 = vrot.slane %v422, 4
        %v425 = vor.u32 %v424, %v420
        %v426 = vrot.slane %v425, 4
        %v428 = vshll.u32 %v253, 16
        %v430 = vrot.slane %v428, 5
        %v431 = vsel %vm287, %v426, %v430
        %v433 = vshrl.u32 %v254, 16
        %v435 = vrot.slane %v433, 4
        %v436 = vshll.u32 %v254, 16
        %v438 = vrot.slane %v436, 5
        %v439 = vor.u32 %v435, %v438
        %v440 = vrot.slane %v439, 4
        %v442 = vshll.u32 %v255, 16
        %v444 = vrot.slane %v442, 5
        %v445 = vsel %vm287, %v440, %v444
        %v446 = vshrl.u32 %v255, 16
        %v448 = vrot.slane %v446, 4
        %v449 = vor.u32 %v448, %v444
        %v450 = vrot.slane %v449, 4
        %v452 = vshll.u32 %v256, 16
        %v454 = vrot.slane %v452, 5
        %v455 = vsel %vm287, %v450, %v454
        %v457 = vshrl.u32 %v257, 16
        %v459 = vrot.slane %v457, 4
        %v460 = vshll.u32 %v257, 16
        %v462 = vrot.slane %v460, 5
        %v463 = vor.u32 %v459, %v462
        %v464 = vrot.slane %v463, 4
        %v466 = vshll.u32 %v258, 16
        %v468 = vrot.slane %v466, 5
        %v469 = vsel %vm287, %v464, %v468
        %v470 = vshrl.u32 %v258, 16
        %v472 = vrot.slane %v470, 4
        %v473 = vor.u32 %v472, %v468
        %v474 = vrot.slane %v473, 4
        %v476 = vshll.u32 %v259, 16
        %v478 = vrot.slane %v476, 5
        %v479 = vsel %vm287, %v474, %v478
        %v481 = vshrl.u32 %v260, 16
        %v483 = vrot.slane %v481, 4
        %v484 = vshll.u32 %v260, 16
        %v486 = vrot.slane %v484, 5
        %v487 = vor.u32 %v483, %v486
        %v488 = vrot.slane %v487, 4
        %v490 = vshll.u32 %v261, 16
        %v492 = vrot.slane %v490, 5
        %v493 = vsel %vm287, %v488, %v492
        %v494 = vshrl.u32 %v261, 16
        %v496 = vrot.slane %v494, 4
        %v497 = vor.u32 %v496, %v492
        %v498 = vrot.slane %v497, 4
        %v500 = vshll.u32 %v262, 16
        %v502 = vrot.slane %v500, 5
        %v503 = vsel %vm287, %v498, %v502
        %v505 = vshrl.u32 %v263, 16
        %v507 = vrot.slane %v505, 4
        %v508 = vshll.u32 %v263, 16
        %v510 = vrot.slane %v508, 5
        %v511 = vor.u32 %v507, %v510
        %v512 = vrot.slane %v511, 4
        %v514 = vshll.u32 %v264, 16
        %v516 = vrot.slane %v514, 5
        %v517 = vsel %vm287, %v512, %v516
        %v518 = vshrl.u32 %v264, 16
        %v520 = vrot.slane %v518, 4
        %v521 = vor.u32 %v520, %v516
        %v522 = vrot.slane %v521, 4
        %v524 = vshll.u32 %v265, 16
        %v526 = vrot.slane %v524, 5
        %v527 = vsel %vm287, %v522, %v526
        %v529 = vshrl.u32 %v266, 16
        %v531 = vrot.slane %v529, 4
        %v532 = vshll.u32 %v266, 16
        %v534 = vrot.slane %v532, 5
        %v535 = vor.u32 %v531, %v534
        %v536 = vrot.slane %v535, 4
        %v538 = vshll.u32 %v267, 16
        %v540 = vrot.slane %v538, 5
        %v541 = vsel %vm287, %v536, %v540
        %v542 = vshrl.u32 %v267, 16
        %v544 = vrot.slane %v542, 4
        %v545 = vor.u32 %v544, %v540
        %v546 = vrot.slane %v545, 4
        %v548 = vshll.u32 %v268, 16
        %v550 = vrot.slane %v548, 5
        %v551 = vsel %vm287, %v546, %v550
        %v553 = vshrl.u32 %v269, 16
        %v555 = vrot.slane %v553, 4
        %v556 = vshll.u32 %v269, 16
        %v558 = vrot.slane %v556, 5
        %v559 = vor.u32 %v555, %v558
        %v560 = vrot.slane %v559, 4
        %v562 = vshll.u32 %v270, 16
        %v564 = vrot.slane %v562, 5
        %v565 = vsel %vm287, %v560, %v564
        %v566 = vshrl.u32 %v270, 16
        %v568 = vrot.slane %v566, 4
        %v569 = vor.u32 %v568, %v564
        %v570 = vrot.slane %v569, 4
        %v572 = vshll.u32 %v271, 16
        %v574 = vrot.slane %v572, 5
        %v575 = vsel %vm287, %v570, %v574
        %v577 = vshrl.u32 %v272, 16
        %v579 = vrot.slane %v577, 4
        %v580 = vshll.u32 %v272, 16
        %v582 = vrot.slane %v580, 5
        %v583 = vor.u32 %v579, %v582
        %v584 = vrot.slane %v583, 4
        %v586 = vshll.u32 %v273, 16
        %v588 = vrot.slane %v586, 5
        %v589 = vsel %vm287, %v584, %v588
        %v590 = vshrl.u32 %v273, 16
        %v592 = vrot.slane %v590, 4
        %v593 = vor.u32 %v592, %v588
        %v594 = vrot.slane %v593, 4
        %v596 = vshll.u32 %v274, 16
        %v598 = vrot.slane %v596, 5
        %v599 = vsel %vm287, %v594, %v598
        %v601 = vshrl.u32 %v275, 16
        %v603 = vrot.slane %v601, 4
        %v604 = vshll.u32 %v275, 16
        %v606 = vrot.slane %v604, 5
        %v607 = vor.u32 %v603, %v606
        %v608 = vrot.slane %v607, 4
        %v610 = vshll.u32 %v276, 16
        %v612 = vrot.slane %v610, 5
        %v613 = vsel %vm287, %v608, %v612
        %v614 = vshrl.u32 %v276, 16
        %v616 = vrot.slane %v614, 4
        %v617 = vor.u32 %v616, %v612
        %v618 = vrot.slane %v617, 4
        %v620 = vshll.u32 %v277, 16
        %v622 = vrot.slane %v620, 5
        %v623 = vsel %vm287, %v618, %v622
        %v625 = vshrl.u32 %v278, 16
        %v627 = vrot.slane %v625, 4
        %v628 = vshll.u32 %v278, 16
        %v630 = vrot.slane %v628, 5
        %v631 = vor.u32 %v627, %v630
        %v632 = vrot.slane %v631, 4
        %v634 = vshll.u32 %v279, 16
        %v636 = vrot.slane %v634, 5
        %v637 = vsel %vm287, %v632, %v636
        %v638 = vshrl.u32 %v279, 16
        %v640 = vrot.slane %v638, 4
        %v641 = vor.u32 %v640, %v636
        %v642 = vrot.slane %v641, 4
        %v644 = vshll.u32 %v280, 16
        %v646 = vrot.slane %v644, 5
        %v647 = vsel %vm287, %v642, %v646
        %v649 = vshrl.u32 %v281, 16
        %v651 = vrot.slane %v649, 4
        %v652 = vshll.u32 %v281, 16
        %v654 = vrot.slane %v652, 5
        %v655 = vor.u32 %v651, %v654
        %v656 = vrot.slane %v655, 4
        %v658 = vshll.u32 %v282, 16
        %v660 = vrot.slane %v658, 5
        %v661 = vsel %vm287, %v656, %v660
        %v662 = vshrl.u32 %v282, 16
        %v664 = vrot.slane %v662, 4
        %v665 = vor.u32 %v664, %v660
        %v666 = vrot.slane %v665, 4
        %v668 = vshll.u32 %v283, 16
        %v670 = vrot.slane %v668, 5
        %v671 = vsel %vm287, %v666, %v670
        %s672 = scalar_lea.vmem [#allocation5], 4
        %v673 = vld [vmem:[%s672] sm:$0xf]
        %v674 = vunpack.c.l.b16 %v301
        %v675 = vunpack.c.l.b16 %v311
        %v676 = vunpack.c.l.b16 %v325
        %v677 = vunpack.c.l.b16 %v335
        %v678 = vunpack.c.l.b16 %v349
        %v679 = vunpack.c.l.b16 %v359
        %v680 = vunpack.c.l.b16 %v373
        %v681 = vunpack.c.l.b16 %v383
        %v682 = vunpack.c.l.b16 %v397
        %v683 = vunpack.c.l.b16 %v407
        %v684 = vunpack.c.l.b16 %v421
        %v685 = vunpack.c.l.b16 %v431
        %v686 = vunpack.c.l.b16 %v445
        %v687 = vunpack.c.l.b16 %v455
        %v688 = vunpack.c.l.b16 %v469
        %v689 = vunpack.c.l.b16 %v479
        %v690 = vunpack.c.l.b16 %v493
        %v691 = vunpack.c.l.b16 %v503
        %v692 = vunpack.c.l.b16 %v517
        %v693 = vunpack.c.l.b16 %v527
        %v694 = vunpack.c.l.b16 %v541
        %v695 = vunpack.c.l.b16 %v551
        %v696 = vunpack.c.l.b16 %v565
        %v697 = vunpack.c.l.b16 %v575
        %v698 = vunpack.c.l.b16 %v589
        %v699 = vunpack.c.l.b16 %v599
        %v700 = vunpack.c.l.b16 %v613
        %v701 = vunpack.c.l.b16 %v623
        %v702 = vunpack.c.l.b16 %v637
        %v703 = vunpack.c.l.b16 %v647
        %v704 = vunpack.c.l.b16 %v661
        %v705 = vunpack.c.l.b16 %v671
        %v706 = vpack.c.b16 %v675, %v674
        %v707 = vpack.c.b16 %v677, %v676
        %v708 = vpack.c.b16 %v679, %v678
        %v709 = vpack.c.b16 %v681, %v680
        %v710 = vpack.c.b16 %v683, %v682
        %v711 = vpack.c.b16 %v685, %v684
        %v712 = vpack.c.b16 %v687, %v686
        %v713 = vpack.c.b16 %v689, %v688
        %v714 = vpack.c.b16 %v691, %v690
        %v715 = vpack.c.b16 %v693, %v692
        %v716 = vpack.c.b16 %v695, %v694
        %v717 = vpack.c.b16 %v697, %v696
        %v718 = vpack.c.b16 %v699, %v698
        %v719 = vpack.c.b16 %v701, %v700
        %v720 = vpack.c.b16 %v703, %v702
        %v721 = vpack.c.b16 %v705, %v704
        %vm722 = vcmask 64512
        %v724 = vsel %vm722, %v706, 0
        %v727 = vsel %vm722, %v707, 0
        %v730 = vsel %vm722, %v708, 0
        %v733 = vsel %vm722, %v709, 0
        %v736 = vsel %vm722, %v710, 0
        %v739 = vsel %vm722, %v711, 0
        %v742 = vsel %vm722, %v712, 0
        %v745 = vsel %vm722, %v713, 0
        %v748 = vsel %vm722, %v714, 0
        %v751 = vsel %vm722, %v715, 0
        %v754 = vsel %vm722, %v716, 0
        %v757 = vsel %vm722, %v717, 0
        %v760 = vsel %vm722, %v718, 0
        %v763 = vsel %vm722, %v719, 0
        %v766 = vsel %vm722, %v720, 0
        %v769 = vsel %vm722, %v721, 0
        %vm771 = vcmask 1043456
        %v773 = vsel %vm771, %v673, 0
        %775 = vmatprep.subr.bf16.mxu0 0
        %776 = vmatpush1.bf16.msra.mxu0 %v773
        %777 = vmatprep.subr.bf16.mxu0 0
        %778 = vmatpush1.bf16.msra.mxu0 0
        %779 = vmatprep.subr.bf16.mxu0 0
        %780 = vmatpush1.bf16.msra.mxu0 0
        %781 = vmatprep.subr.bf16.mxu0 0
        %782 = vmatpush1.bf16.msra.mxu0 0
        %783 = vmatprep.subr.bf16.mxu0 0
        %784 = vmatpush1.bf16.msra.mxu0 0
        %785 = vmatprep.subr.bf16.mxu0 0
        %786 = vmatpush1.bf16.msra.mxu0 0
        %787 = vmatprep.subr.bf16.mxu0 0
        %788 = vmatpush1.bf16.msra.mxu0 0
        %789 = vmatprep.subr.bf16.mxu0 0
        %790 = vmatpush1.bf16.msra.mxu0 0
        %791 = vmatprep.subr.bf16.mxu0 0
        %792 = vmatpush1.bf16.msra.mxu0 0
        %793 = vmatprep.subr.bf16.mxu0 0
        %794 = vmatpush1.bf16.msra.mxu0 0
        %795 = vmatprep.subr.bf16.mxu0 0
        %796 = vmatpush1.bf16.msra.mxu0 0
        %797 = vmatprep.subr.bf16.mxu0 0
        %798 = vmatpush1.bf16.msra.mxu0 0
        %799 = vmatprep.subr.bf16.mxu0 0
        %800 = vmatpush1.bf16.msra.mxu0 0
        %801 = vmatprep.subr.bf16.mxu0 0
        %802 = vmatpush1.bf16.msra.mxu0 0
        %803 = vmatprep.subr.bf16.mxu0 0
        %804 = vmatpush1.bf16.msra.mxu0 0
        %805 = vmatprep.subr.bf16.mxu0 0
        %806 = vmatpush1.bf16.msra.mxu0 0
        %807 = vmatprep.mubr.bf16.mxu0 0
        %808 = vmatmul.mubr.bf16.gmra.mrb[0].mxu0 %v724
        %v809 = vpop.f32.mrb[0].mxu0
        %v810 = vadd.f32 0.0, %v809
        %v811 = vpop.f32.mrb[0].mxu0
        %v812 = vpop.f32.mrb[0].mxu0
        %v813 = vadd.f32 0.0, %v812
        %v814 = vpop.f32.mrb[0].mxu0
        %815 = vmatprep.mubr.bf16.mxu0 0
        %816 = vmatmul.mubr.bf16.gmra.mrb[0].mxu0 %v727
        %v817 = vpop.f32.mrb[0].mxu0
        %v818 = vadd.f32 0.0, %v817
        %v819 = vpop.f32.mrb[0].mxu0
        %v820 = vpop.f32.mrb[0].mxu0
        %v821 = vadd.f32 0.0, %v820
        %v822 = vpop.f32.mrb[0].mxu0
        %823 = vmatprep.mubr.bf16.mxu0 0
        %824 = vmatmul.mubr.bf16.gmra.mrb[0].mxu0 %v730
        %v825 = vpop.f32.mrb[0].mxu0
        %v826 = vadd.f32 0.0, %v825
        %v827 = vpop.f32.mrb[0].mxu0
        %v828 = vpop.f32.mrb[0].mxu0
        %v829 = vadd.f32 0.0, %v828
        %v830 = vpop.f32.mrb[0].mxu0
        %831 = vmatprep.mubr.bf16.mxu0 0
        %832 = vmatmul.mubr.bf16.gmra.mrb[0].mxu0 %v733
        %v833 = vpop.f32.mrb[0].mxu0
        %v834 = vadd.f32 0.0, %v833
        %v835 = vpop.f32.mrb[0].mxu0
        %v836 = vpop.f32.mrb[0].mxu0
        %v837 = vadd.f32 0.0, %v836
        %v838 = vpop.f32.mrb[0].mxu0
        %839 = vmatprep.mubr.bf16.mxu0 0
        %840 = vmatmul.mubr.bf16.gmra.mrb[0].mxu0 %v736
        %v841 = vpop.f32.mrb[0].mxu0
        %v842 = vadd.f32 0.0, %v841
        %v843 = vpop.f32.mrb[0].mxu0
        %v844 = vpop.f32.mrb[0].mxu0
        %v845 = vadd.f32 0.0, %v844
        %v846 = vpop.f32.mrb[0].mxu0
        %847 = vmatprep.mubr.bf16.mxu0 0
        %848 = vmatmul.mubr.bf16.gmra.mrb[0].mxu0 %v739
        %v849 = vpop.f32.mrb[0].mxu0
        %v850 = vadd.f32 0.0, %v849
        %v851 = vpop.f32.mrb[0].mxu0
        %v852 = vpop.f32.mrb[0].mxu0
        %v853 = vadd.f32 0.0, %v852
        %v854 = vpop.f32.mrb[0].mxu0
        %855 = vmatprep.mubr.bf16.mxu0 0
        %856 = vmatmul.mubr.bf16.gmra.mrb[0].mxu0 %v742
        %v857 = vpop.f32.mrb[0].mxu0
        %v858 = vadd.f32 0.0, %v857
        %v859 = vpop.f32.mrb[0].mxu0
        %v860 = vpop.f32.mrb[0].mxu0
        %v861 = vadd.f32 0.0, %v860
        %v862 = vpop.f32.mrb[0].mxu0
        %863 = vmatprep.mubr.bf16.mxu0 0
        %864 = vmatmul.mubr.bf16.gmra.mrb[0].mxu0 %v745
        %v865 = vpop.f32.mrb[0].mxu0
        %v866 = vadd.f32 0.0, %v865
        %v867 = vpop.f32.mrb[0].mxu0
        %v868 = vpop.f32.mrb[0].mxu0
        %v869 = vadd.f32 0.0, %v868
        %v870 = vpop.f32.mrb[0].mxu0
        %871 = vmatprep.mubr.bf16.mxu0 0
        %872 = vmatmul.mubr.bf16.gmra.mrb[0].mxu0 %v748
        %v873 = vpop.f32.mrb[0].mxu0
        %v874 = vadd.f32 0.0, %v873
        %v875 = vpop.f32.mrb[0].mxu0
        %v876 = vpop.f32.mrb[0].mxu0
        %v877 = vadd.f32 0.0, %v876
        %v878 = vpop.f32.mrb[0].mxu0
        %879 = vmatprep.mubr.bf16.mxu0 0
        %880 = vmatmul.mubr.bf16.gmra.mrb[0].mxu0 %v751
        %v881 = vpop.f32.mrb[0].mxu0
        %v882 = vadd.f32 0.0, %v881
        %v883 = vpop.f32.mrb[0].mxu0
        %v884 = vpop.f32.mrb[0].mxu0
        %v885 = vadd.f32 0.0, %v884
        %v886 = vpop.f32.mrb[0].mxu0
        %887 = vmatprep.mubr.bf16.mxu0 0
        %888 = vmatmul.mubr.bf16.gmra.mrb[0].mxu0 %v754
        %v889 = vpop.f32.mrb[0].mxu0
        %v890 = vadd.f32 0.0, %v889
        %v891 = vpop.f32.mrb[0].mxu0
        %v892 = vpop.f32.mrb[0].mxu0
        %v893 = vadd.f32 0.0, %v892
        %v894 = vpop.f32.mrb[0].mxu0
        %895 = vmatprep.mubr.bf16.mxu0 0
        %896 = vmatmul.mubr.bf16.gmra.mrb[0].mxu0 %v757
        %v897 = vpop.f32.mrb[0].mxu0
        %v898 = vadd.f32 0.0, %v897
        %v899 = vpop.f32.mrb[0].mxu0
        %v900 = vpop.f32.mrb[0].mxu0
        %v901 = vadd.f32 0.0, %v900
        %v902 = vpop.f32.mrb[0].mxu0
        %903 = vmatprep.mubr.bf16.mxu0 0
        %904 = vmatmul.mubr.bf16.gmra.mrb[0].mxu0 %v760
        %v905 = vpop.f32.mrb[0].mxu0
        %v906 = vadd.f32 0.0, %v905
        %v907 = vpop.f32.mrb[0].mxu0
        %v908 = vpop.f32.mrb[0].mxu0
        %v909 = vadd.f32 0.0, %v908
        %v910 = vpop.f32.mrb[0].mxu0
        %911 = vmatprep.mubr.bf16.mxu0 0
        %912 = vmatmul.mubr.bf16.gmra.mrb[0].mxu0 %v763
        %v913 = vpop.f32.mrb[0].mxu0
        %v914 = vadd.f32 0.0, %v913
        %v915 = vpop.f32.mrb[0].mxu0
        %v916 = vpop.f32.mrb[0].mxu0
        %v917 = vadd.f32 0.0, %v916
        %v918 = vpop.f32.mrb[0].mxu0
        %919 = vmatprep.mubr.bf16.mxu0 0
        %920 = vmatmul.mubr.bf16.gmra.mrb[0].mxu0 %v766
        %v921 = vpop.f32.mrb[0].mxu0
        %v922 = vadd.f32 0.0, %v921
        %v923 = vpop.f32.mrb[0].mxu0
        %v924 = vpop.f32.mrb[0].mxu0
        %v925 = vadd.f32 0.0, %v924
        %v926 = vpop.f32.mrb[0].mxu0
        %927 = vmatprep.mubr.bf16.mxu0 0
        %928 = vmatmul.mubr.bf16.gmra.mrb[0].mxu0 %v769
        %v929 = vpop.f32.mrb[0].mxu0
        %v930 = vadd.f32 0.0, %v929
        %v931 = vpop.f32.mrb[0].mxu0
        %v932 = vpop.f32.mrb[0].mxu0
        %v933 = vadd.f32 0.0, %v932
        %v934 = vpop.f32.mrb[0].mxu0
        %935 = vdwg.mxu0
        %v968 = vunpack.c.l.b16 %v236
        %v969 = vunpack.c.l.b16 %v237
        %v970 = vunpack.c.l.b16 %v239
        %v971 = vunpack.c.l.b16 %v240
        %v972 = vunpack.c.l.b16 %v242
        %v973 = vunpack.c.l.b16 %v243
        %v974 = vunpack.c.l.b16 %v245
        %v975 = vunpack.c.l.b16 %v246
        %v976 = vunpack.c.l.b16 %v248
        %v977 = vunpack.c.l.b16 %v249
        %v978 = vunpack.c.l.b16 %v251
        %v979 = vunpack.c.l.b16 %v252
        %v980 = vunpack.c.l.b16 %v254
        %v981 = vunpack.c.l.b16 %v255
        %v982 = vunpack.c.l.b16 %v257
        %v983 = vunpack.c.l.b16 %v258
        %v984 = vunpack.c.l.b16 %v260
        %v985 = vunpack.c.l.b16 %v261
        %v986 = vunpack.c.l.b16 %v263
        %v987 = vunpack.c.l.b16 %v264
        %v988 = vunpack.c.l.b16 %v266
        %v989 = vunpack.c.l.b16 %v267
        %v990 = vunpack.c.l.b16 %v269
        %v991 = vunpack.c.l.b16 %v270
        %v992 = vunpack.c.l.b16 %v272
        %v993 = vunpack.c.l.b16 %v273
        %v994 = vunpack.c.l.b16 %v275
        %v995 = vunpack.c.l.b16 %v276
        %v996 = vunpack.c.l.b16 %v278
        %v997 = vunpack.c.l.b16 %v279
        %v998 = vunpack.c.l.b16 %v281
        %v999 = vunpack.c.l.b16 %v282
        %v1000 = vpack.c.b16 %v969, %v968
        %v1001 = vpack.c.b16 %v971, %v970
        %v1002 = vpack.c.b16 %v973, %v972
        %v1003 = vpack.c.b16 %v975, %v974
        %v1004 = vpack.c.b16 %v977, %v976
        %v1005 = vpack.c.b16 %v979, %v978
        %v1006 = vpack.c.b16 %v981, %v980
        %v1007 = vpack.c.b16 %v983, %v982
        %v1008 = vpack.c.b16 %v985, %v984
        %v1009 = vpack.c.b16 %v987, %v986
        %v1010 = vpack.c.b16 %v989, %v988
        %v1011 = vpack.c.b16 %v991, %v990
        %v1012 = vpack.c.b16 %v993, %v992
        %v1013 = vpack.c.b16 %v995, %v994
        %v1014 = vpack.c.b16 %v997, %v996
        %v1015 = vpack.c.b16 %v999, %v998
        %v1017 = vsel %vm722, %v1000, 0
        %v1020 = vsel %vm722, %v1001, 0
        %v1023 = vsel %vm722, %v1002, 0
        %v1026 = vsel %vm722, %v1003, 0
        %v1029 = vsel %vm722, %v1004, 0
        %v1032 = vsel %vm722, %v1005, 0
        %v1035 = vsel %vm722, %v1006, 0
        %v1038 = vsel %vm722, %v1007, 0
        %v1041 = vsel %vm722, %v1008, 0
        %v1044 = vsel %vm722, %v1009, 0
        %v1047 = vsel %vm722, %v1010, 0
        %v1050 = vsel %vm722, %v1011, 0
        %v1053 = vsel %vm722, %v1012, 0
        %v1056 = vsel %vm722, %v1013, 0
        %v1059 = vsel %vm722, %v1014, 0
        %v1062 = vsel %vm722, %v1015, 0
        %v1065 = vsel %vm771, %v284, 0
        %1067 = vmatprep.subr.bf16.mxu0 0
        %1068 = vmatpush1.bf16.msra.mxu0 %v1065
        %1069 = vmatprep.subr.bf16.mxu0 0
        %1070 = vmatpush1.bf16.msra.mxu0 0
        %1071 = vmatprep.subr.bf16.mxu0 0
        %1072 = vmatpush1.bf16.msra.mxu0 0
        %1073 = vmatprep.subr.bf16.mxu0 0
        %1074 = vmatpush1.bf16.msra.mxu0 0
        %1075 = vmatprep.subr.bf16.mxu0 0
        %1076 = vmatpush1.bf16.msra.mxu0 0
        %1077 = vmatprep.subr.bf16.mxu0 0
        %1078 = vmatpush1.bf16.msra.mxu0 0
        %1079 = vmatprep.subr.bf16.mxu0 0
        %1080 = vmatpush1.bf16.msra.mxu0 0
        %1081 = vmatprep.subr.bf16.mxu0 0
        %1082 = vmatpush1.bf16.msra.mxu0 0
        %1083 = vmatprep.subr.bf16.mxu0 0
        %1084 = vmatpush1.bf16.msra.mxu0 0
        %1085 = vmatprep.subr.bf16.mxu0 0
        %1086 = vmatpush1.bf16.msra.mxu0 0
        %1087 = vmatprep.subr.bf16.mxu0 0
        %1088 = vmatpush1.bf16.msra.mxu0 0
        %1089 = vmatprep.subr.bf16.mxu0 0
        %1090 = vmatpush1.bf16.msra.mxu0 0
        %1091 = vmatprep.subr.bf16.mxu0 0
        %1092 = vmatpush1.bf16.msra.mxu0 0
        %1093 = vmatprep.subr.bf16.mxu0 0
        %1094 = vmatpush1.bf16.msra.mxu0 0
        %1095 = vmatprep.subr.bf16.mxu0 0
        %1096 = vmatpush1.bf16.msra.mxu0 0
        %1097 = vmatprep.subr.bf16.mxu0 0
        %1098 = vmatpush1.bf16.msra.mxu0 0
        %1099 = vmatprep.mubr.bf16.mxu0 0
        %1100 = vmatmul.mubr.bf16.gmra.mrb[0].mxu0 %v1017
        %v1101 = vpop.f32.mrb[0].mxu0
        %v1102 = vadd.f32 %v810, %v1101
        %v1103 = vpop.f32.mrb[0].mxu0
        %v1104 = vpop.f32.mrb[0].mxu0
        %v1105 = vadd.f32 %v813, %v1104
        %v1106 = vpop.f32.mrb[0].mxu0
        %1107 = vmatprep.mubr.bf16.mxu0 0
        %1108 = vmatmul.mubr.bf16.gmra.mrb[0].mxu0 %v1020
        %v1109 = vpop.f32.mrb[0].mxu0
        %v1110 = vadd.f32 %v818, %v1109
        %v1111 = vpop.f32.mrb[0].mxu0
        %v1112 = vpop.f32.mrb[0].mxu0
        %v1113 = vadd.f32 %v821, %v1112
        %v1114 = vpop.f32.mrb[0].mxu0
        %1115 = vmatprep.mubr.bf16.mxu0 0
        %1116 = vmatmul.mubr.bf16.gmra.mrb[0].mxu0 %v1023
        %v1117 = vpop.f32.mrb[0].mxu0
        %v1118 = vadd.f32 %v826, %v1117
        %v1119 = vpop.f32.mrb[0].mxu0
        %v1120 = vpop.f32.mrb[0].mxu0
        %v1121 = vadd.f32 %v829, %v1120
        %v1122 = vpop.f32.mrb[0].mxu0
        %1123 = vmatprep.mubr.bf16.mxu0 0
        %1124 = vmatmul.mubr.bf16.gmra.mrb[0].mxu0 %v1026
        %v1125 = vpop.f32.mrb[0].mxu0
        %v1126 = vadd.f32 %v834, %v1125
        %v1127 = vpop.f32.mrb[0].mxu0
        %v1128 = vpop.f32.mrb[0].mxu0
        %v1129 = vadd.f32 %v837, %v1128
        %v1130 = vpop.f32.mrb[0].mxu0
        %1131 = vmatprep.mubr.bf16.mxu0 0
        %1132 = vmatmul.mubr.bf16.gmra.mrb[0].mxu0 %v1029
        %v1133 = vpop.f32.mrb[0].mxu0
        %v1134 = vadd.f32 %v842, %v1133
        %v1135 = vpop.f32.mrb[0].mxu0
        %v1136 = vpop.f32.mrb[0].mxu0
        %v1137 = vadd.f32 %v845, %v1136
        %v1138 = vpop.f32.mrb[0].mxu0
        %1139 = vmatprep.mubr.bf16.mxu0 0
        %1140 = vmatmul.mubr.bf16.gmra.mrb[0].mxu0 %v1032
        %v1141 = vpop.f32.mrb[0].mxu0
        %v1142 = vadd.f32 %v850, %v1141
        %v1143 = vpop.f32.mrb[0].mxu0
        %v1144 = vpop.f32.mrb[0].mxu0
        %v1145 = vadd.f32 %v853, %v1144
        %v1146 = vpop.f32.mrb[0].mxu0
        %1147 = vmatprep.mubr.bf16.mxu0 0
        %1148 = vmatmul.mubr.bf16.gmra.mrb[0].mxu0 %v1035
        %v1149 = vpop.f32.mrb[0].mxu0
        %v1150 = vadd.f32 %v858, %v1149
        %v1151 = vpop.f32.mrb[0].mxu0
        %v1152 = vpop.f32.mrb[0].mxu0
        %v1153 = vadd.f32 %v861, %v1152
        %v1154 = vpop.f32.mrb[0].mxu0
        %1155 = vmatprep.mubr.bf16.mxu0 0
        %1156 = vmatmul.mubr.bf16.gmra.mrb[0].mxu0 %v1038
        %v1157 = vpop.f32.mrb[0].mxu0
        %v1158 = vadd.f32 %v866, %v1157
        %v1159 = vpop.f32.mrb[0].mxu0
        %v1160 = vpop.f32.mrb[0].mxu0
        %v1161 = vadd.f32 %v869, %v1160
        %v1162 = vpop.f32.mrb[0].mxu0
        %1163 = vmatprep.mubr.bf16.mxu0 0
        %1164 = vmatmul.mubr.bf16.gmra.mrb[0].mxu0 %v1041
        %v1165 = vpop.f32.mrb[0].mxu0
        %v1166 = vadd.f32 %v874, %v1165
        %v1167 = vpop.f32.mrb[0].mxu0
        %v1168 = vpop.f32.mrb[0].mxu0
        %v1169 = vadd.f32 %v877, %v1168
        %v1170 = vpop.f32.mrb[0].mxu0
        %1171 = vmatprep.mubr.bf16.mxu0 0
        %1172 = vmatmul.mubr.bf16.gmra.mrb[0].mxu0 %v1044
        %v1173 = vpop.f32.mrb[0].mxu0
        %v1174 = vadd.f32 %v882, %v1173
        %v1175 = vpop.f32.mrb[0].mxu0
        %v1176 = vpop.f32.mrb[0].mxu0
        %v1177 = vadd.f32 %v885, %v1176
        %v1178 = vpop.f32.mrb[0].mxu0
        %1179 = vmatprep.mubr.bf16.mxu0 0
        %1180 = vmatmul.mubr.bf16.gmra.mrb[0].mxu0 %v1047
        %v1181 = vpop.f32.mrb[0].mxu0
        %v1182 = vadd.f32 %v890, %v1181
        %v1183 = vpop.f32.mrb[0].mxu0
        %v1184 = vpop.f32.mrb[0].mxu0
        %v1185 = vadd.f32 %v893, %v1184
        %v1186 = vpop.f32.mrb[0].mxu0
        %1187 = vmatprep.mubr.bf16.mxu0 0
        %1188 = vmatmul.mubr.bf16.gmra.mrb[0].mxu0 %v1050
        %v1189 = vpop.f32.mrb[0].mxu0
        %v1190 = vadd.f32 %v898, %v1189
        %v1191 = vpop.f32.mrb[0].mxu0
        %v1192 = vpop.f32.mrb[0].mxu0
        %v1193 = vadd.f32 %v901, %v1192
        %v1194 = vpop.f32.mrb[0].mxu0
        %1195 = vmatprep.mubr.bf16.mxu0 0
        %1196 = vmatmul.mubr.bf16.gmra.mrb[0].mxu0 %v1053
        %v1197 = vpop.f32.mrb[0].mxu0
        %v1198 = vadd.f32 %v906, %v1197
        %v1199 = vpop.f32.mrb[0].mxu0
        %v1200 = vpop.f32.mrb[0].mxu0
        %v1201 = vadd.f32 %v909, %v1200
        %v1202 = vpop.f32.mrb[0].mxu0
        %1203 = vmatprep.mubr.bf16.mxu0 0
        %1204 = vmatmul.mubr.bf16.gmra.mrb[0].mxu0 %v1056
        %v1205 = vpop.f32.mrb[0].mxu0
        %v1206 = vadd.f32 %v914, %v1205
        %v1207 = vpop.f32.mrb[0].mxu0
        %v1208 = vpop.f32.mrb[0].mxu0
        %v1209 = vadd.f32 %v917, %v1208
        %v1210 = vpop.f32.mrb[0].mxu0
        %1211 = vmatprep.mubr.bf16.mxu0 0
        %1212 = vmatmul.mubr.bf16.gmra.mrb[0].mxu0 %v1059
        %v1213 = vpop.f32.mrb[0].mxu0
        %v1214 = vadd.f32 %v922, %v1213
        %v1215 = vpop.f32.mrb[0].mxu0
        %v1216 = vpop.f32.mrb[0].mxu0
        %v1217 = vadd.f32 %v925, %v1216
        %v1218 = vpop.f32.mrb[0].mxu0
        %1219 = vmatprep.mubr.bf16.mxu0 0
        %1220 = vmatmul.mubr.bf16.gmra.mrb[0].mxu0 %v1062
        %v1221 = vpop.f32.mrb[0].mxu0
        %v1222 = vadd.f32 %v930, %v1221
        %v1223 = vpop.f32.mrb[0].mxu0
        %v1224 = vpop.f32.mrb[0].mxu0
        %v1225 = vadd.f32 %v933, %v1224
        %v1226 = vpop.f32.mrb[0].mxu0
        %1227 = vdwg.mxu0
        %vm1244 = vcmask 1042432
        %vm1245 = vcmask 1046532
        %vm1246 = vmor %vm1244, %vm1245
        %v1247 = vrot.slane %v236, 5
        %v1248 = vrot.slane %v1247, 4
        %v1249 = vrot.slane %v237, 5
        %v1250 = vsel %vm1246, %v1248, %v1249
        %v1251 = vrot.slane %v1249, 4
        %v1252 = vrot.slane %v238, 5
        %v1253 = vsel %vm1246, %v1251, %v1252
        %v1254 = vrot.slane %v239, 5
        %v1255 = vrot.slane %v1254, 4
        %v1256 = vrot.slane %v240, 5
        %v1257 = vsel %vm1246, %v1255, %v1256
        %v1258 = vrot.slane %v1256, 4
        %v1259 = vrot.slane %v241, 5
        %v1260 = vsel %vm1246, %v1258, %v1259
        %v1261 = vrot.slane %v242, 5
        %v1262 = vrot.slane %v1261, 4
        %v1263 = vrot.slane %v243, 5
        %v1264 = vsel %vm1246, %v1262, %v1263
        %v1265 = vrot.slane %v1263, 4
        %v1266 = vrot.slane %v244, 5
        %v1267 = vsel %vm1246, %v1265, %v1266
        %v1268 = vrot.slane %v245, 5
        %v1269 = vrot.slane %v1268, 4
        %v1270 = vrot.slane %v246, 5
        %v1271 = vsel %vm1246, %v1269, %v1270
        %v1272 = vrot.slane %v1270, 4
        %v1273 = vrot.slane %v247, 5
        %v1274 = vsel %vm1246, %v1272, %v1273
        %v1275 = vrot.slane %v248, 5
        %v1276 = vrot.slane %v1275, 4
        %v1277 = vrot.slane %v249, 5
        %v1278 = vsel %vm1246, %v1276, %v1277
        %v1279 = vrot.slane %v1277, 4
        %v1280 = vrot.slane %v250, 5
        %v1281 = vsel %vm1246, %v1279, %v1280
        %v1282 = vrot.slane %v251, 5
        %v1283 = vrot.slane %v1282, 4
        %v1284 = vrot.slane %v252, 5
        %v1285 = vsel %vm1246, %v1283, %v1284
        %v1286 = vrot.slane %v1284, 4
        %v1287 = vrot.slane %v253, 5
        %v1288 = vsel %vm1246, %v1286, %v1287
        %v1289 = vrot.slane %v254, 5
        %v1290 = vrot.slane %v1289, 4
        %v1291 = vrot.slane %v255, 5
        %v1292 = vsel %vm1246, %v1290, %v1291
        %v1293 = vrot.slane %v1291, 4
        %v1294 = vrot.slane %v256, 5
        %v1295 = vsel %vm1246, %v1293, %v1294
        %v1296 = vrot.slane %v257, 5
        %v1297 = vrot.slane %v1296, 4
        %v1298 = vrot.slane %v258, 5
        %v1299 = vsel %vm1246, %v1297, %v1298
        %v1300 = vrot.slane %v1298, 4
        %v1301 = vrot.slane %v259, 5
        %v1302 = vsel %vm1246, %v1300, %v1301
        %v1303 = vrot.slane %v260, 5
        %v1304 = vrot.slane %v1303, 4
        %v1305 = vrot.slane %v261, 5
        %v1306 = vsel %vm1246, %v1304, %v1305
        %v1307 = vrot.slane %v1305, 4
        %v1308 = vrot.slane %v262, 5
        %v1309 = vsel %vm1246, %v1307, %v1308
        %v1310 = vrot.slane %v263, 5
        %v1311 = vrot.slane %v1310, 4
        %v1312 = vrot.slane %v264, 5
        %v1313 = vsel %vm1246, %v1311, %v1312
        %v1314 = vrot.slane %v1312, 4
        %v1315 = vrot.slane %v265, 5
        %v1316 = vsel %vm1246, %v1314, %v1315
        %v1317 = vrot.slane %v266, 5
        %v1318 = vrot.slane %v1317, 4
        %v1319 = vrot.slane %v267, 5
        %v1320 = vsel %vm1246, %v1318, %v1319
        %v1321 = vrot.slane %v1319, 4
        %v1322 = vrot.slane %v268, 5
        %v1323 = vsel %vm1246, %v1321, %v1322
        %v1324 = vrot.slane %v269, 5
        %v1325 = vrot.slane %v1324, 4
        %v1326 = vrot.slane %v270, 5
        %v1327 = vsel %vm1246, %v1325, %v1326
        %v1328 = vrot.slane %v1326, 4
        %v1329 = vrot.slane %v271, 5
        %v1330 = vsel %vm1246, %v1328, %v1329
        %v1331 = vrot.slane %v272, 5
        %v1332 = vrot.slane %v1331, 4
        %v1333 = vrot.slane %v273, 5
        %v1334 = vsel %vm1246, %v1332, %v1333
        %v1335 = vrot.slane %v1333, 4
        %v1336 = vrot.slane %v274, 5
        %v1337 = vsel %vm1246, %v1335, %v1336
        %v1338 = vrot.slane %v275, 5
        %v1339 = vrot.slane %v1338, 4
        %v1340 = vrot.slane %v276, 5
        %v1341 = vsel %vm1246, %v1339, %v1340
        %v1342 = vrot.slane %v1340, 4
        %v1343 = vrot.slane %v277, 5
        %v1344 = vsel %vm1246, %v1342, %v1343
        %v1345 = vrot.slane %v278, 5
        %v1346 = vrot.slane %v1345, 4
        %v1347 = vrot.slane %v279, 5
        %v1348 = vsel %vm1246, %v1346, %v1347
        %v1349 = vrot.slane %v1347, 4
        %v1350 = vrot.slane %v280, 5
        %v1351 = vsel %vm1246, %v1349, %v1350
        %v1352 = vrot.slane %v281, 5
        %v1353 = vrot.slane %v1352, 4
        %v1354 = vrot.slane %v282, 5
        %v1355 = vsel %vm1246, %v1353, %v1354
        %v1356 = vrot.slane %v1354, 4
        %v1357 = vrot.slane %v283, 5
        %v1358 = vsel %vm1246, %v1356, %v1357
        %s1359 = scalar_lea.vmem [#allocation5], 8
        %v1360 = vld [vmem:[%s1359] sm:$0xf]
        %v1361 = vunpack.c.l.b16 %v1250
        %v1362 = vunpack.c.l.b16 %v1253
        %v1363 = vunpack.c.l.b16 %v1257
        %v1364 = vunpack.c.l.b16 %v1260
        %v1365 = vunpack.c.l.b16 %v1264
        %v1366 = vunpack.c.l.b16 %v1267
        %v1367 = vunpack.c.l.b16 %v1271
        %v1368 = vunpack.c.l.b16 %v1274
        %v1369 = vunpack.c.l.b16 %v1278
        %v1370 = vunpack.c.l.b16 %v1281
        %v1371 = vunpack.c.l.b16 %v1285
        %v1372 = vunpack.c.l.b16 %v1288
        %v1373 = vunpack.c.l.b16 %v1292
        %v1374 = vunpack.c.l.b16 %v1295
        %v1375 = vunpack.c.l.b16 %v1299
        %v1376 = vunpack.c.l.b16 %v1302
        %v1377 = vunpack.c.l.b16 %v1306
        %v1378 = vunpack.c.l.b16 %v1309
        %v1379 = vunpack.c.l.b16 %v1313
        %v1380 = vunpack.c.l.b16 %v1316
        %v1381 = vunpack.c.l.b16 %v1320
        %v1382 = vunpack.c.l.b16 %v1323
        %v1383 = vunpack.c.l.b16 %v1327
        %v1384 = vunpack.c.l.b16 %v1330
        %v1385 = vunpack.c.l.b16 %v1334
        %v1386 = vunpack.c.l.b16 %v1337
        %v1387 = vunpack.c.l.b16 %v1341
        %v1388 = vunpack.c.l.b16 %v1344
        %v1389 = vunpack.c.l.b16 %v1348
        %v1390 = vunpack.c.l.b16 %v1351
        %v1391 = vunpack.c.l.b16 %v1355
        %v1392 = vunpack.c.l.b16 %v1358
        %v1393 = vpack.c.b16 %v1362, %v1361
        %v1394 = vpack.c.b16 %v1364, %v1363
        %v1395 = vpack.c.b16 %v1366, %v1365
        %v1396 = vpack.c.b16 %v1368, %v1367
        %v1397 = vpack.c.b16 %v1370, %v1369
        %v1398 = vpack.c.b16 %v1372, %v1371
        %v1399 = vpack.c.b16 %v1374, %v1373
        %v1400 = vpack.c.b16 %v1376, %v1375
        %v1401 = vpack.c.b16 %v1378, %v1377
        %v1402 = vpack.c.b16 %v1380, %v1379
        %v1403 = vpack.c.b16 %v1382, %v1381
        %v1404 = vpack.c.b16 %v1384, %v1383
        %v1405 = vpack.c.b16 %v1386, %v1385
        %v1406 = vpack.c.b16 %v1388, %v1387
        %v1407 = vpack.c.b16 %v1390, %v1389
        %v1408 = vpack.c.b16 %v1392, %v1391
        %v1410 = vsel %vm722, %v1393, 0
        %v1413 = vsel %vm722, %v1394, 0
        %v1416 = vsel %vm722, %v1395, 0
        %v1419 = vsel %vm722, %v1396, 0
        %v1422 = vsel %vm722, %v1397, 0
        %v1425 = vsel %vm722, %v1398, 0
        %v1428 = vsel %vm722, %v1399, 0
        %v1431 = vsel %vm722, %v1400, 0
        %v1434 = vsel %vm722, %v1401, 0
        %v1437 = vsel %vm722, %v1402, 0
        %v1440 = vsel %vm722, %v1403, 0
        %v1443 = vsel %vm722, %v1404, 0
        %v1446 = vsel %vm722, %v1405, 0
        %v1449 = vsel %vm722, %v1406, 0
        %v1452 = vsel %vm722, %v1407, 0
        %v1455 = vsel %vm722, %v1408, 0
        %v1458 = vsel %vm771, %v1360, 0
        %1460 = vmatprep.subr.bf16.mxu0 0
        %1461 = vmatpush1.bf16.msra.mxu0 %v1458
        %1462 = vmatprep.subr.bf16.mxu0 0
        %1463 = vmatpush1.bf16.msra.mxu0 0
        %1464 = vmatprep.subr.bf16.mxu0 0
        %1465 = vmatpush1.bf16.msra.mxu0 0
        %1466 = vmatprep.subr.bf16.mxu0 0
        %1467 = vmatpush1.bf16.msra.mxu0 0
        %1468 = vmatprep.subr.bf16.mxu0 0
        %1469 = vmatpush1.bf16.msra.mxu0 0
        %1470 = vmatprep.subr.bf16.mxu0 0
        %1471 = vmatpush1.bf16.msra.mxu0 0
        %1472 = vmatprep.subr.bf16.mxu0 0
        %1473 = vmatpush1.bf16.msra.mxu0 0
        %1474 = vmatprep.subr.bf16.mxu0 0
        %1475 = vmatpush1.bf16.msra.mxu0 0
        %1476 = vmatprep.subr.bf16.mxu0 0
        %1477 = vmatpush1.bf16.msra.mxu0 0
        %1478 = vmatprep.subr.bf16.mxu0 0
        %1479 = vmatpush1.bf16.msra.mxu0 0
        %1480 = vmatprep.subr.bf16.mxu0 0
        %1481 = vmatpush1.bf16.msra.mxu0 0
        %1482 = vmatprep.subr.bf16.mxu0 0
        %1483 = vmatpush1.bf16.msra.mxu0 0
        %1484 = vmatprep.subr.bf16.mxu0 0
        %1485 = vmatpush1.bf16.msra.mxu0 0
        %1486 = vmatprep.subr.bf16.mxu0 0
        %1487 = vmatpush1.bf16.msra.mxu0 0
        %1488 = vmatprep.subr.bf16.mxu0 0
        %1489 = vmatpush1.bf16.msra.mxu0 0
        %1490 = vmatprep.subr.bf16.mxu0 0
        %1491 = vmatpush1.bf16.msra.mxu0 0
        %1492 = vmatprep.mubr.bf16.mxu0 0
        %1493 = vmatmul.mubr.bf16.gmra.mrb[0].mxu0 %v1410
        %v1494 = vpop.f32.mrb[0].mxu0
        %v1495 = vadd.f32 0.0, %v1494
        %v1496 = vpop.f32.mrb[0].mxu0
        %v1497 = vpop.f32.mrb[0].mxu0
        %v1498 = vadd.f32 0.0, %v1497
        %v1499 = vpop.f32.mrb[0].mxu0
        %1500 = vmatprep.mubr.bf16.mxu0 0
        %1501 = vmatmul.mubr.bf16.gmra.mrb[0].mxu0 %v1413
        %v1502 = vpop.f32.mrb[0].mxu0
        %v1503 = vadd.f32 0.0, %v1502
        %v1504 = vpop.f32.mrb[0].mxu0
        %v1505 = vpop.f32.mrb[0].mxu0
        %v1506 = vadd.f32 0.0, %v1505
        %v1507 = vpop.f32.mrb[0].mxu0
        %1508 = vmatprep.mubr.bf16.mxu0 0
        %1509 = vmatmul.mubr.bf16.gmra.mrb[0].mxu0 %v1416
        %v1510 = vpop.f32.mrb[0].mxu0
        %v1511 = vadd.f32 0.0, %v1510
        %v1512 = vpop.f32.mrb[0].mxu0
        %v1513 = vpop.f32.mrb[0].mxu0
        %v1514 = vadd.f32 0.0, %v1513
        %v1515 = vpop.f32.mrb[0].mxu0
        %1516 = vmatprep.mubr.bf16.mxu0 0
        %1517 = vmatmul.mubr.bf16.gmra.mrb[0].mxu0 %v1419
        %v1518 = vpop.f32.mrb[0].mxu0
        %v1519 = vadd.f32 0.0, %v1518
        %v1520 = vpop.f32.mrb[0].mxu0
        %v1521 = vpop.f32.mrb[0].mxu0
        %v1522 = vadd.f32 0.0, %v1521
        %v1523 = vpop.f32.mrb[0].mxu0
        %1524 = vmatprep.mubr.bf16.mxu0 0
        %1525 = vmatmul.mubr.bf16.gmra.mrb[0].mxu0 %v1422
        %v1526 = vpop.f32.mrb[0].mxu0
        %v1527 = vadd.f32 0.0, %v1526
        %v1528 = vpop.f32.mrb[0].mxu0
        %v1529 = vpop.f32.mrb[0].mxu0
        %v1530 = vadd.f32 0.0, %v1529
        %v1531 = vpop.f32.mrb[0].mxu0
        %1532 = vmatprep.mubr.bf16.mxu0 0
        %1533 = vmatmul.mubr.bf16.gmra.mrb[0].mxu0 %v1425
        %v1534 = vpop.f32.mrb[0].mxu0
        %v1535 = vadd.f32 0.0, %v1534
        %v1536 = vpop.f32.mrb[0].mxu0
        %v1537 = vpop.f32.mrb[0].mxu0
        %v1538 = vadd.f32 0.0, %v1537
        %v1539 = vpop.f32.mrb[0].mxu0
        %1540 = vmatprep.mubr.bf16.mxu0 0
        %1541 = vmatmul.mubr.bf16.gmra.mrb[0].mxu0 %v1428
        %v1542 = vpop.f32.mrb[0].mxu0
        %v1543 = vadd.f32 0.0, %v1542
        %v1544 = vpop.f32.mrb[0].mxu0
        %v1545 = vpop.f32.mrb[0].mxu0
        %v1546 = vadd.f32 0.0, %v1545
        %v1547 = vpop.f32.mrb[0].mxu0
        %1548 = vmatprep.mubr.bf16.mxu0 0
        %1549 = vmatmul.mubr.bf16.gmra.mrb[0].mxu0 %v1431
        %v1550 = vpop.f32.mrb[0].mxu0
        %v1551 = vadd.f32 0.0, %v1550
        %v1552 = vpop.f32.mrb[0].mxu0
        %v1553 = vpop.f32.mrb[0].mxu0
        %v1554 = vadd.f32 0.0, %v1553
        %v1555 = vpop.f32.mrb[0].mxu0
        %1556 = vmatprep.mubr.bf16.mxu0 0
        %1557 = vmatmul.mubr.bf16.gmra.mrb[0].mxu0 %v1434
        %v1558 = vpop.f32.mrb[0].mxu0
        %v1559 = vadd.f32 0.0, %v1558
        %v1560 = vpop.f32.mrb[0].mxu0
        %v1561 = vpop.f32.mrb[0].mxu0
        %v1562 = vadd.f32 0.0, %v1561
        %v1563 = vpop.f32.mrb[0].mxu0
        %1564 = vmatprep.mubr.bf16.mxu0 0
        %1565 = vmatmul.mubr.bf16.gmra.mrb[0].mxu0 %v1437
        %v1566 = vpop.f32.mrb[0].mxu0
        %v1567 = vadd.f32 0.0, %v1566
        %v1568 = vpop.f32.mrb[0].mxu0
        %v1569 = vpop.f32.mrb[0].mxu0
        %v1570 = vadd.f32 0.0, %v1569
        %v1571 = vpop.f32.mrb[0].mxu0
        %1572 = vmatprep.mubr.bf16.mxu0 0
        %1573 = vmatmul.mubr.bf16.gmra.mrb[0].mxu0 %v1440
        %v1574 = vpop.f32.mrb[0].mxu0
        %v1575 = vadd.f32 0.0, %v1574
        %v1576 = vpop.f32.mrb[0].mxu0
        %v1577 = vpop.f32.mrb[0].mxu0
        %v1578 = vadd.f32 0.0, %v1577
        %v1579 = vpop.f32.mrb[0].mxu0
        %1580 = vmatprep.mubr.bf16.mxu0 0
        %1581 = vmatmul.mubr.bf16.gmra.mrb[0].mxu0 %v1443
        %v1582 = vpop.f32.mrb[0].mxu0
        %v1583 = vadd.f32 0.0, %v1582
        %v1584 = vpop.f32.mrb[0].mxu0
        %v1585 = vpop.f32.mrb[0].mxu0
        %v1586 = vadd.f32 0.0, %v1585
        %v1587 = vpop.f32.mrb[0].mxu0
        %1588 = vmatprep.mubr.bf16.mxu0 0
        %1589 = vmatmul.mubr.bf16.gmra.mrb[0].mxu0 %v1446
        %v1590 = vpop.f32.mrb[0].mxu0
        %v1591 = vadd.f32 0.0, %v1590
        %v1592 = vpop.f32.mrb[0].mxu0
        %v1593 = vpop.f32.mrb[0].mxu0
        %v1594 = vadd.f32 0.0, %v1593
        %v1595 = vpop.f32.mrb[0].mxu0
        %1596 = vmatprep.mubr.bf16.mxu0 0
        %1597 = vmatmul.mubr.bf16.gmra.mrb[0].mxu0 %v1449
        %v1598 = vpop.f32.mrb[0].mxu0
        %v1599 = vadd.f32 0.0, %v1598
        %v1600 = vpop.f32.mrb[0].mxu0
        %v1601 = vpop.f32.mrb[0].mxu0
        %v1602 = vadd.f32 0.0, %v1601
        %v1603 = vpop.f32.mrb[0].mxu0
        %1604 = vmatprep.mubr.bf16.mxu0 0
        %1605 = vmatmul.mubr.bf16.gmra.mrb[0].mxu0 %v1452
        %v1606 = vpop.f32.mrb[0].mxu0
        %v1607 = vadd.f32 0.0, %v1606
        %v1608 = vpop.f32.mrb[0].mxu0
        %v1609 = vpop.f32.mrb[0].mxu0
        %v1610 = vadd.f32 0.0, %v1609
        %v1611 = vpop.f32.mrb[0].mxu0
        %1612 = vmatprep.mubr.bf16.mxu0 0
        %1613 = vmatmul.mubr.bf16.gmra.mrb[0].mxu0 %v1455
        %v1614 = vpop.f32.mrb[0].mxu0
        %v1615 = vadd.f32 0.0, %v1614
        %v1616 = vpop.f32.mrb[0].mxu0
        %v1617 = vpop.f32.mrb[0].mxu0
        %v1618 = vadd.f32 0.0, %v1617
        %v1619 = vpop.f32.mrb[0].mxu0
        %1620 = vdwg.mxu0
        %v1621 = vadd.f32 %v1102, %v1495
        %v1622 = vadd.f32 %v1105, %v1498
        %v1623 = vadd.f32 %v1110, %v1503
        %v1624 = vadd.f32 %v1113, %v1506
        %v1625 = vadd.f32 %v1118, %v1511
        %v1626 = vadd.f32 %v1121, %v1514
        %v1627 = vadd.f32 %v1126, %v1519
        %v1628 = vadd.f32 %v1129, %v1522
        %v1629 = vadd.f32 %v1134, %v1527
        %v1630 = vadd.f32 %v1137, %v1530
        %v1631 = vadd.f32 %v1142, %v1535
        %v1632 = vadd.f32 %v1145, %v1538
        %v1633 = vadd.f32 %v1150, %v1543
        %v1634 = vadd.f32 %v1153, %v1546
        %v1635 = vadd.f32 %v1158, %v1551
        %v1636 = vadd.f32 %v1161, %v1554
        %v1637 = vadd.f32 %v1166, %v1559
        %v1638 = vadd.f32 %v1169, %v1562
        %v1639 = vadd.f32 %v1174, %v1567
        %v1640 = vadd.f32 %v1177, %v1570
        %v1641 = vadd.f32 %v1182, %v1575
        %v1642 = vadd.f32 %v1185, %v1578
        %v1643 = vadd.f32 %v1190, %v1583
        %v1644 = vadd.f32 %v1193, %v1586
        %v1645 = vadd.f32 %v1198, %v1591
        %v1646 = vadd.f32 %v1201, %v1594
        %v1647 = vadd.f32 %v1206, %v1599
        %v1648 = vadd.f32 %v1209, %v1602
        %v1649 = vadd.f32 %v1214, %v1607
        %v1650 = vadd.f32 %v1217, %v1610
        %v1651 = vadd.f32 %v1222, %v1615
        %v1652 = vadd.f32 %v1225, %v1618
        %s1653 = sadd.s32 %s232, 1
        %s1654 = smul.u32 %s1653, 3
        %s1655 = smul.addr %s1654, 4
        %s1656 = scalar_lea.vmem %s199, %s1655 [#allocation2]
        %v1657 = vld [vmem:[%s1656] sm:$0xf]
        %v1658 = vld [vmem:[%s1656 + $0x4] sm:$0xf]
        %v1659 = vld [vmem:[%s1656 + $0x8] sm:$0x1]
        %v1660 = vld [vmem:[%s1656 + $0xc] sm:$0xf]
        %v1661 = vld [vmem:[%s1656 + $0x10] sm:$0xf]
        %v1662 = vld [vmem:[%s1656 + $0x14] sm:$0x1]
        %v1663 = vld [vmem:[%s1656 + $0x18] sm:$0xf]
        %v1664 = vld [vmem:[%s1656 + $0x1c] sm:$0xf]
        %v1665 = vld [vmem:[%s1656 + $0x20] sm:$0x1]
        %v1666 = vld [vmem:[%s1656 + $0x24] sm:$0xf]
        %v1667 = vld [vmem:[%s1656 + $0x28] sm:$0xf]
        %v1668 = vld [vmem:[%s1656 + $0x2c] sm:$0x1]
        %v1669 = vld [vmem:[%s1656 + $0x30] sm:$0xf]
        %v1670 = vld [vmem:[%s1656 + $0x34] sm:$0xf]
        %v1671 = vld [vmem:[%s1656 + $0x38] sm:$0x1]
        %v1672 = vld [vmem:[%s1656 + $0x3c] sm:$0xf]
        %v1673 = vld [vmem:[%s1656 + $0x40] sm:$0xf]
        %v1674 = vld [vmem:[%s1656 + $0x44] sm:$0x1]
        %v1675 = vld [vmem:[%s1656 + $0x48] sm:$0xf]
        %v1676 = vld [vmem:[%s1656 + $0x4c] sm:$0xf]
        %v1677 = vld [vmem:[%s1656 + $0x50] sm:$0x1]
        %v1678 = vld [vmem:[%s1656 + $0x54] sm:$0xf]
        %v1679 = vld [vmem:[%s1656 + $0x58] sm:$0xf]
        %v1680 = vld [vmem:[%s1656 + $0x5c] sm:$0x1]
        %v1681 = vld [vmem:[%s1656 + $0x60] sm:$0xf]
        %v1682 = vld [vmem:[%s1656 + $0x64] sm:$0xf]
        %v1683 = vld [vmem:[%s1656 + $0x68] sm:$0x1]
        %v1684 = vld [vmem:[%s1656 + $0x6c] sm:$0xf]
        %v1685 = vld [vmem:[%s1656 + $0x70] sm:$0xf]
        %v1686 = vld [vmem:[%s1656 + $0x74] sm:$0x1]
        %v1687 = vld [vmem:[%s1656 + $0x78] sm:$0xf]
        %v1688 = vld [vmem:[%s1656 + $0x7c] sm:$0xf]
        %v1689 = vld [vmem:[%s1656 + $0x80] sm:$0x1]
        %v1690 = vld [vmem:[%s1656 + $0x84] sm:$0xf]
        %v1691 = vld [vmem:[%s1656 + $0x88] sm:$0xf]
        %v1692 = vld [vmem:[%s1656 + $0x8c] sm:$0x1]
        %v1693 = vld [vmem:[%s1656 + $0x90] sm:$0xf]
        %v1694 = vld [vmem:[%s1656 + $0x94] sm:$0xf]
        %v1695 = vld [vmem:[%s1656 + $0x98] sm:$0x1]
        %v1696 = vld [vmem:[%s1656 + $0x9c] sm:$0xf]
        %v1697 = vld [vmem:[%s1656 + $0xa0] sm:$0xf]
        %v1698 = vld [vmem:[%s1656 + $0xa4] sm:$0x1]
        %v1699 = vld [vmem:[%s1656 + $0xa8] sm:$0xf]
        %v1700 = vld [vmem:[%s1656 + $0xac] sm:$0xf]
        %v1701 = vld [vmem:[%s1656 + $0xb0] sm:$0x1]
        %v1702 = vld [vmem:[%s1656 + $0xb4] sm:$0xf]
        %v1703 = vld [vmem:[%s1656 + $0xb8] sm:$0xf]
        %v1704 = vld [vmem:[%s1656 + $0xbc] sm:$0x1]
        %s1705 = scalar_lea.vmem [#allocation5], 12
        %v1706 = vld [vmem:[%s1705] sm:$0xf]
        %v1739 = vunpack.c.l.b16 %v1657
        %v1740 = vunpack.c.l.b16 %v1658
        %v1741 = vunpack.c.l.b16 %v1660
        %v1742 = vunpack.c.l.b16 %v1661
        %v1743 = vunpack.c.l.b16 %v1663
        %v1744 = vunpack.c.l.b16 %v1664
        %v1745 = vunpack.c.l.b16 %v1666
        %v1746 = vunpack.c.l.b16 %v1667
        %v1747 = vunpack.c.l.b16 %v1669
        %v1748 = vunpack.c.l.b16 %v1670
        %v1749 = vunpack.c.l.b16 %v1672
        %v1750 = vunpack.c.l.b16 %v1673
        %v1751 = vunpack.c.l.b16 %v1675
        %v1752 = vunpack.c.l.b16 %v1676
        %v1753 = vunpack.c.l.b16 %v1678
        %v1754 = vunpack.c.l.b16 %v1679
        %v1755 = vunpack.c.l.b16 %v1681
        %v1756 = vunpack.c.l.b16 %v1682
        %v1757 = vunpack.c.l.b16 %v1684
        %v1758 = vunpack.c.l.b16 %v1685
        %v1759 = vunpack.c.l.b16 %v1687
        %v1760 = vunpack.c.l.b16 %v1688
        %v1761 = vunpack.c.l.b16 %v1690
        %v1762 = vunpack.c.l.b16 %v1691
        %v1763 = vunpack.c.l.b16 %v1693
        %v1764 = vunpack.c.l.b16 %v1694
        %v1765 = vunpack.c.l.b16 %v1696
        %v1766 = vunpack.c.l.b16 %v1697
        %v1767 = vunpack.c.l.b16 %v1699
        %v1768 = vunpack.c.l.b16 %v1700
        %v1769 = vunpack.c.l.b16 %v1702
        %v1770 = vunpack.c.l.b16 %v1703
        %v1771 = vpack.c.b16 %v1740, %v1739
        %v1772 = vpack.c.b16 %v1742, %v1741
        %v1773 = vpack.c.b16 %v1744, %v1743
        %v1774 = vpack.c.b16 %v1746, %v1745
        %v1775 = vpack.c.b16 %v1748, %v1747
        %v1776 = vpack.c.b16 %v1750, %v1749
        %v1777 = vpack.c.b16 %v1752, %v1751
        %v1778 = vpack.c.b16 %v1754, %v1753
        %v1779 = vpack.c.b16 %v1756, %v1755
        %v1780 = vpack.c.b16 %v1758, %v1757
        %v1781 = vpack.c.b16 %v1760, %v1759
        %v1782 = vpack.c.b16 %v1762, %v1761
        %v1783 = vpack.c.b16 %v1764, %v1763
        %v1784 = vpack.c.b16 %v1766, %v1765
        %v1785 = vpack.c.b16 %v1768, %v1767
        %v1786 = vpack.c.b16 %v1770, %v1769
        %v1788 = vsel %vm722, %v1771, 0
        %v1791 = vsel %vm722, %v1772, 0
        %v1794 = vsel %vm722, %v1773, 0
        %v1797 = vsel %vm722, %v1774, 0
        %v1800 = vsel %vm722, %v1775, 0
        %v1803 = vsel %vm722, %v1776, 0
        %v1806 = vsel %vm722, %v1777, 0
        %v1809 = vsel %vm722, %v1778, 0
        %v1812 = vsel %vm722, %v1779, 0
        %v1815 = vsel %vm722, %v1780, 0
        %v1818 = vsel %vm722, %v1781, 0
        %v1821 = vsel %vm722, %v1782, 0
        %v1824 = vsel %vm722, %v1783, 0
        %v1827 = vsel %vm722, %v1784, 0
        %v1830 = vsel %vm722, %v1785, 0
        %v1833 = vsel %vm722, %v1786, 0
        %v1836 = vsel %vm771, %v1706, 0
        %1838 = vmatprep.subr.bf16.mxu0 0
        %1839 = vmatpush1.bf16.msra.mxu0 %v1836
        %1840 = vmatprep.subr.bf16.mxu0 0
        %1841 = vmatpush1.bf16.msra.mxu0 0
        %1842 = vmatprep.subr.bf16.mxu0 0
        %1843 = vmatpush1.bf16.msra.mxu0 0
        %1844 = vmatprep.subr.bf16.mxu0 0
        %1845 = vmatpush1.bf16.msra.mxu0 0
        %1846 = vmatprep.subr.bf16.mxu0 0
        %1847 = vmatpush1.bf16.msra.mxu0 0
        %1848 = vmatprep.subr.bf16.mxu0 0
        %1849 = vmatpush1.bf16.msra.mxu0 0
        %1850 = vmatprep.subr.bf16.mxu0 0
        %1851 = vmatpush1.bf16.msra.mxu0 0
        %1852 = vmatprep.subr.bf16.mxu0 0
        %1853 = vmatpush1.bf16.msra.mxu0 0
        %1854 = vmatprep.subr.bf16.mxu0 0
        %1855 = vmatpush1.bf16.msra.mxu0 0
        %1856 = vmatprep.subr.bf16.mxu0 0
        %1857 = vmatpush1.bf16.msra.mxu0 0
        %1858 = vmatprep.subr.bf16.mxu0 0
        %1859 = vmatpush1.bf16.msra.mxu0 0
        %1860 = vmatprep.subr.bf16.mxu0 0
        %1861 = vmatpush1.bf16.msra.mxu0 0
        %1862 = vmatprep.subr.bf16.mxu0 0
        %1863 = vmatpush1.bf16.msra.mxu0 0
        %1864 = vmatprep.subr.bf16.mxu0 0
        %1865 = vmatpush1.bf16.msra.mxu0 0
        %1866 = vmatprep.subr.bf16.mxu0 0
        %1867 = vmatpush1.bf16.msra.mxu0 0
        %1868 = vmatprep.subr.bf16.mxu0 0
        %1869 = vmatpush1.bf16.msra.mxu0 0
        %1870 = vmatprep.mubr.bf16.mxu0 0
        %1871 = vmatmul.mubr.bf16.gmra.mrb[0].mxu0 %v1788
        %v1872 = vpop.f32.mrb[0].mxu0
        %v1873 = vadd.f32 0.0, %v1872
        %v1874 = vpop.f32.mrb[0].mxu0
        %v1875 = vpop.f32.mrb[0].mxu0
        %v1876 = vadd.f32 0.0, %v1875
        %v1877 = vpop.f32.mrb[0].mxu0
        %1878 = vmatprep.mubr.bf16.mxu0 0
        %1879 = vmatmul.mubr.bf16.gmra.mrb[0].mxu0 %v1791
        %v1880 = vpop.f32.mrb[0].mxu0
        %v1881 = vadd.f32 0.0, %v1880
        %v1882 = vpop.f32.mrb[0].mxu0
        %v1883 = vpop.f32.mrb[0].mxu0
        %v1884 = vadd.f32 0.0, %v1883
        %v1885 = vpop.f32.mrb[0].mxu0
        %1886 = vmatprep.mubr.bf16.mxu0 0
        %1887 = vmatmul.mubr.bf16.gmra.mrb[0].mxu0 %v1794
        %v1888 = vpop.f32.mrb[0].mxu0
        %v1889 = vadd.f32 0.0, %v1888
        %v1890 = vpop.f32.mrb[0].mxu0
        %v1891 = vpop.f32.mrb[0].mxu0
        %v1892 = vadd.f32 0.0, %v1891
        %v1893 = vpop.f32.mrb[0].mxu0
        %1894 = vmatprep.mubr.bf16.mxu0 0
        %1895 = vmatmul.mubr.bf16.gmra.mrb[0].mxu0 %v1797
        %v1896 = vpop.f32.mrb[0].mxu0
        %v1897 = vadd.f32 0.0, %v1896
        %v1898 = vpop.f32.mrb[0].mxu0
        %v1899 = vpop.f32.mrb[0].mxu0
        %v1900 = vadd.f32 0.0, %v1899
        %v1901 = vpop.f32.mrb[0].mxu0
        %1902 = vmatprep.mubr.bf16.mxu0 0
        %1903 = vmatmul.mubr.bf16.gmra.mrb[0].mxu0 %v1800
        %v1904 = vpop.f32.mrb[0].mxu0
        %v1905 = vadd.f32 0.0, %v1904
        %v1906 = vpop.f32.mrb[0].mxu0
        %v1907 = vpop.f32.mrb[0].mxu0
        %v1908 = vadd.f32 0.0, %v1907
        %v1909 = vpop.f32.mrb[0].mxu0
        %1910 = vmatprep.mubr.bf16.mxu0 0
        %1911 = vmatmul.mubr.bf16.gmra.mrb[0].mxu0 %v1803
        %v1912 = vpop.f32.mrb[0].mxu0
        %v1913 = vadd.f32 0.0, %v1912
        %v1914 = vpop.f32.mrb[0].mxu0
        %v1915 = vpop.f32.mrb[0].mxu0
        %v1916 = vadd.f32 0.0, %v1915
        %v1917 = vpop.f32.mrb[0].mxu0
        %1918 = vmatprep.mubr.bf16.mxu0 0
        %1919 = vmatmul.mubr.bf16.gmra.mrb[0].mxu0 %v1806
        %v1920 = vpop.f32.mrb[0].mxu0
        %v1921 = vadd.f32 0.0, %v1920
        %v1922 = vpop.f32.mrb[0].mxu0
        %v1923 = vpop.f32.mrb[0].mxu0
        %v1924 = vadd.f32 0.0, %v1923
        %v1925 = vpop.f32.mrb[0].mxu0
        %1926 = vmatprep.mubr.bf16.mxu0 0
        %1927 = vmatmul.mubr.bf16.gmra.mrb[0].mxu0 %v1809
        %v1928 = vpop.f32.mrb[0].mxu0
        %v1929 = vadd.f32 0.0, %v1928
        %v1930 = vpop.f32.mrb[0].mxu0
        %v1931 = vpop.f32.mrb[0].mxu0
        %v1932 = vadd.f32 0.0, %v1931
        %v1933 = vpop.f32.mrb[0].mxu0
        %1934 = vmatprep.mubr.bf16.mxu0 0
        %1935 = vmatmul.mubr.bf16.gmra.mrb[0].mxu0 %v1812
        %v1936 = vpop.f32.mrb[0].mxu0
        %v1937 = vadd.f32 0.0, %v1936
        %v1938 = vpop.f32.mrb[0].mxu0
        %v1939 = vpop.f32.mrb[0].mxu0
        %v1940 = vadd.f32 0.0, %v1939
        %v1941 = vpop.f32.mrb[0].mxu0
        %1942 = vmatprep.mubr.bf16.mxu0 0
        %1943 = vmatmul.mubr.bf16.gmra.mrb[0].mxu0 %v1815
        %v1944 = vpop.f32.mrb[0].mxu0
        %v1945 = vadd.f32 0.0, %v1944
        %v1946 = vpop.f32.mrb[0].mxu0
        %v1947 = vpop.f32.mrb[0].mxu0
        %v1948 = vadd.f32 0.0, %v1947
        %v1949 = vpop.f32.mrb[0].mxu0
        %1950 = vmatprep.mubr.bf16.mxu0 0
        %1951 = vmatmul.mubr.bf16.gmra.mrb[0].mxu0 %v1818
        %v1952 = vpop.f32.mrb[0].mxu0
        %v1953 = vadd.f32 0.0, %v1952
        %v1954 = vpop.f32.mrb[0].mxu0
        %v1955 = vpop.f32.mrb[0].mxu0
        %v1956 = vadd.f32 0.0, %v1955
        %v1957 = vpop.f32.mrb[0].mxu0
        %1958 = vmatprep.mubr.bf16.mxu0 0
        %1959 = vmatmul.mubr.bf16.gmra.mrb[0].mxu0 %v1821
        %v1960 = vpop.f32.mrb[0].mxu0
        %v1961 = vadd.f32 0.0, %v1960
        %v1962 = vpop.f32.mrb[0].mxu0
        %v1963 = vpop.f32.mrb[0].mxu0
        %v1964 = vadd.f32 0.0, %v1963
        %v1965 = vpop.f32.mrb[0].mxu0
        %1966 = vmatprep.mubr.bf16.mxu0 0
        %1967 = vmatmul.mubr.bf16.gmra.mrb[0].mxu0 %v1824
        %v1968 = vpop.f32.mrb[0].mxu0
        %v1969 = vadd.f32 0.0, %v1968
        %v1970 = vpop.f32.mrb[0].mxu0
        %v1971 = vpop.f32.mrb[0].mxu0
        %v1972 = vadd.f32 0.0, %v1971
        %v1973 = vpop.f32.mrb[0].mxu0
        %1974 = vmatprep.mubr.bf16.mxu0 0
        %1975 = vmatmul.mubr.bf16.gmra.mrb[0].mxu0 %v1827
        %v1976 = vpop.f32.mrb[0].mxu0
        %v1977 = vadd.f32 0.0, %v1976
        %v1978 = vpop.f32.mrb[0].mxu0
        %v1979 = vpop.f32.mrb[0].mxu0
        %v1980 = vadd.f32 0.0, %v1979
        %v1981 = vpop.f32.mrb[0].mxu0
        %1982 = vmatprep.mubr.bf16.mxu0 0
        %1983 = vmatmul.mubr.bf16.gmra.mrb[0].mxu0 %v1830
        %v1984 = vpop.f32.mrb[0].mxu0
        %v1985 = vadd.f32 0.0, %v1984
        %v1986 = vpop.f32.mrb[0].mxu0
        %v1987 = vpop.f32.mrb[0].mxu0
        %v1988 = vadd.f32 0.0, %v1987
        %v1989 = vpop.f32.mrb[0].mxu0
        %1990 = vmatprep.mubr.bf16.mxu0 0
        %1991 = vmatmul.mubr.bf16.gmra.mrb[0].mxu0 %v1833
        %v1992 = vpop.f32.mrb[0].mxu0
        %v1993 = vadd.f32 0.0, %v1992
        %v1994 = vpop.f32.mrb[0].mxu0
        %v1995 = vpop.f32.mrb[0].mxu0
        %v1996 = vadd.f32 0.0, %v1995
        %v1997 = vpop.f32.mrb[0].mxu0
        %1998 = vdwg.mxu0
        %v1999 = vadd.f32 %v1621, %v1873
        %v2000 = vadd.f32 %v1622, %v1876
        %v2001 = vadd.f32 %v1623, %v1881
        %v2002 = vadd.f32 %v1624, %v1884
        %v2003 = vadd.f32 %v1625, %v1889
        %v2004 = vadd.f32 %v1626, %v1892
        %v2005 = vadd.f32 %v1627, %v1897
        %v2006 = vadd.f32 %v1628, %v1900
        %v2007 = vadd.f32 %v1629, %v1905
        %v2008 = vadd.f32 %v1630, %v1908
        %v2009 = vadd.f32 %v1631, %v1913
        %v2010 = vadd.f32 %v1632, %v1916
        %v2011 = vadd.f32 %v1633, %v1921
        %v2012 = vadd.f32 %v1634, %v1924
        %v2013 = vadd.f32 %v1635, %v1929
        %v2014 = vadd.f32 %v1636, %v1932
        %v2015 = vadd.f32 %v1637, %v1937
        %v2016 = vadd.f32 %v1638, %v1940
        %v2017 = vadd.f32 %v1639, %v1945
        %v2018 = vadd.f32 %v1640, %v1948
        %v2019 = vadd.f32 %v1641, %v1953
        %v2020 = vadd.f32 %v1642, %v1956
        %v2021 = vadd.f32 %v1643, %v1961
        %v2022 = vadd.f32 %v1644, %v1964
        %v2023 = vadd.f32 %v1645, %v1969
        %v2024 = vadd.f32 %v1646, %v1972
        %v2025 = vadd.f32 %v1647, %v1977
        %v2026 = vadd.f32 %v1648, %v1980
        %v2027 = vadd.f32 %v1649, %v1985
        %v2028 = vadd.f32 %v1650, %v1988
        %v2029 = vadd.f32 %v1651, %v1993
        %v2030 = vadd.f32 %v1652, %v1996
        %v2032 = vshrl.u32 %v1657, 16
        %v2034 = vrot.slane %v2032, 4
        %v2035 = vshll.u32 %v1657, 16
        %v2037 = vrot.slane %v2035, 5
        %v2038 = vor.u32 %v2034, %v2037
        %v2039 = vrot.slane %v2038, 4
        %v2041 = vshll.u32 %v1658, 16
        %v2043 = vrot.slane %v2041, 5
        %v2044 = vsel %vm287, %v2039, %v2043
        %v2045 = vshrl.u32 %v1658, 16
        %v2047 = vrot.slane %v2045, 4
        %v2048 = vor.u32 %v2047, %v2043
        %v2049 = vrot.slane %v2048, 4
        %v2051 = vshll.u32 %v1659, 16
        %v2053 = vrot.slane %v2051, 5
        %v2054 = vsel %vm287, %v2049, %v2053
        %v2056 = vshrl.u32 %v1660, 16
        %v2058 = vrot.slane %v2056, 4
        %v2059 = vshll.u32 %v1660, 16
        %v2061 = vrot.slane %v2059, 5
        %v2062 = vor.u32 %v2058, %v2061
        %v2063 = vrot.slane %v2062, 4
        %v2065 = vshll.u32 %v1661, 16
        %v2067 = vrot.slane %v2065, 5
        %v2068 = vsel %vm287, %v2063, %v2067
        %v2069 = vshrl.u32 %v1661, 16
        %v2071 = vrot.slane %v2069, 4
        %v2072 = vor.u32 %v2071, %v2067
        %v2073 = vrot.slane %v2072, 4
        %v2075 = vshll.u32 %v1662, 16
        %v2077 = vrot.slane %v2075, 5
        %v2078 = vsel %vm287, %v2073, %v2077
        %v2080 = vshrl.u32 %v1663, 16
        %v2082 = vrot.slane %v2080, 4
        %v2083 = vshll.u32 %v1663, 16
        %v2085 = vrot.slane %v2083, 5
        %v2086 = vor.u32 %v2082, %v2085
        %v2087 = vrot.slane %v2086, 4
        %v2089 = vshll.u32 %v1664, 16
        %v2091 = vrot.slane %v2089, 5
        %v2092 = vsel %vm287, %v2087, %v2091
        %v2093 = vshrl.u32 %v1664, 16
        %v2095 = vrot.slane %v2093, 4
        %v2096 = vor.u32 %v2095, %v2091
        %v2097 = vrot.slane %v2096, 4
        %v2099 = vshll.u32 %v1665, 16
        %v2101 = vrot.slane %v2099, 5
        %v2102 = vsel %vm287, %v2097, %v2101
        %v2104 = vshrl.u32 %v1666, 16
        %v2106 = vrot.slane %v2104, 4
        %v2107 = vshll.u32 %v1666, 16
        %v2109 = vrot.slane %v2107, 5
        %v2110 = vor.u32 %v2106, %v2109
        %v2111 = vrot.slane %v2110, 4
        %v2113 = vshll.u32 %v1667, 16
        %v2115 = vrot.slane %v2113, 5
        %v2116 = vsel %vm287, %v2111, %v2115
        %v2117 = vshrl.u32 %v1667, 16
        %v2119 = vrot.slane %v2117, 4
        %v2120 = vor.u32 %v2119, %v2115
        %v2121 = vrot.slane %v2120, 4
        %v2123 = vshll.u32 %v1668, 16
        %v2125 = vrot.slane %v2123, 5
        %v2126 = vsel %vm287, %v2121, %v2125
        %v2128 = vshrl.u32 %v1669, 16
        %v2130 = vrot.slane %v2128, 4
        %v2131 = vshll.u32 %v1669, 16
        %v2133 = vrot.slane %v2131, 5
        %v2134 = vor.u32 %v2130, %v2133
        %v2135 = vrot.slane %v2134, 4
        %v2137 = vshll.u32 %v1670, 16
        %v2139 = vrot.slane %v2137, 5
        %v2140 = vsel %vm287, %v2135, %v2139
        %v2141 = vshrl.u32 %v1670, 16
        %v2143 = vrot.slane %v2141, 4
        %v2144 = vor.u32 %v2143, %v2139
        %v2145 = vrot.slane %v2144, 4
        %v2147 = vshll.u32 %v1671, 16
        %v2149 = vrot.slane %v2147, 5
        %v2150 = vsel %vm287, %v2145, %v2149
        %v2152 = vshrl.u32 %v1672, 16
        %v2154 = vrot.slane %v2152, 4
        %v2155 = vshll.u32 %v1672, 16
        %v2157 = vrot.slane %v2155, 5
        %v2158 = vor.u32 %v2154, %v2157
        %v2159 = vrot.slane %v2158, 4
        %v2161 = vshll.u32 %v1673, 16
        %v2163 = vrot.slane %v2161, 5
        %v2164 = vsel %vm287, %v2159, %v2163
        %v2165 = vshrl.u32 %v1673, 16
        %v2167 = vrot.slane %v2165, 4
        %v2168 = vor.u32 %v2167, %v2163
        %v2169 = vrot.slane %v2168, 4
        %v2171 = vshll.u32 %v1674, 16
        %v2173 = vrot.slane %v2171, 5
        %v2174 = vsel %vm287, %v2169, %v2173
        %v2176 = vshrl.u32 %v1675, 16
        %v2178 = vrot.slane %v2176, 4
        %v2179 = vshll.u32 %v1675, 16
        %v2181 = vrot.slane %v2179, 5
        %v2182 = vor.u32 %v2178, %v2181
        %v2183 = vrot.slane %v2182, 4
        %v2185 = vshll.u32 %v1676, 16
        %v2187 = vrot.slane %v2185, 5
        %v2188 = vsel %vm287, %v2183, %v2187
        %v2189 = vshrl.u32 %v1676, 16
        %v2191 = vrot.slane %v2189, 4
        %v2192 = vor.u32 %v2191, %v2187
        %v2193 = vrot.slane %v2192, 4
        %v2195 = vshll.u32 %v1677, 16
        %v2197 = vrot.slane %v2195, 5
        %v2198 = vsel %vm287, %v2193, %v2197
        %v2200 = vshrl.u32 %v1678, 16
        %v2202 = vrot.slane %v2200, 4
        %v2203 = vshll.u32 %v1678, 16
        %v2205 = vrot.slane %v2203, 5
        %v2206 = vor.u32 %v2202, %v2205
        %v2207 = vrot.slane %v2206, 4
        %v2209 = vshll.u32 %v1679, 16
        %v2211 = vrot.slane %v2209, 5
        %v2212 = vsel %vm287, %v2207, %v2211
        %v2213 = vshrl.u32 %v1679, 16
        %v2215 = vrot.slane %v2213, 4
        %v2216 = vor.u32 %v2215, %v2211
        %v2217 = vrot.slane %v2216, 4
        %v2219 = vshll.u32 %v1680, 16
        %v2221 = vrot.slane %v2219, 5
        %v2222 = vsel %vm287, %v2217, %v2221
        %v2224 = vshrl.u32 %v1681, 16
        %v2226 = vrot.slane %v2224, 4
        %v2227 = vshll.u32 %v1681, 16
        %v2229 = vrot.slane %v2227, 5
        %v2230 = vor.u32 %v2226, %v2229
        %v2231 = vrot.slane %v2230, 4
        %v2233 = vshll.u32 %v1682, 16
        %v2235 = vrot.slane %v2233, 5
        %v2236 = vsel %vm287, %v2231, %v2235
        %v2237 = vshrl.u32 %v1682, 16
        %v2239 = vrot.slane %v2237, 4
        %v2240 = vor.u32 %v2239, %v2235
        %v2241 = vrot.slane %v2240, 4
        %v2243 = vshll.u32 %v1683, 16
        %v2245 = vrot.slane %v2243, 5
        %v2246 = vsel %vm287, %v2241, %v2245
        %v2248 = vshrl.u32 %v1684, 16
        %v2250 = vrot.slane %v2248, 4
        %v2251 = vshll.u32 %v1684, 16
        %v2253 = vrot.slane %v2251, 5
        %v2254 = vor.u32 %v2250, %v2253
        %v2255 = vrot.slane %v2254, 4
        %v2257 = vshll.u32 %v1685, 16
        %v2259 = vrot.slane %v2257, 5
        %v2260 = vsel %vm287, %v2255, %v2259
        %v2261 = vshrl.u32 %v1685, 16
        %v2263 = vrot.slane %v2261, 4
        %v2264 = vor.u32 %v2263, %v2259
        %v2265 = vrot.slane %v2264, 4
        %v2267 = vshll.u32 %v1686, 16
        %v2269 = vrot.slane %v2267, 5
        %v2270 = vsel %vm287, %v2265, %v2269
        %v2272 = vshrl.u32 %v1687, 16
        %v2274 = vrot.slane %v2272, 4
        %v2275 = vshll.u32 %v1687, 16
        %v2277 = vrot.slane %v2275, 5
        %v2278 = vor.u32 %v2274, %v2277
        %v2279 = vrot.slane %v2278, 4
        %v2281 = vshll.u32 %v1688, 16
        %v2283 = vrot.slane %v2281, 5
        %v2284 = vsel %vm287, %v2279, %v2283
        %v2285 = vshrl.u32 %v1688, 16
        %v2287 = vrot.slane %v2285, 4
        %v2288 = vor.u32 %v2287, %v2283
        %v2289 = vrot.slane %v2288, 4
        %v2291 = vshll.u32 %v1689, 16
        %v2293 = vrot.slane %v2291, 5
        %v2294 = vsel %vm287, %v2289, %v2293
        %v2296 = vshrl.u32 %v1690, 16
        %v2298 = vrot.slane %v2296, 4
        %v2299 = vshll.u32 %v1690, 16
        %v2301 = vrot.slane %v2299, 5
        %v2302 = vor.u32 %v2298, %v2301
        %v2303 = vrot.slane %v2302, 4
        %v2305 = vshll.u32 %v1691, 16
        %v2307 = vrot.slane %v2305, 5
        %v2308 = vsel %vm287, %v2303, %v2307
        %v2309 = vshrl.u32 %v1691, 16
        %v2311 = vrot.slane %v2309, 4
        %v2312 = vor.u32 %v2311, %v2307
        %v2313 = vrot.slane %v2312, 4
        %v2315 = vshll.u32 %v1692, 16
        %v2317 = vrot.slane %v2315, 5
        %v2318 = vsel %vm287, %v2313, %v2317
        %v2320 = vshrl.u32 %v1693, 16
        %v2322 = vrot.slane %v2320, 4
        %v2323 = vshll.u32 %v1693, 16
        %v2325 = vrot.slane %v2323, 5
        %v2326 = vor.u32 %v2322, %v2325
        %v2327 = vrot.slane %v2326, 4
        %v2329 = vshll.u32 %v1694, 16
        %v2331 = vrot.slane %v2329, 5
        %v2332 = vsel %vm287, %v2327, %v2331
        %v2333 = vshrl.u32 %v1694, 16
        %v2335 = vrot.slane %v2333, 4
        %v2336 = vor.u32 %v2335, %v2331
        %v2337 = vrot.slane %v2336, 4
        %v2339 = vshll.u32 %v1695, 16
        %v2341 = vrot.slane %v2339, 5
        %v2342 = vsel %vm287, %v2337, %v2341
        %v2344 = vshrl.u32 %v1696, 16
        %v2346 = vrot.slane %v2344, 4
        %v2347 = vshll.u32 %v1696, 16
        %v2349 = vrot.slane %v2347, 5
        %v2350 = vor.u32 %v2346, %v2349
        %v2351 = vrot.slane %v2350, 4
        %v2353 = vshll.u32 %v1697, 16
        %v2355 = vrot.slane %v2353, 5
        %v2356 = vsel %vm287, %v2351, %v2355
        %v2357 = vshrl.u32 %v1697, 16
        %v2359 = vrot.slane %v2357, 4
        %v2360 = vor.u32 %v2359, %v2355
        %v2361 = vrot.slane %v2360, 4
        %v2363 = vshll.u32 %v1698, 16
        %v2365 = vrot.slane %v2363, 5
        %v2366 = vsel %vm287, %v2361, %v2365
        %v2368 = vshrl.u32 %v1699, 16
        %v2370 = vrot.slane %v2368, 4
        %v2371 = vshll.u32 %v1699, 16
        %v2373 = vrot.slane %v2371, 5
        %v2374 = vor.u32 %v2370, %v2373
        %v2375 = vrot.slane %v2374, 4
        %v2377 = vshll.u32 %v1700, 16
        %v2379 = vrot.slane %v2377, 5
        %v2380 = vsel %vm287, %v2375, %v2379
        %v2381 = vshrl.u32 %v1700, 16
        %v2383 = vrot.slane %v2381, 4
        %v2384 = vor.u32 %v2383, %v2379
        %v2385 = vrot.slane %v2384, 4
        %v2387 = vshll.u32 %v1701, 16
        %v2389 = vrot.slane %v2387, 5
        %v2390 = vsel %vm287, %v2385, %v2389
        %v2392 = vshrl.u32 %v1702, 16
        %v2394 = vrot.slane %v2392, 4
        %v2395 = vshll.u32 %v1702, 16
        %v2397 = vrot.slane %v2395, 5
        %v2398 = vor.u32 %v2394, %v2397
        %v2399 = vrot.slane %v2398, 4
        %v2401 = vshll.u32 %v1703, 16
        %v2403 = vrot.slane %v2401, 5
        %v2404 = vsel %vm287, %v2399, %v2403
        %v2405 = vshrl.u32 %v1703, 16
        %v2407 = vrot.slane %v2405, 4
        %v2408 = vor.u32 %v2407, %v2403
        %v2409 = vrot.slane %v2408, 4
        %v2411 = vshll.u32 %v1704, 16
        %v2413 = vrot.slane %v2411, 5
        %v2414 = vsel %vm287, %v2409, %v2413
        %s2415 = scalar_lea.vmem [#allocation5], 16
        %v2416 = vld [vmem:[%s2415] sm:$0xf]
        %v2417 = vunpack.c.l.b16 %v2044
        %v2418 = vunpack.c.l.b16 %v2054
        %v2419 = vunpack.c.l.b16 %v2068
        %v2420 = vunpack.c.l.b16 %v2078
        %v2421 = vunpack.c.l.b16 %v2092
        %v2422 = vunpack.c.l.b16 %v2102
        %v2423 = vunpack.c.l.b16 %v2116
        %v2424 = vunpack.c.l.b16 %v2126
        %v2425 = vunpack.c.l.b16 %v2140
        %v2426 = vunpack.c.l.b16 %v2150
        %v2427 = vunpack.c.l.b16 %v2164
        %v2428 = vunpack.c.l.b16 %v2174
        %v2429 = vunpack.c.l.b16 %v2188
        %v2430 = vunpack.c.l.b16 %v2198
        %v2431 = vunpack.c.l.b16 %v2212
        %v2432 = vunpack.c.l.b16 %v2222
        %v2433 = vunpack.c.l.b16 %v2236
        %v2434 = vunpack.c.l.b16 %v2246
        %v2435 = vunpack.c.l.b16 %v2260
        %v2436 = vunpack.c.l.b16 %v2270
        %v2437 = vunpack.c.l.b16 %v2284
        %v2438 = vunpack.c.l.b16 %v2294
        %v2439 = vunpack.c.l.b16 %v2308
        %v2440 = vunpack.c.l.b16 %v2318
        %v2441 = vunpack.c.l.b16 %v2332
        %v2442 = vunpack.c.l.b16 %v2342
        %v2443 = vunpack.c.l.b16 %v2356
        %v2444 = vunpack.c.l.b16 %v2366
        %v2445 = vunpack.c.l.b16 %v2380
        %v2446 = vunpack.c.l.b16 %v2390
        %v2447 = vunpack.c.l.b16 %v2404
        %v2448 = vunpack.c.l.b16 %v2414
        %v2449 = vpack.c.b16 %v2418, %v2417
        %v2450 = vpack.c.b16 %v2420, %v2419
        %v2451 = vpack.c.b16 %v2422, %v2421
        %v2452 = vpack.c.b16 %v2424, %v2423
        %v2453 = vpack.c.b16 %v2426, %v2425
        %v2454 = vpack.c.b16 %v2428, %v2427
        %v2455 = vpack.c.b16 %v2430, %v2429
        %v2456 = vpack.c.b16 %v2432, %v2431
        %v2457 = vpack.c.b16 %v2434, %v2433
        %v2458 = vpack.c.b16 %v2436, %v2435
        %v2459 = vpack.c.b16 %v2438, %v2437
        %v2460 = vpack.c.b16 %v2440, %v2439
        %v2461 = vpack.c.b16 %v2442, %v2441
        %v2462 = vpack.c.b16 %v2444, %v2443
        %v2463 = vpack.c.b16 %v2446, %v2445
        %v2464 = vpack.c.b16 %v2448, %v2447
        %v2466 = vsel %vm722, %v2449, 0
        %v2469 = vsel %vm722, %v2450, 0
        %v2472 = vsel %vm722, %v2451, 0
        %v2475 = vsel %vm722, %v2452, 0
        %v2478 = vsel %vm722, %v2453, 0
        %v2481 = vsel %vm722, %v2454, 0
        %v2484 = vsel %vm722, %v2455, 0
        %v2487 = vsel %vm722, %v2456, 0
        %v2490 = vsel %vm722, %v2457, 0
        %v2493 = vsel %vm722, %v2458, 0
        %v2496 = vsel %vm722, %v2459, 0
        %v2499 = vsel %vm722, %v2460, 0
        %v2502 = vsel %vm722, %v2461, 0
        %v2505 = vsel %vm722, %v2462, 0
        %v2508 = vsel %vm722, %v2463, 0
        %v2511 = vsel %vm722, %v2464, 0
        %v2514 = vsel %vm771, %v2416, 0
        %2516 = vmatprep.subr.bf16.mxu0 0
        %2517 = vmatpush1.bf16.msra.mxu0 %v2514
        %2518 = vmatprep.subr.bf16.mxu0 0
        %2519 = vmatpush1.bf16.msra.mxu0 0
        %2520 = vmatprep.subr.bf16.mxu0 0
        %2521 = vmatpush1.bf16.msra.mxu0 0
        %2522 = vmatprep.subr.bf16.mxu0 0
        %2523 = vmatpush1.bf16.msra.mxu0 0
        %2524 = vmatprep.subr.bf16.mxu0 0
        %2525 = vmatpush1.bf16.msra.mxu0 0
        %2526 = vmatprep.subr.bf16.mxu0 0
        %2527 = vmatpush1.bf16.msra.mxu0 0
        %2528 = vmatprep.subr.bf16.mxu0 0
        %2529 = vmatpush1.bf16.msra.mxu0 0
        %2530 = vmatprep.subr.bf16.mxu0 0
        %2531 = vmatpush1.bf16.msra.mxu0 0
        %2532 = vmatprep.subr.bf16.mxu0 0
        %2533 = vmatpush1.bf16.msra.mxu0 0
        %2534 = vmatprep.subr.bf16.mxu0 0
        %2535 = vmatpush1.bf16.msra.mxu0 0
        %2536 = vmatprep.subr.bf16.mxu0 0
        %2537 = vmatpush1.bf16.msra.mxu0 0
        %2538 = vmatprep.subr.bf16.mxu0 0
        %2539 = vmatpush1.bf16.msra.mxu0 0
        %2540 = vmatprep.subr.bf16.mxu0 0
        %2541 = vmatpush1.bf16.msra.mxu0 0
        %2542 = vmatprep.subr.bf16.mxu0 0
        %2543 = vmatpush1.bf16.msra.mxu0 0
        %2544 = vmatprep.subr.bf16.mxu0 0
        %2545 = vmatpush1.bf16.msra.mxu0 0
        %2546 = vmatprep.subr.bf16.mxu0 0
        %2547 = vmatpush1.bf16.msra.mxu0 0
        %2548 = vmatprep.mubr.bf16.mxu0 0
        %2549 = vmatmul.mubr.bf16.gmra.mrb[0].mxu0 %v2466
        %v2550 = vpop.f32.mrb[0].mxu0
        %v2551 = vadd.f32 0.0, %v2550
        %v2552 = vpop.f32.mrb[0].mxu0
        %v2553 = vpop.f32.mrb[0].mxu0
        %v2554 = vadd.f32 0.0, %v2553
        %v2555 = vpop.f32.mrb[0].mxu0
        %2556 = vmatprep.mubr.bf16.mxu0 0
        %2557 = vmatmul.mubr.bf16.gmra.mrb[0].mxu0 %v2469
        %v2558 = vpop.f32.mrb[0].mxu0
        %v2559 = vadd.f32 0.0, %v2558
        %v2560 = vpop.f32.mrb[0].mxu0
        %v2561 = vpop.f32.mrb[0].mxu0
        %v2562 = vadd.f32 0.0, %v2561
        %v2563 = vpop.f32.mrb[0].mxu0
        %2564 = vmatprep.mubr.bf16.mxu0 0
        %2565 = vmatmul.mubr.bf16.gmra.mrb[0].mxu0 %v2472
        %v2566 = vpop.f32.mrb[0].mxu0
        %v2567 = vadd.f32 0.0, %v2566
        %v2568 = vpop.f32.mrb[0].mxu0
        %v2569 = vpop.f32.mrb[0].mxu0
        %v2570 = vadd.f32 0.0, %v2569
        %v2571 = vpop.f32.mrb[0].mxu0
        %2572 = vmatprep.mubr.bf16.mxu0 0
        %2573 = vmatmul.mubr.bf16.gmra.mrb[0].mxu0 %v2475
        %v2574 = vpop.f32.mrb[0].mxu0
        %v2575 = vadd.f32 0.0, %v2574
        %v2576 = vpop.f32.mrb[0].mxu0
        %v2577 = vpop.f32.mrb[0].mxu0
        %v2578 = vadd.f32 0.0, %v2577
        %v2579 = vpop.f32.mrb[0].mxu0
        %2580 = vmatprep.mubr.bf16.mxu0 0
        %2581 = vmatmul.mubr.bf16.gmra.mrb[0].mxu0 %v2478
        %v2582 = vpop.f32.mrb[0].mxu0
        %v2583 = vadd.f32 0.0, %v2582
        %v2584 = vpop.f32.mrb[0].mxu0
        %v2585 = vpop.f32.mrb[0].mxu0
        %v2586 = vadd.f32 0.0, %v2585
        %v2587 = vpop.f32.mrb[0].mxu0
        %2588 = vmatprep.mubr.bf16.mxu0 0
        %2589 = vmatmul.mubr.bf16.gmra.mrb[0].mxu0 %v2481
        %v2590 = vpop.f32.mrb[0].mxu0
        %v2591 = vadd.f32 0.0, %v2590
        %v2592 = vpop.f32.mrb[0].mxu0
        %v2593 = vpop.f32.mrb[0].mxu0
        %v2594 = vadd.f32 0.0, %v2593
        %v2595 = vpop.f32.mrb[0].mxu0
        %2596 = vmatprep.mubr.bf16.mxu0 0
        %2597 = vmatmul.mubr.bf16.gmra.mrb[0].mxu0 %v2484
        %v2598 = vpop.f32.mrb[0].mxu0
        %v2599 = vadd.f32 0.0, %v2598
        %v2600 = vpop.f32.mrb[0].mxu0
        %v2601 = vpop.f32.mrb[0].mxu0
        %v2602 = vadd.f32 0.0, %v2601
        %v2603 = vpop.f32.mrb[0].mxu0
        %2604 = vmatprep.mubr.bf16.mxu0 0
        %2605 = vmatmul.mubr.bf16.gmra.mrb[0].mxu0 %v2487
        %v2606 = vpop.f32.mrb[0].mxu0
        %v2607 = vadd.f32 0.0, %v2606
        %v2608 = vpop.f32.mrb[0].mxu0
        %v2609 = vpop.f32.mrb[0].mxu0
        %v2610 = vadd.f32 0.0, %v2609
        %v2611 = vpop.f32.mrb[0].mxu0
        %2612 = vmatprep.mubr.bf16.mxu0 0
        %2613 = vmatmul.mubr.bf16.gmra.mrb[0].mxu0 %v2490
        %v2614 = vpop.f32.mrb[0].mxu0
        %v2615 = vadd.f32 0.0, %v2614
        %v2616 = vpop.f32.mrb[0].mxu0
        %v2617 = vpop.f32.mrb[0].mxu0
        %v2618 = vadd.f32 0.0, %v2617
        %v2619 = vpop.f32.mrb[0].mxu0
        %2620 = vmatprep.mubr.bf16.mxu0 0
        %2621 = vmatmul.mubr.bf16.gmra.mrb[0].mxu0 %v2493
        %v2622 = vpop.f32.mrb[0].mxu0
        %v2623 = vadd.f32 0.0, %v2622
        %v2624 = vpop.f32.mrb[0].mxu0
        %v2625 = vpop.f32.mrb[0].mxu0
        %v2626 = vadd.f32 0.0, %v2625
        %v2627 = vpop.f32.mrb[0].mxu0
        %2628 = vmatprep.mubr.bf16.mxu0 0
        %2629 = vmatmul.mubr.bf16.gmra.mrb[0].mxu0 %v2496
        %v2630 = vpop.f32.mrb[0].mxu0
        %v2631 = vadd.f32 0.0, %v2630
        %v2632 = vpop.f32.mrb[0].mxu0
        %v2633 = vpop.f32.mrb[0].mxu0
        %v2634 = vadd.f32 0.0, %v2633
        %v2635 = vpop.f32.mrb[0].mxu0
        %2636 = vmatprep.mubr.bf16.mxu0 0
        %2637 = vmatmul.mubr.bf16.gmra.mrb[0].mxu0 %v2499
        %v2638 = vpop.f32.mrb[0].mxu0
        %v2639 = vadd.f32 0.0, %v2638
        %v2640 = vpop.f32.mrb[0].mxu0
        %v2641 = vpop.f32.mrb[0].mxu0
        %v2642 = vadd.f32 0.0, %v2641
        %v2643 = vpop.f32.mrb[0].mxu0
        %2644 = vmatprep.mubr.bf16.mxu0 0
        %2645 = vmatmul.mubr.bf16.gmra.mrb[0].mxu0 %v2502
        %v2646 = vpop.f32.mrb[0].mxu0
        %v2647 = vadd.f32 0.0, %v2646
        %v2648 = vpop.f32.mrb[0].mxu0
        %v2649 = vpop.f32.mrb[0].mxu0
        %v2650 = vadd.f32 0.0, %v2649
        %v2651 = vpop.f32.mrb[0].mxu0
        %2652 = vmatprep.mubr.bf16.mxu0 0
        %2653 = vmatmul.mubr.bf16.gmra.mrb[0].mxu0 %v2505
        %v2654 = vpop.f32.mrb[0].mxu0
        %v2655 = vadd.f32 0.0, %v2654
        %v2656 = vpop.f32.mrb[0].mxu0
        %v2657 = vpop.f32.mrb[0].mxu0
        %v2658 = vadd.f32 0.0, %v2657
        %v2659 = vpop.f32.mrb[0].mxu0
        %2660 = vmatprep.mubr.bf16.mxu0 0
        %2661 = vmatmul.mubr.bf16.gmra.mrb[0].mxu0 %v2508
        %v2662 = vpop.f32.mrb[0].mxu0
        %v2663 = vadd.f32 0.0, %v2662
        %v2664 = vpop.f32.mrb[0].mxu0
        %v2665 = vpop.f32.mrb[0].mxu0
        %v2666 = vadd.f32 0.0, %v2665
        %v2667 = vpop.f32.mrb[0].mxu0
        %2668 = vmatprep.mubr.bf16.mxu0 0
        %2669 = vmatmul.mubr.bf16.gmra.mrb[0].mxu0 %v2511
        %v2670 = vpop.f32.mrb[0].mxu0
        %v2671 = vadd.f32 0.0, %v2670
        %v2672 = vpop.f32.mrb[0].mxu0
        %v2673 = vpop.f32.mrb[0].mxu0
        %v2674 = vadd.f32 0.0, %v2673
        %v2675 = vpop.f32.mrb[0].mxu0
        %2676 = vdwg.mxu0
        %v2677 = vadd.f32 %v1999, %v2551
        %v2678 = vadd.f32 %v2000, %v2554
        %v2679 = vadd.f32 %v2001, %v2559
        %v2680 = vadd.f32 %v2002, %v2562
        %v2681 = vadd.f32 %v2003, %v2567
        %v2682 = vadd.f32 %v2004, %v2570
        %v2683 = vadd.f32 %v2005, %v2575
        %v2684 = vadd.f32 %v2006, %v2578
        %v2685 = vadd.f32 %v2007, %v2583
        %v2686 = vadd.f32 %v2008, %v2586
        %v2687 = vadd.f32 %v2009, %v2591
        %v2688 = vadd.f32 %v2010, %v2594
        %v2689 = vadd.f32 %v2011, %v2599
        %v2690 = vadd.f32 %v2012, %v2602
        %v2691 = vadd.f32 %v2013, %v2607
        %v2692 = vadd.f32 %v2014, %v2610
        %v2693 = vadd.f32 %v2015, %v2615
        %v2694 = vadd.f32 %v2016, %v2618
        %v2695 = vadd.f32 %v2017, %v2623
        %v2696 = vadd.f32 %v2018, %v2626
        %v2697 = vadd.f32 %v2019, %v2631
        %v2698 = vadd.f32 %v2020, %v2634
        %v2699 = vadd.f32 %v2021, %v2639
        %v2700 = vadd.f32 %v2022, %v2642
        %v2701 = vadd.f32 %v2023, %v2647
        %v2702 = vadd.f32 %v2024, %v2650
        %v2703 = vadd.f32 %v2025, %v2655
        %v2704 = vadd.f32 %v2026, %v2658
        %v2705 = vadd.f32 %v2027, %v2663
        %v2706 = vadd.f32 %v2028, %v2666
        %v2707 = vadd.f32 %v2029, %v2671
        %v2708 = vadd.f32 %v2030, %v2674
        %v2725 = vrot.slane %v1657, 5
        %v2726 = vrot.slane %v2725, 4
        %v2727 = vrot.slane %v1658, 5
        %v2728 = vsel %vm1246, %v2726, %v2727
        %v2729 = vrot.slane %v2727, 4
        %v2730 = vrot.slane %v1659, 5
        %v2731 = vsel %vm1246, %v2729, %v2730
        %v2732 = vrot.slane %v1660, 5
        %v2733 = vrot.slane %v2732, 4
        %v2734 = vrot.slane %v1661, 5
        %v2735 = vsel %vm1246, %v2733, %v2734
        %v2736 = vrot.slane %v2734, 4
        %v2737 = vrot.slane %v1662, 5
        %v2738 = vsel %vm1246, %v2736, %v2737
        %v2739 = vrot.slane %v1663, 5
        %v2740 = vrot.slane %v2739, 4
        %v2741 = vrot.slane %v1664, 5
        %v2742 = vsel %vm1246, %v2740, %v2741
        %v2743 = vrot.slane %v2741, 4
        %v2744 = vrot.slane %v1665, 5
        %v2745 = vsel %vm1246, %v2743, %v2744
        %v2746 = vrot.slane %v1666, 5
        %v2747 = vrot.slane %v2746, 4
        %v2748 = vrot.slane %v1667, 5
        %v2749 = vsel %vm1246, %v2747, %v2748
        %v2750 = vrot.slane %v2748, 4
        %v2751 = vrot.slane %v1668, 5
        %v2752 = vsel %vm1246, %v2750, %v2751
        %v2753 = vrot.slane %v1669, 5
        %v2754 = vrot.slane %v2753, 4
        %v2755 = vrot.slane %v1670, 5
        %v2756 = vsel %vm1246, %v2754, %v2755
        %v2757 = vrot.slane %v2755, 4
        %v2758 = vrot.slane %v1671, 5
        %v2759 = vsel %vm1246, %v2757, %v2758
        %v2760 = vrot.slane %v1672, 5
        %v2761 = vrot.slane %v2760, 4
        %v2762 = vrot.slane %v1673, 5
        %v2763 = vsel %vm1246, %v2761, %v2762
        %v2764 = vrot.slane %v2762, 4
        %v2765 = vrot.slane %v1674, 5
        %v2766 = vsel %vm1246, %v2764, %v2765
        %v2767 = vrot.slane %v1675, 5
        %v2768 = vrot.slane %v2767, 4
        %v2769 = vrot.slane %v1676, 5
        %v2770 = vsel %vm1246, %v2768, %v2769
        %v2771 = vrot.slane %v2769, 4
        %v2772 = vrot.slane %v1677, 5
        %v2773 = vsel %vm1246, %v2771, %v2772
        %v2774 = vrot.slane %v1678, 5
        %v2775 = vrot.slane %v2774, 4
        %v2776 = vrot.slane %v1679, 5
        %v2777 = vsel %vm1246, %v2775, %v2776
        %v2778 = vrot.slane %v2776, 4
        %v2779 = vrot.slane %v1680, 5
        %v2780 = vsel %vm1246, %v2778, %v2779
        %v2781 = vrot.slane %v1681, 5
        %v2782 = vrot.slane %v2781, 4
        %v2783 = vrot.slane %v1682, 5
        %v2784 = vsel %vm1246, %v2782, %v2783
        %v2785 = vrot.slane %v2783, 4
        %v2786 = vrot.slane %v1683, 5
        %v2787 = vsel %vm1246, %v2785, %v2786
        %v2788 = vrot.slane %v1684, 5
        %v2789 = vrot.slane %v2788, 4
        %v2790 = vrot.slane %v1685, 5
        %v2791 = vsel %vm1246, %v2789, %v2790
        %v2792 = vrot.slane %v2790, 4
        %v2793 = vrot.slane %v1686, 5
        %v2794 = vsel %vm1246, %v2792, %v2793
        %v2795 = vrot.slane %v1687, 5
        %v2796 = vrot.slane %v2795, 4
        %v2797 = vrot.slane %v1688, 5
        %v2798 = vsel %vm1246, %v2796, %v2797
        %v2799 = vrot.slane %v2797, 4
        %v2800 = vrot.slane %v1689, 5
        %v2801 = vsel %vm1246, %v2799, %v2800
        %v2802 = vrot.slane %v1690, 5
        %v2803 = vrot.slane %v2802, 4
        %v2804 = vrot.slane %v1691, 5
        %v2805 = vsel %vm1246, %v2803, %v2804
        %v2806 = vrot.slane %v2804, 4
        %v2807 = vrot.slane %v1692, 5
        %v2808 = vsel %vm1246, %v2806, %v2807
        %v2809 = vrot.slane %v1693, 5
        %v2810 = vrot.slane %v2809, 4
        %v2811 = vrot.slane %v1694, 5
        %v2812 = vsel %vm1246, %v2810, %v2811
        %v2813 = vrot.slane %v2811, 4
        %v2814 = vrot.slane %v1695, 5
        %v2815 = vsel %vm1246, %v2813, %v2814
        %v2816 = vrot.slane %v1696, 5
        %v2817 = vrot.slane %v2816, 4
        %v2818 = vrot.slane %v1697, 5
        %v2819 = vsel %vm1246, %v2817, %v2818
        %v2820 = vrot.slane %v2818, 4
        %v2821 = vrot.slane %v1698, 5
        %v2822 = vsel %vm1246, %v2820, %v2821
        %v2823 = vrot.slane %v1699, 5
        %v2824 = vrot.slane %v2823, 4
        %v2825 = vrot.slane %v1700, 5
        %v2826 = vsel %vm1246, %v2824, %v2825
        %v2827 = vrot.slane %v2825, 4
        %v2828 = vrot.slane %v1701, 5
        %v2829 = vsel %vm1246, %v2827, %v2828
        %v2830 = vrot.slane %v1702, 5
        %v2831 = vrot.slane %v2830, 4
        %v2832 = vrot.slane %v1703, 5
        %v2833 = vsel %vm1246, %v2831, %v2832
        %v2834 = vrot.slane %v2832, 4
        %v2835 = vrot.slane %v1704, 5
        %v2836 = vsel %vm1246, %v2834, %v2835
        %s2837 = scalar_lea.vmem [#allocation5], 20
        %v2838 = vld [vmem:[%s2837] sm:$0xf]
        %v2839 = vunpack.c.l.b16 %v2728
        %v2840 = vunpack.c.l.b16 %v2731
        %v2841 = vunpack.c.l.b16 %v2735
        %v2842 = vunpack.c.l.b16 %v2738
        %v2843 = vunpack.c.l.b16 %v2742
        %v2844 = vunpack.c.l.b16 %v2745
        %v2845 = vunpack.c.l.b16 %v2749
        %v2846 = vunpack.c.l.b16 %v2752
        %v2847 = vunpack.c.l.b16 %v2756
        %v2848 = vunpack.c.l.b16 %v2759
        %v2849 = vunpack.c.l.b16 %v2763
        %v2850 = vunpack.c.l.b16 %v2766
        %v2851 = vunpack.c.l.b16 %v2770
        %v2852 = vunpack.c.l.b16 %v2773
        %v2853 = vunpack.c.l.b16 %v2777
        %v2854 = vunpack.c.l.b16 %v2780
        %v2855 = vunpack.c.l.b16 %v2784
        %v2856 = vunpack.c.l.b16 %v2787
        %v2857 = vunpack.c.l.b16 %v2791
        %v2858 = vunpack.c.l.b16 %v2794
        %v2859 = vunpack.c.l.b16 %v2798
        %v2860 = vunpack.c.l.b16 %v2801
        %v2861 = vunpack.c.l.b16 %v2805
        %v2862 = vunpack.c.l.b16 %v2808
        %v2863 = vunpack.c.l.b16 %v2812
        %v2864 = vunpack.c.l.b16 %v2815
        %v2865 = vunpack.c.l.b16 %v2819
        %v2866 = vunpack.c.l.b16 %v2822
        %v2867 = vunpack.c.l.b16 %v2826
        %v2868 = vunpack.c.l.b16 %v2829
        %v2869 = vunpack.c.l.b16 %v2833
        %v2870 = vunpack.c.l.b16 %v2836
        %v2871 = vpack.c.b16 %v2840, %v2839
        %v2872 = vpack.c.b16 %v2842, %v2841
        %v2873 = vpack.c.b16 %v2844, %v2843
        %v2874 = vpack.c.b16 %v2846, %v2845
        %v2875 = vpack.c.b16 %v2848, %v2847
        %v2876 = vpack.c.b16 %v2850, %v2849
        %v2877 = vpack.c.b16 %v2852, %v2851
        %v2878 = vpack.c.b16 %v2854, %v2853
        %v2879 = vpack.c.b16 %v2856, %v2855
        %v2880 = vpack.c.b16 %v2858, %v2857
        %v2881 = vpack.c.b16 %v2860, %v2859
        %v2882 = vpack.c.b16 %v2862, %v2861
        %v2883 = vpack.c.b16 %v2864, %v2863
        %v2884 = vpack.c.b16 %v2866, %v2865
        %v2885 = vpack.c.b16 %v2868, %v2867
        %v2886 = vpack.c.b16 %v2870, %v2869
        %v2888 = vsel %vm722, %v2871, 0
        %v2891 = vsel %vm722, %v2872, 0
        %v2894 = vsel %vm722, %v2873, 0
        %v2897 = vsel %vm722, %v2874, 0
        %v2900 = vsel %vm722, %v2875, 0
        %v2903 = vsel %vm722, %v2876, 0
        %v2906 = vsel %vm722, %v2877, 0
        %v2909 = vsel %vm722, %v2878, 0
        %v2912 = vsel %vm722, %v2879, 0
        %v2915 = vsel %vm722, %v2880, 0
        %v2918 = vsel %vm722, %v2881, 0
        %v2921 = vsel %vm722, %v2882, 0
        %v2924 = vsel %vm722, %v2883, 0
        %v2927 = vsel %vm722, %v2884, 0
        %v2930 = vsel %vm722, %v2885, 0
        %v2933 = vsel %vm722, %v2886, 0
        %v2936 = vsel %vm771, %v2838, 0
        %2938 = vmatprep.subr.bf16.mxu0 0
        %2939 = vmatpush1.bf16.msra.mxu0 %v2936
        %2940 = vmatprep.subr.bf16.mxu0 0
        %2941 = vmatpush1.bf16.msra.mxu0 0
        %2942 = vmatprep.subr.bf16.mxu0 0
        %2943 = vmatpush1.bf16.msra.mxu0 0
        %2944 = vmatprep.subr.bf16.mxu0 0
        %2945 = vmatpush1.bf16.msra.mxu0 0
        %2946 = vmatprep.subr.bf16.mxu0 0
        %2947 = vmatpush1.bf16.msra.mxu0 0
        %2948 = vmatprep.subr.bf16.mxu0 0
        %2949 = vmatpush1.bf16.msra.mxu0 0
        %2950 = vmatprep.subr.bf16.mxu0 0
        %2951 = vmatpush1.bf16.msra.mxu0 0
        %2952 = vmatprep.subr.bf16.mxu0 0
        %2953 = vmatpush1.bf16.msra.mxu0 0
        %2954 = vmatprep.subr.bf16.mxu0 0
        %2955 = vmatpush1.bf16.msra.mxu0 0
        %2956 = vmatprep.subr.bf16.mxu0 0
        %2957 = vmatpush1.bf16.msra.mxu0 0
        %2958 = vmatprep.subr.bf16.mxu0 0
        %2959 = vmatpush1.bf16.msra.mxu0 0
        %2960 = vmatprep.subr.bf16.mxu0 0
        %2961 = vmatpush1.bf16.msra.mxu0 0
        %2962 = vmatprep.subr.bf16.mxu0 0
        %2963 = vmatpush1.bf16.msra.mxu0 0
        %2964 = vmatprep.subr.bf16.mxu0 0
        %2965 = vmatpush1.bf16.msra.mxu0 0
        %2966 = vmatprep.subr.bf16.mxu0 0
        %2967 = vmatpush1.bf16.msra.mxu0 0
        %2968 = vmatprep.subr.bf16.mxu0 0
        %2969 = vmatpush1.bf16.msra.mxu0 0
        %2970 = vmatprep.mubr.bf16.mxu0 0
        %2971 = vmatmul.mubr.bf16.gmra.mrb[0].mxu0 %v2888
        %v2972 = vpop.f32.mrb[0].mxu0
        %v2973 = vadd.f32 0.0, %v2972
        %v2974 = vpop.f32.mrb[0].mxu0
        %v2975 = vpop.f32.mrb[0].mxu0
        %v2976 = vadd.f32 0.0, %v2975
        %v2977 = vpop.f32.mrb[0].mxu0
        %2978 = vmatprep.mubr.bf16.mxu0 0
        %2979 = vmatmul.mubr.bf16.gmra.mrb[0].mxu0 %v2891
        %v2980 = vpop.f32.mrb[0].mxu0
        %v2981 = vadd.f32 0.0, %v2980
        %v2982 = vpop.f32.mrb[0].mxu0
        %v2983 = vpop.f32.mrb[0].mxu0
        %v2984 = vadd.f32 0.0, %v2983
        %v2985 = vpop.f32.mrb[0].mxu0
        %2986 = vmatprep.mubr.bf16.mxu0 0
        %2987 = vmatmul.mubr.bf16.gmra.mrb[0].mxu0 %v2894
        %v2988 = vpop.f32.mrb[0].mxu0
        %v2989 = vadd.f32 0.0, %v2988
        %v2990 = vpop.f32.mrb[0].mxu0
        %v2991 = vpop.f32.mrb[0].mxu0
        %v2992 = vadd.f32 0.0, %v2991
        %v2993 = vpop.f32.mrb[0].mxu0
        %2994 = vmatprep.mubr.bf16.mxu0 0
        %2995 = vmatmul.mubr.bf16.gmra.mrb[0].mxu0 %v2897
        %v2996 = vpop.f32.mrb[0].mxu0
        %v2997 = vadd.f32 0.0, %v2996
        %v2998 = vpop.f32.mrb[0].mxu0
        %v2999 = vpop.f32.mrb[0].mxu0
        %v3000 = vadd.f32 0.0, %v2999
        %v3001 = vpop.f32.mrb[0].mxu0
        %3002 = vmatprep.mubr.bf16.mxu0 0
        %3003 = vmatmul.mubr.bf16.gmra.mrb[0].mxu0 %v2900
        %v3004 = vpop.f32.mrb[0].mxu0
        %v3005 = vadd.f32 0.0, %v3004
        %v3006 = vpop.f32.mrb[0].mxu0
        %v3007 = vpop.f32.mrb[0].mxu0
        %v3008 = vadd.f32 0.0, %v3007
        %v3009 = vpop.f32.mrb[0].mxu0
        %3010 = vmatprep.mubr.bf16.mxu0 0
        %3011 = vmatmul.mubr.bf16.gmra.mrb[0].mxu0 %v2903
        %v3012 = vpop.f32.mrb[0].mxu0
        %v3013 = vadd.f32 0.0, %v3012
        %v3014 = vpop.f32.mrb[0].mxu0
        %v3015 = vpop.f32.mrb[0].mxu0
        %v3016 = vadd.f32 0.0, %v3015
        %v3017 = vpop.f32.mrb[0].mxu0
        %3018 = vmatprep.mubr.bf16.mxu0 0
        %3019 = vmatmul.mubr.bf16.gmra.mrb[0].mxu0 %v2906
        %v3020 = vpop.f32.mrb[0].mxu0
        %v3021 = vadd.f32 0.0, %v3020
        %v3022 = vpop.f32.mrb[0].mxu0
        %v3023 = vpop.f32.mrb[0].mxu0
        %v3024 = vadd.f32 0.0, %v3023
        %v3025 = vpop.f32.mrb[0].mxu0
        %3026 = vmatprep.mubr.bf16.mxu0 0
        %3027 = vmatmul.mubr.bf16.gmra.mrb[0].mxu0 %v2909
        %v3028 = vpop.f32.mrb[0].mxu0
        %v3029 = vadd.f32 0.0, %v3028
        %v3030 = vpop.f32.mrb[0].mxu0
        %v3031 = vpop.f32.mrb[0].mxu0
        %v3032 = vadd.f32 0.0, %v3031
        %v3033 = vpop.f32.mrb[0].mxu0
        %3034 = vmatprep.mubr.bf16.mxu0 0
        %3035 = vmatmul.mubr.bf16.gmra.mrb[0].mxu0 %v2912
        %v3036 = vpop.f32.mrb[0].mxu0
        %v3037 = vadd.f32 0.0, %v3036
        %v3038 = vpop.f32.mrb[0].mxu0
        %v3039 = vpop.f32.mrb[0].mxu0
        %v3040 = vadd.f32 0.0, %v3039
        %v3041 = vpop.f32.mrb[0].mxu0
        %3042 = vmatprep.mubr.bf16.mxu0 0
        %3043 = vmatmul.mubr.bf16.gmra.mrb[0].mxu0 %v2915
        %v3044 = vpop.f32.mrb[0].mxu0
        %v3045 = vadd.f32 0.0, %v3044
        %v3046 = vpop.f32.mrb[0].mxu0
        %v3047 = vpop.f32.mrb[0].mxu0
        %v3048 = vadd.f32 0.0, %v3047
        %v3049 = vpop.f32.mrb[0].mxu0
        %3050 = vmatprep.mubr.bf16.mxu0 0
        %3051 = vmatmul.mubr.bf16.gmra.mrb[0].mxu0 %v2918
        %v3052 = vpop.f32.mrb[0].mxu0
        %v3053 = vadd.f32 0.0, %v3052
        %v3054 = vpop.f32.mrb[0].mxu0
        %v3055 = vpop.f32.mrb[0].mxu0
        %v3056 = vadd.f32 0.0, %v3055
        %v3057 = vpop.f32.mrb[0].mxu0
        %3058 = vmatprep.mubr.bf16.mxu0 0
        %3059 = vmatmul.mubr.bf16.gmra.mrb[0].mxu0 %v2921
        %v3060 = vpop.f32.mrb[0].mxu0
        %v3061 = vadd.f32 0.0, %v3060
        %v3062 = vpop.f32.mrb[0].mxu0
        %v3063 = vpop.f32.mrb[0].mxu0
        %v3064 = vadd.f32 0.0, %v3063
        %v3065 = vpop.f32.mrb[0].mxu0
        %3066 = vmatprep.mubr.bf16.mxu0 0
        %3067 = vmatmul.mubr.bf16.gmra.mrb[0].mxu0 %v2924
        %v3068 = vpop.f32.mrb[0].mxu0
        %v3069 = vadd.f32 0.0, %v3068
        %v3070 = vpop.f32.mrb[0].mxu0
        %v3071 = vpop.f32.mrb[0].mxu0
        %v3072 = vadd.f32 0.0, %v3071
        %v3073 = vpop.f32.mrb[0].mxu0
        %3074 = vmatprep.mubr.bf16.mxu0 0
        %3075 = vmatmul.mubr.bf16.gmra.mrb[0].mxu0 %v2927
        %v3076 = vpop.f32.mrb[0].mxu0
        %v3077 = vadd.f32 0.0, %v3076
        %v3078 = vpop.f32.mrb[0].mxu0
        %v3079 = vpop.f32.mrb[0].mxu0
        %v3080 = vadd.f32 0.0, %v3079
        %v3081 = vpop.f32.mrb[0].mxu0
        %3082 = vmatprep.mubr.bf16.mxu0 0
        %3083 = vmatmul.mubr.bf16.gmra.mrb[0].mxu0 %v2930
        %v3084 = vpop.f32.mrb[0].mxu0
        %v3085 = vadd.f32 0.0, %v3084
        %v3086 = vpop.f32.mrb[0].mxu0
        %v3087 = vpop.f32.mrb[0].mxu0
        %v3088 = vadd.f32 0.0, %v3087
        %v3089 = vpop.f32.mrb[0].mxu0
        %3090 = vmatprep.mubr.bf16.mxu0 0
        %3091 = vmatmul.mubr.bf16.gmra.mrb[0].mxu0 %v2933
        %v3092 = vpop.f32.mrb[0].mxu0
        %v3093 = vadd.f32 0.0, %v3092
        %v3094 = vpop.f32.mrb[0].mxu0
        %v3095 = vpop.f32.mrb[0].mxu0
        %v3096 = vadd.f32 0.0, %v3095
        %v3097 = vpop.f32.mrb[0].mxu0
        %3098 = vdwg.mxu0
        %v3099 = vadd.f32 %v2677, %v2973
        %v3100 = vadd.f32 %v2678, %v2976
        %v3101 = vadd.f32 %v2679, %v2981
        %v3102 = vadd.f32 %v2680, %v2984
        %v3103 = vadd.f32 %v2681, %v2989
        %v3104 = vadd.f32 %v2682, %v2992
        %v3105 = vadd.f32 %v2683, %v2997
        %v3106 = vadd.f32 %v2684, %v3000
        %v3107 = vadd.f32 %v2685, %v3005
        %v3108 = vadd.f32 %v2686, %v3008
        %v3109 = vadd.f32 %v2687, %v3013
        %v3110 = vadd.f32 %v2688, %v3016
        %v3111 = vadd.f32 %v2689, %v3021
        %v3112 = vadd.f32 %v2690, %v3024
        %v3113 = vadd.f32 %v2691, %v3029
        %v3114 = vadd.f32 %v2692, %v3032
        %v3115 = vadd.f32 %v2693, %v3037
        %v3116 = vadd.f32 %v2694, %v3040
        %v3117 = vadd.f32 %v2695, %v3045
        %v3118 = vadd.f32 %v2696, %v3048
        %v3119 = vadd.f32 %v2697, %v3053
        %v3120 = vadd.f32 %v2698, %v3056
        %v3121 = vadd.f32 %v2699, %v3061
        %v3122 = vadd.f32 %v2700, %v3064
        %v3123 = vadd.f32 %v2701, %v3069
        %v3124 = vadd.f32 %v2702, %v3072
        %v3125 = vadd.f32 %v2703, %v3077
        %v3126 = vadd.f32 %v2704, %v3080
        %v3127 = vadd.f32 %v2705, %v3085
        %v3128 = vadd.f32 %v2706, %v3088
        %v3129 = vadd.f32 %v2707, %v3093
        %v3130 = vadd.f32 %v2708, %v3096
        %s3131 = sadd.s32 %s232, 2
        %s3132 = smul.u32 %s3131, 3
        %s3133 = smul.addr %s3132, 4
        %s3134 = scalar_lea.vmem %s199, %s3133 [#allocation2]
        %v3135 = vld [vmem:[%s3134] sm:$0xf]
        %v3136 = vld [vmem:[%s3134 + $0x4] sm:$0xf]
        %v3137 = vld [vmem:[%s3134 + $0x8] sm:$0x1]
        %v3138 = vld [vmem:[%s3134 + $0xc] sm:$0xf]
        %v3139 = vld [vmem:[%s3134 + $0x10] sm:$0xf]
        %v3140 = vld [vmem:[%s3134 + $0x14] sm:$0x1]
        %v3141 = vld [vmem:[%s3134 + $0x18] sm:$0xf]
        %v3142 = vld [vmem:[%s3134 + $0x1c] sm:$0xf]
        %v3143 = vld [vmem:[%s3134 + $0x20] sm:$0x1]
        %v3144 = vld [vmem:[%s3134 + $0x24] sm:$0xf]
        %v3145 = vld [vmem:[%s3134 + $0x28] sm:$0xf]
        %v3146 = vld [vmem:[%s3134 + $0x2c] sm:$0x1]
        %v3147 = vld [vmem:[%s3134 + $0x30] sm:$0xf]
        %v3148 = vld [vmem:[%s3134 + $0x34] sm:$0xf]
        %v3149 = vld [vmem:[%s3134 + $0x38] sm:$0x1]
        %v3150 = vld [vmem:[%s3134 + $0x3c] sm:$0xf]
        %v3151 = vld [vmem:[%s3134 + $0x40] sm:$0xf]
        %v3152 = vld [vmem:[%s3134 + $0x44] sm:$0x1]
        %v3153 = vld [vmem:[%s3134 + $0x48] sm:$0xf]
        %v3154 = vld [vmem:[%s3134 + $0x4c] sm:$0xf]
        %v3155 = vld [vmem:[%s3134 + $0x50] sm:$0x1]
        %v3156 = vld [vmem:[%s3134 + $0x54] sm:$0xf]
        %v3157 = vld [vmem:[%s3134 + $0x58] sm:$0xf]
        %v3158 = vld [vmem:[%s3134 + $0x5c] sm:$0x1]
        %v3159 = vld [vmem:[%s3134 + $0x60] sm:$0xf]
        %v3160 = vld [vmem:[%s3134 + $0x64] sm:$0xf]
        %v3161 = vld [vmem:[%s3134 + $0x68] sm:$0x1]
        %v3162 = vld [vmem:[%s3134 + $0x6c] sm:$0xf]
        %v3163 = vld [vmem:[%s3134 + $0x70] sm:$0xf]
        %v3164 = vld [vmem:[%s3134 + $0x74] sm:$0x1]
        %v3165 = vld [vmem:[%s3134 + $0x78] sm:$0xf]
        %v3166 = vld [vmem:[%s3134 + $0x7c] sm:$0xf]
        %v3167 = vld [vmem:[%s3134 + $0x80] sm:$0x1]
        %v3168 = vld [vmem:[%s3134 + $0x84] sm:$0xf]
        %v3169 = vld [vmem:[%s3134 + $0x88] sm:$0xf]
        %v3170 = vld [vmem:[%s3134 + $0x8c] sm:$0x1]
        %v3171 = vld [vmem:[%s3134 + $0x90] sm:$0xf]
        %v3172 = vld [vmem:[%s3134 + $0x94] sm:$0xf]
        %v3173 = vld [vmem:[%s3134 + $0x98] sm:$0x1]
        %v3174 = vld [vmem:[%s3134 + $0x9c] sm:$0xf]
        %v3175 = vld [vmem:[%s3134 + $0xa0] sm:$0xf]
        %v3176 = vld [vmem:[%s3134 + $0xa4] sm:$0x1]
        %v3177 = vld [vmem:[%s3134 + $0xa8] sm:$0xf]
        %v3178 = vld [vmem:[%s3134 + $0xac] sm:$0xf]
        %v3179 = vld [vmem:[%s3134 + $0xb0] sm:$0x1]
        %v3180 = vld [vmem:[%s3134 + $0xb4] sm:$0xf]
        %v3181 = vld [vmem:[%s3134 + $0xb8] sm:$0xf]
        %v3182 = vld [vmem:[%s3134 + $0xbc] sm:$0x1]
        %s3183 = scalar_lea.vmem [#allocation5], 24
        %v3184 = vld [vmem:[%s3183] sm:$0xf]
        %v3217 = vunpack.c.l.b16 %v3135
        %v3218 = vunpack.c.l.b16 %v3136
        %v3219 = vunpack.c.l.b16 %v3138
        %v3220 = vunpack.c.l.b16 %v3139
        %v3221 = vunpack.c.l.b16 %v3141
        %v3222 = vunpack.c.l.b16 %v3142
        %v3223 = vunpack.c.l.b16 %v3144
        %v3224 = vunpack.c.l.b16 %v3145
        %v3225 = vunpack.c.l.b16 %v3147
        %v3226 = vunpack.c.l.b16 %v3148
        %v3227 = vunpack.c.l.b16 %v3150
        %v3228 = vunpack.c.l.b16 %v3151
        %v3229 = vunpack.c.l.b16 %v3153
        %v3230 = vunpack.c.l.b16 %v3154
        %v3231 = vunpack.c.l.b16 %v3156
        %v3232 = vunpack.c.l.b16 %v3157
        %v3233 = vunpack.c.l.b16 %v3159
        %v3234 = vunpack.c.l.b16 %v3160
        %v3235 = vunpack.c.l.b16 %v3162
        %v3236 = vunpack.c.l.b16 %v3163
        %v3237 = vunpack.c.l.b16 %v3165
        %v3238 = vunpack.c.l.b16 %v3166
        %v3239 = vunpack.c.l.b16 %v3168
        %v3240 = vunpack.c.l.b16 %v3169
        %v3241 = vunpack.c.l.b16 %v3171
        %v3242 = vunpack.c.l.b16 %v3172
        %v3243 = vunpack.c.l.b16 %v3174
        %v3244 = vunpack.c.l.b16 %v3175
        %v3245 = vunpack.c.l.b16 %v3177
        %v3246 = vunpack.c.l.b16 %v3178
        %v3247 = vunpack.c.l.b16 %v3180
        %v3248 = vunpack.c.l.b16 %v3181
        %v3249 = vpack.c.b16 %v3218, %v3217
        %v3250 = vpack.c.b16 %v3220, %v3219
        %v3251 = vpack.c.b16 %v3222, %v3221
        %v3252 = vpack.c.b16 %v3224, %v3223
        %v3253 = vpack.c.b16 %v3226, %v3225
        %v3254 = vpack.c.b16 %v3228, %v3227
        %v3255 = vpack.c.b16 %v3230, %v3229
        %v3256 = vpack.c.b16 %v3232, %v3231
        %v3257 = vpack.c.b16 %v3234, %v3233
        %v3258 = vpack.c.b16 %v3236, %v3235
        %v3259 = vpack.c.b16 %v3238, %v3237
        %v3260 = vpack.c.b16 %v3240, %v3239
        %v3261 = vpack.c.b16 %v3242, %v3241
        %v3262 = vpack.c.b16 %v3244, %v3243
        %v3263 = vpack.c.b16 %v3246, %v3245
        %v3264 = vpack.c.b16 %v3248, %v3247
        %v3266 = vsel %vm722, %v3249, 0
        %v3269 = vsel %vm722, %v3250, 0
        %v3272 = vsel %vm722, %v3251, 0
        %v3275 = vsel %vm722, %v3252, 0
        %v3278 = vsel %vm722, %v3253, 0
        %v3281 = vsel %vm722, %v3254, 0
        %v3284 = vsel %vm722, %v3255, 0
        %v3287 = vsel %vm722, %v3256, 0
        %v3290 = vsel %vm722, %v3257, 0
        %v3293 = vsel %vm722, %v3258, 0
        %v3296 = vsel %vm722, %v3259, 0
        %v3299 = vsel %vm722, %v3260, 0
        %v3302 = vsel %vm722, %v3261, 0
        %v3305 = vsel %vm722, %v3262, 0
        %v3308 = vsel %vm722, %v3263, 0
        %v3311 = vsel %vm722, %v3264, 0
        %v3314 = vsel %vm771, %v3184, 0
        %3316 = vmatprep.subr.bf16.mxu0 0
        %3317 = vmatpush1.bf16.msra.mxu0 %v3314
        %3318 = vmatprep.subr.bf16.mxu0 0
        %3319 = vmatpush1.bf16.msra.mxu0 0
        %3320 = vmatprep.subr.bf16.mxu0 0
        %3321 = vmatpush1.bf16.msra.mxu0 0
        %3322 = vmatprep.subr.bf16.mxu0 0
        %3323 = vmatpush1.bf16.msra.mxu0 0
        %3324 = vmatprep.subr.bf16.mxu0 0
        %3325 = vmatpush1.bf16.msra.mxu0 0
        %3326 = vmatprep.subr.bf16.mxu0 0
        %3327 = vmatpush1.bf16.msra.mxu0 0
        %3328 = vmatprep.subr.bf16.mxu0 0
        %3329 = vmatpush1.bf16.msra.mxu0 0
        %3330 = vmatprep.subr.bf16.mxu0 0
        %3331 = vmatpush1.bf16.msra.mxu0 0
        %3332 = vmatprep.subr.bf16.mxu0 0
        %3333 = vmatpush1.bf16.msra.mxu0 0
        %3334 = vmatprep.subr.bf16.mxu0 0
        %3335 = vmatpush1.bf16.msra.mxu0 0
        %3336 = vmatprep.subr.bf16.mxu0 0
        %3337 = vmatpush1.bf16.msra.mxu0 0
        %3338 = vmatprep.subr.bf16.mxu0 0
        %3339 = vmatpush1.bf16.msra.mxu0 0
        %3340 = vmatprep.subr.bf16.mxu0 0
        %3341 = vmatpush1.bf16.msra.mxu0 0
        %3342 = vmatprep.subr.bf16.mxu0 0
        %3343 = vmatpush1.bf16.msra.mxu0 0
        %3344 = vmatprep.subr.bf16.mxu0 0
        %3345 = vmatpush1.bf16.msra.mxu0 0
        %3346 = vmatprep.subr.bf16.mxu0 0
        %3347 = vmatpush1.bf16.msra.mxu0 0
        %3348 = vmatprep.mubr.bf16.mxu0 0
        %3349 = vmatmul.mubr.bf16.gmra.mrb[0].mxu0 %v3266
        %v3350 = vpop.f32.mrb[0].mxu0
        %v3351 = vadd.f32 0.0, %v3350
        %v3352 = vpop.f32.mrb[0].mxu0
        %v3353 = vpop.f32.mrb[0].mxu0
        %v3354 = vadd.f32 0.0, %v3353
        %v3355 = vpop.f32.mrb[0].mxu0
        %3356 = vmatprep.mubr.bf16.mxu0 0
        %3357 = vmatmul.mubr.bf16.gmra.mrb[0].mxu0 %v3269
        %v3358 = vpop.f32.mrb[0].mxu0
        %v3359 = vadd.f32 0.0, %v3358
        %v3360 = vpop.f32.mrb[0].mxu0
        %v3361 = vpop.f32.mrb[0].mxu0
        %v3362 = vadd.f32 0.0, %v3361
        %v3363 = vpop.f32.mrb[0].mxu0
        %3364 = vmatprep.mubr.bf16.mxu0 0
        %3365 = vmatmul.mubr.bf16.gmra.mrb[0].mxu0 %v3272
        %v3366 = vpop.f32.mrb[0].mxu0
        %v3367 = vadd.f32 0.0, %v3366
        %v3368 = vpop.f32.mrb[0].mxu0
        %v3369 = vpop.f32.mrb[0].mxu0
        %v3370 = vadd.f32 0.0, %v3369
        %v3371 = vpop.f32.mrb[0].mxu0
        %3372 = vmatprep.mubr.bf16.mxu0 0
        %3373 = vmatmul.mubr.bf16.gmra.mrb[0].mxu0 %v3275
        %v3374 = vpop.f32.mrb[0].mxu0
        %v3375 = vadd.f32 0.0, %v3374
        %v3376 = vpop.f32.mrb[0].mxu0
        %v3377 = vpop.f32.mrb[0].mxu0
        %v3378 = vadd.f32 0.0, %v3377
        %v3379 = vpop.f32.mrb[0].mxu0
        %3380 = vmatprep.mubr.bf16.mxu0 0
        %3381 = vmatmul.mubr.bf16.gmra.mrb[0].mxu0 %v3278
        %v3382 = vpop.f32.mrb[0].mxu0
        %v3383 = vadd.f32 0.0, %v3382
        %v3384 = vpop.f32.mrb[0].mxu0
        %v3385 = vpop.f32.mrb[0].mxu0
        %v3386 = vadd.f32 0.0, %v3385
        %v3387 = vpop.f32.mrb[0].mxu0
        %3388 = vmatprep.mubr.bf16.mxu0 0
        %3389 = vmatmul.mubr.bf16.gmra.mrb[0].mxu0 %v3281
        %v3390 = vpop.f32.mrb[0].mxu0
        %v3391 = vadd.f32 0.0, %v3390
        %v3392 = vpop.f32.mrb[0].mxu0
        %v3393 = vpop.f32.mrb[0].mxu0
        %v3394 = vadd.f32 0.0, %v3393
        %v3395 = vpop.f32.mrb[0].mxu0
        %3396 = vmatprep.mubr.bf16.mxu0 0
        %3397 = vmatmul.mubr.bf16.gmra.mrb[0].mxu0 %v3284
        %v3398 = vpop.f32.mrb[0].mxu0
        %v3399 = vadd.f32 0.0, %v3398
        %v3400 = vpop.f32.mrb[0].mxu0
        %v3401 = vpop.f32.mrb[0].mxu0
        %v3402 = vadd.f32 0.0, %v3401
        %v3403 = vpop.f32.mrb[0].mxu0
        %3404 = vmatprep.mubr.bf16.mxu0 0
        %3405 = vmatmul.mubr.bf16.gmra.mrb[0].mxu0 %v3287
        %v3406 = vpop.f32.mrb[0].mxu0
        %v3407 = vadd.f32 0.0, %v3406
        %v3408 = vpop.f32.mrb[0].mxu0
        %v3409 = vpop.f32.mrb[0].mxu0
        %v3410 = vadd.f32 0.0, %v3409
        %v3411 = vpop.f32.mrb[0].mxu0
        %3412 = vmatprep.mubr.bf16.mxu0 0
        %3413 = vmatmul.mubr.bf16.gmra.mrb[0].mxu0 %v3290
        %v3414 = vpop.f32.mrb[0].mxu0
        %v3415 = vadd.f32 0.0, %v3414
        %v3416 = vpop.f32.mrb[0].mxu0
        %v3417 = vpop.f32.mrb[0].mxu0
        %v3418 = vadd.f32 0.0, %v3417
        %v3419 = vpop.f32.mrb[0].mxu0
        %3420 = vmatprep.mubr.bf16.mxu0 0
        %3421 = vmatmul.mubr.bf16.gmra.mrb[0].mxu0 %v3293
        %v3422 = vpop.f32.mrb[0].mxu0
        %v3423 = vadd.f32 0.0, %v3422
        %v3424 = vpop.f32.mrb[0].mxu0
        %v3425 = vpop.f32.mrb[0].mxu0
        %v3426 = vadd.f32 0.0, %v3425
        %v3427 = vpop.f32.mrb[0].mxu0
        %3428 = vmatprep.mubr.bf16.mxu0 0
        %3429 = vmatmul.mubr.bf16.gmra.mrb[0].mxu0 %v3296
        %v3430 = vpop.f32.mrb[0].mxu0
        %v3431 = vadd.f32 0.0, %v3430
        %v3432 = vpop.f32.mrb[0].mxu0
        %v3433 = vpop.f32.mrb[0].mxu0
        %v3434 = vadd.f32 0.0, %v3433
        %v3435 = vpop.f32.mrb[0].mxu0
        %3436 = vmatprep.mubr.bf16.mxu0 0
        %3437 = vmatmul.mubr.bf16.gmra.mrb[0].mxu0 %v3299
        %v3438 = vpop.f32.mrb[0].mxu0
        %v3439 = vadd.f32 0.0, %v3438
        %v3440 = vpop.f32.mrb[0].mxu0
        %v3441 = vpop.f32.mrb[0].mxu0
        %v3442 = vadd.f32 0.0, %v3441
        %v3443 = vpop.f32.mrb[0].mxu0
        %3444 = vmatprep.mubr.bf16.mxu0 0
        %3445 = vmatmul.mubr.bf16.gmra.mrb[0].mxu0 %v3302
        %v3446 = vpop.f32.mrb[0].mxu0
        %v3447 = vadd.f32 0.0, %v3446
        %v3448 = vpop.f32.mrb[0].mxu0
        %v3449 = vpop.f32.mrb[0].mxu0
        %v3450 = vadd.f32 0.0, %v3449
        %v3451 = vpop.f32.mrb[0].mxu0
        %3452 = vmatprep.mubr.bf16.mxu0 0
        %3453 = vmatmul.mubr.bf16.gmra.mrb[0].mxu0 %v3305
        %v3454 = vpop.f32.mrb[0].mxu0
        %v3455 = vadd.f32 0.0, %v3454
        %v3456 = vpop.f32.mrb[0].mxu0
        %v3457 = vpop.f32.mrb[0].mxu0
        %v3458 = vadd.f32 0.0, %v3457
        %v3459 = vpop.f32.mrb[0].mxu0
        %3460 = vmatprep.mubr.bf16.mxu0 0
        %3461 = vmatmul.mubr.bf16.gmra.mrb[0].mxu0 %v3308
        %v3462 = vpop.f32.mrb[0].mxu0
        %v3463 = vadd.f32 0.0, %v3462
        %v3464 = vpop.f32.mrb[0].mxu0
        %v3465 = vpop.f32.mrb[0].mxu0
        %v3466 = vadd.f32 0.0, %v3465
        %v3467 = vpop.f32.mrb[0].mxu0
        %3468 = vmatprep.mubr.bf16.mxu0 0
        %3469 = vmatmul.mubr.bf16.gmra.mrb[0].mxu0 %v3311
        %v3470 = vpop.f32.mrb[0].mxu0
        %v3471 = vadd.f32 0.0, %v3470
        %v3472 = vpop.f32.mrb[0].mxu0
        %v3473 = vpop.f32.mrb[0].mxu0
        %v3474 = vadd.f32 0.0, %v3473
        %v3475 = vpop.f32.mrb[0].mxu0
        %3476 = vdwg.mxu0
        %v3477 = vadd.f32 %v3099, %v3351
        %v3478 = vadd.f32 %v3100, %v3354
        %v3479 = vadd.f32 %v3101, %v3359
        %v3480 = vadd.f32 %v3102, %v3362
        %v3481 = vadd.f32 %v3103, %v3367
        %v3482 = vadd.f32 %v3104, %v3370
        %v3483 = vadd.f32 %v3105, %v3375
        %v3484 = vadd.f32 %v3106, %v3378
        %v3485 = vadd.f32 %v3107, %v3383
        %v3486 = vadd.f32 %v3108, %v3386
        %v3487 = vadd.f32 %v3109, %v3391
        %v3488 = vadd.f32 %v3110, %v3394
        %v3489 = vadd.f32 %v3111, %v3399
        %v3490 = vadd.f32 %v3112, %v3402
        %v3491 = vadd.f32 %v3113, %v3407
        %v3492 = vadd.f32 %v3114, %v3410
        %v3493 = vadd.f32 %v3115, %v3415
        %v3494 = vadd.f32 %v3116, %v3418
        %v3495 = vadd.f32 %v3117, %v3423
        %v3496 = vadd.f32 %v3118, %v3426
        %v3497 = vadd.f32 %v3119, %v3431
        %v3498 = vadd.f32 %v3120, %v3434
        %v3499 = vadd.f32 %v3121, %v3439
        %v3500 = vadd.f32 %v3122, %v3442
        %v3501 = vadd.f32 %v3123, %v3447
        %v3502 = vadd.f32 %v3124, %v3450
        %v3503 = vadd.f32 %v3125, %v3455
        %v3504 = vadd.f32 %v3126, %v3458
        %v3505 = vadd.f32 %v3127, %v3463
        %v3506 = vadd.f32 %v3128, %v3466
        %v3507 = vadd.f32 %v3129, %v3471
        %v3508 = vadd.f32 %v3130, %v3474
        %v3510 = vshrl.u32 %v3135, 16
        %v3512 = vrot.slane %v3510, 4
        %v3513 = vshll.u32 %v3135, 16
        %v3515 = vrot.slane %v3513, 5
        %v3516 = vor.u32 %v3512, %v3515
        %v3517 = vrot.slane %v3516, 4
        %v3519 = vshll.u32 %v3136, 16
        %v3521 = vrot.slane %v3519, 5
        %v3522 = vsel %vm287, %v3517, %v3521
        %v3523 = vshrl.u32 %v3136, 16
        %v3525 = vrot.slane %v3523, 4
        %v3526 = vor.u32 %v3525, %v3521
        %v3527 = vrot.slane %v3526, 4
        %v3529 = vshll.u32 %v3137, 16
        %v3531 = vrot.slane %v3529, 5
        %v3532 = vsel %vm287, %v3527, %v3531
        %v3534 = vshrl.u32 %v3138, 16
        %v3536 = vrot.slane %v3534, 4
        %v3537 = vshll.u32 %v3138, 16
        %v3539 = vrot.slane %v3537, 5
        %v3540 = vor.u32 %v3536, %v3539
        %v3541 = vrot.slane %v3540, 4
        %v3543 = vshll.u32 %v3139, 16
        %v3545 = vrot.slane %v3543, 5
        %v3546 = vsel %vm287, %v3541, %v3545
        %v3547 = vshrl.u32 %v3139, 16
        %v3549 = vrot.slane %v3547, 4
        %v3550 = vor.u32 %v3549, %v3545
        %v3551 = vrot.slane %v3550, 4
        %v3553 = vshll.u32 %v3140, 16
        %v3555 = vrot.slane %v3553, 5
        %v3556 = vsel %vm287, %v3551, %v3555
        %v3558 = vshrl.u32 %v3141, 16
        %v3560 = vrot.slane %v3558, 4
        %v3561 = vshll.u32 %v3141, 16
        %v3563 = vrot.slane %v3561, 5
        %v3564 = vor.u32 %v3560, %v3563
        %v3565 = vrot.slane %v3564, 4
        %v3567 = vshll.u32 %v3142, 16
        %v3569 = vrot.slane %v3567, 5
        %v3570 = vsel %vm287, %v3565, %v3569
        %v3571 = vshrl.u32 %v3142, 16
        %v3573 = vrot.slane %v3571, 4
        %v3574 = vor.u32 %v3573, %v3569
        %v3575 = vrot.slane %v3574, 4
        %v3577 = vshll.u32 %v3143, 16
        %v3579 = vrot.slane %v3577, 5
        %v3580 = vsel %vm287, %v3575, %v3579
        %v3582 = vshrl.u32 %v3144, 16
        %v3584 = vrot.slane %v3582, 4
        %v3585 = vshll.u32 %v3144, 16
        %v3587 = vrot.slane %v3585, 5
        %v3588 = vor.u32 %v3584, %v3587
        %v3589 = vrot.slane %v3588, 4
        %v3591 = vshll.u32 %v3145, 16
        %v3593 = vrot.slane %v3591, 5
        %v3594 = vsel %vm287, %v3589, %v3593
        %v3595 = vshrl.u32 %v3145, 16
        %v3597 = vrot.slane %v3595, 4
        %v3598 = vor.u32 %v3597, %v3593
        %v3599 = vrot.slane %v3598, 4
        %v3601 = vshll.u32 %v3146, 16
        %v3603 = vrot.slane %v3601, 5
        %v3604 = vsel %vm287, %v3599, %v3603
        %v3606 = vshrl.u32 %v3147, 16
        %v3608 = vrot.slane %v3606, 4
        %v3609 = vshll.u32 %v3147, 16
        %v3611 = vrot.slane %v3609, 5
        %v3612 = vor.u32 %v3608, %v3611
        %v3613 = vrot.slane %v3612, 4
        %v3615 = vshll.u32 %v3148, 16
        %v3617 = vrot.slane %v3615, 5
        %v3618 = vsel %vm287, %v3613, %v3617
        %v3619 = vshrl.u32 %v3148, 16
        %v3621 = vrot.slane %v3619, 4
        %v3622 = vor.u32 %v3621, %v3617
        %v3623 = vrot.slane %v3622, 4
        %v3625 = vshll.u32 %v3149, 16
        %v3627 = vrot.slane %v3625, 5
        %v3628 = vsel %vm287, %v3623, %v3627
        %v3630 = vshrl.u32 %v3150, 16
        %v3632 = vrot.slane %v3630, 4
        %v3633 = vshll.u32 %v3150, 16
        %v3635 = vrot.slane %v3633, 5
        %v3636 = vor.u32 %v3632, %v3635
        %v3637 = vrot.slane %v3636, 4
        %v3639 = vshll.u32 %v3151, 16
        %v3641 = vrot.slane %v3639, 5
        %v3642 = vsel %vm287, %v3637, %v3641
        %v3643 = vshrl.u32 %v3151, 16
        %v3645 = vrot.slane %v3643, 4
        %v3646 = vor.u32 %v3645, %v3641
        %v3647 = vrot.slane %v3646, 4
        %v3649 = vshll.u32 %v3152, 16
        %v3651 = vrot.slane %v3649, 5
        %v3652 = vsel %vm287, %v3647, %v3651
        %v3654 = vshrl.u32 %v3153, 16
        %v3656 = vrot.slane %v3654, 4
        %v3657 = vshll.u32 %v3153, 16
        %v3659 = vrot.slane %v3657, 5
        %v3660 = vor.u32 %v3656, %v3659
        %v3661 = vrot.slane %v3660, 4
        %v3663 = vshll.u32 %v3154, 16
        %v3665 = vrot.slane %v3663, 5
        %v3666 = vsel %vm287, %v3661, %v3665
        %v3667 = vshrl.u32 %v3154, 16
        %v3669 = vrot.slane %v3667, 4
        %v3670 = vor.u32 %v3669, %v3665
        %v3671 = vrot.slane %v3670, 4
        %v3673 = vshll.u32 %v3155, 16
        %v3675 = vrot.slane %v3673, 5
        %v3676 = vsel %vm287, %v3671, %v3675
        %v3678 = vshrl.u32 %v3156, 16
        %v3680 = vrot.slane %v3678, 4
        %v3681 = vshll.u32 %v3156, 16
        %v3683 = vrot.slane %v3681, 5
        %v3684 = vor.u32 %v3680, %v3683
        %v3685 = vrot.slane %v3684, 4
        %v3687 = vshll.u32 %v3157, 16
        %v3689 = vrot.slane %v3687, 5
        %v3690 = vsel %vm287, %v3685, %v3689
        %v3691 = vshrl.u32 %v3157, 16
        %v3693 = vrot.slane %v3691, 4
        %v3694 = vor.u32 %v3693, %v3689
        %v3695 = vrot.slane %v3694, 4
        %v3697 = vshll.u32 %v3158, 16
        %v3699 = vrot.slane %v3697, 5
        %v3700 = vsel %vm287, %v3695, %v3699
        %v3702 = vshrl.u32 %v3159, 16
        %v3704 = vrot.slane %v3702, 4
        %v3705 = vshll.u32 %v3159, 16
        %v3707 = vrot.slane %v3705, 5
        %v3708 = vor.u32 %v3704, %v3707
        %v3709 = vrot.slane %v3708, 4
        %v3711 = vshll.u32 %v3160, 16
        %v3713 = vrot.slane %v3711, 5
        %v3714 = vsel %vm287, %v3709, %v3713
        %v3715 = vshrl.u32 %v3160, 16
        %v3717 = vrot.slane %v3715, 4
        %v3718 = vor.u32 %v3717, %v3713
        %v3719 = vrot.slane %v3718, 4
        %v3721 = vshll.u32 %v3161, 16
        %v3723 = vrot.slane %v3721, 5
        %v3724 = vsel %vm287, %v3719, %v3723
        %v3726 = vshrl.u32 %v3162, 16
        %v3728 = vrot.slane %v3726, 4
        %v3729 = vshll.u32 %v3162, 16
        %v3731 = vrot.slane %v3729, 5
        %v3732 = vor.u32 %v3728, %v3731
        %v3733 = vrot.slane %v3732, 4
        %v3735 = vshll.u32 %v3163, 16
        %v3737 = vrot.slane %v3735, 5
        %v3738 = vsel %vm287, %v3733, %v3737
        %v3739 = vshrl.u32 %v3163, 16
        %v3741 = vrot.slane %v3739, 4
        %v3742 = vor.u32 %v3741, %v3737
        %v3743 = vrot.slane %v3742, 4
        %v3745 = vshll.u32 %v3164, 16
        %v3747 = vrot.slane %v3745, 5
        %v3748 = vsel %vm287, %v3743, %v3747
        %v3750 = vshrl.u32 %v3165, 16
        %v3752 = vrot.slane %v3750, 4
        %v3753 = vshll.u32 %v3165, 16
        %v3755 = vrot.slane %v3753, 5
        %v3756 = vor.u32 %v3752, %v3755
        %v3757 = vrot.slane %v3756, 4
        %v3759 = vshll.u32 %v3166, 16
        %v3761 = vrot.slane %v3759, 5
        %v3762 = vsel %vm287, %v3757, %v3761
        %v3763 = vshrl.u32 %v3166, 16
        %v3765 = vrot.slane %v3763, 4
        %v3766 = vor.u32 %v3765, %v3761
        %v3767 = vrot.slane %v3766, 4
        %v3769 = vshll.u32 %v3167, 16
        %v3771 = vrot.slane %v3769, 5
        %v3772 = vsel %vm287, %v3767, %v3771
        %v3774 = vshrl.u32 %v3168, 16
        %v3776 = vrot.slane %v3774, 4
        %v3777 = vshll.u32 %v3168, 16
        %v3779 = vrot.slane %v3777, 5
        %v3780 = vor.u32 %v3776, %v3779
        %v3781 = vrot.slane %v3780, 4
        %v3783 = vshll.u32 %v3169, 16
        %v3785 = vrot.slane %v3783, 5
        %v3786 = vsel %vm287, %v3781, %v3785
        %v3787 = vshrl.u32 %v3169, 16
        %v3789 = vrot.slane %v3787, 4
        %v3790 = vor.u32 %v3789, %v3785
        %v3791 = vrot.slane %v3790, 4
        %v3793 = vshll.u32 %v3170, 16
        %v3795 = vrot.slane %v3793, 5
        %v3796 = vsel %vm287, %v3791, %v3795
        %v3798 = vshrl.u32 %v3171, 16
        %v3800 = vrot.slane %v3798, 4
        %v3801 = vshll.u32 %v3171, 16
        %v3803 = vrot.slane %v3801, 5
        %v3804 = vor.u32 %v3800, %v3803
        %v3805 = vrot.slane %v3804, 4
        %v3807 = vshll.u32 %v3172, 16
        %v3809 = vrot.slane %v3807, 5
        %v3810 = vsel %vm287, %v3805, %v3809
        %v3811 = vshrl.u32 %v3172, 16
        %v3813 = vrot.slane %v3811, 4
        %v3814 = vor.u32 %v3813, %v3809
        %v3815 = vrot.slane %v3814, 4
        %v3817 = vshll.u32 %v3173, 16
        %v3819 = vrot.slane %v3817, 5
        %v3820 = vsel %vm287, %v3815, %v3819
        %v3822 = vshrl.u32 %v3174, 16
        %v3824 = vrot.slane %v3822, 4
        %v3825 = vshll.u32 %v3174, 16
        %v3827 = vrot.slane %v3825, 5
        %v3828 = vor.u32 %v3824, %v3827
        %v3829 = vrot.slane %v3828, 4
        %v3831 = vshll.u32 %v3175, 16
        %v3833 = vrot.slane %v3831, 5
        %v3834 = vsel %vm287, %v3829, %v3833
        %v3835 = vshrl.u32 %v3175, 16
        %v3837 = vrot.slane %v3835, 4
        %v3838 = vor.u32 %v3837, %v3833
        %v3839 = vrot.slane %v3838, 4
        %v3841 = vshll.u32 %v3176, 16
        %v3843 = vrot.slane %v3841, 5
        %v3844 = vsel %vm287, %v3839, %v3843
        %v3846 = vshrl.u32 %v3177, 16
        %v3848 = vrot.slane %v3846, 4
        %v3849 = vshll.u32 %v3177, 16
        %v3851 = vrot.slane %v3849, 5
        %v3852 = vor.u32 %v3848, %v3851
        %v3853 = vrot.slane %v3852, 4
        %v3855 = vshll.u32 %v3178, 16
        %v3857 = vrot.slane %v3855, 5
        %v3858 = vsel %vm287, %v3853, %v3857
        %v3859 = vshrl.u32 %v3178, 16
        %v3861 = vrot.slane %v3859, 4
        %v3862 = vor.u32 %v3861, %v3857
        %v3863 = vrot.slane %v3862, 4
        %v3865 = vshll.u32 %v3179, 16
        %v3867 = vrot.slane %v3865, 5
        %v3868 = vsel %vm287, %v3863, %v3867
        %v3870 = vshrl.u32 %v3180, 16
        %v3872 = vrot.slane %v3870, 4
        %v3873 = vshll.u32 %v3180, 16
        %v3875 = vrot.slane %v3873, 5
        %v3876 = vor.u32 %v3872, %v3875
        %v3877 = vrot.slane %v3876, 4
        %v3879 = vshll.u32 %v3181, 16
        %v3881 = vrot.slane %v3879, 5
        %v3882 = vsel %vm287, %v3877, %v3881
        %v3883 = vshrl.u32 %v3181, 16
        %v3885 = vrot.slane %v3883, 4
        %v3886 = vor.u32 %v3885, %v3881
        %v3887 = vrot.slane %v3886, 4
        %v3889 = vshll.u32 %v3182, 16
        %v3891 = vrot.slane %v3889, 5
        %v3892 = vsel %vm287, %v3887, %v3891
        %s3893 = scalar_lea.vmem [#allocation5], 28
        %v3894 = vld [vmem:[%s3893] sm:$0xf]
        %v3895 = vunpack.c.l.b16 %v3522
        %v3896 = vunpack.c.l.b16 %v3532
        %v3897 = vunpack.c.l.b16 %v3546
        %v3898 = vunpack.c.l.b16 %v3556
        %v3899 = vunpack.c.l.b16 %v3570
        %v3900 = vunpack.c.l.b16 %v3580
        %v3901 = vunpack.c.l.b16 %v3594
        %v3902 = vunpack.c.l.b16 %v3604
        %v3903 = vunpack.c.l.b16 %v3618
        %v3904 = vunpack.c.l.b16 %v3628
        %v3905 = vunpack.c.l.b16 %v3642
        %v3906 = vunpack.c.l.b16 %v3652
        %v3907 = vunpack.c.l.b16 %v3666
        %v3908 = vunpack.c.l.b16 %v3676
        %v3909 = vunpack.c.l.b16 %v3690
        %v3910 = vunpack.c.l.b16 %v3700
        %v3911 = vunpack.c.l.b16 %v3714
        %v3912 = vunpack.c.l.b16 %v3724
        %v3913 = vunpack.c.l.b16 %v3738
        %v3914 = vunpack.c.l.b16 %v3748
        %v3915 = vunpack.c.l.b16 %v3762
        %v3916 = vunpack.c.l.b16 %v3772
        %v3917 = vunpack.c.l.b16 %v3786
        %v3918 = vunpack.c.l.b16 %v3796
        %v3919 = vunpack.c.l.b16 %v3810
        %v3920 = vunpack.c.l.b16 %v3820
        %v3921 = vunpack.c.l.b16 %v3834
        %v3922 = vunpack.c.l.b16 %v3844
        %v3923 = vunpack.c.l.b16 %v3858
        %v3924 = vunpack.c.l.b16 %v3868
        %v3925 = vunpack.c.l.b16 %v3882
        %v3926 = vunpack.c.l.b16 %v3892
        %v3927 = vpack.c.b16 %v3896, %v3895
        %v3928 = vpack.c.b16 %v3898, %v3897
        %v3929 = vpack.c.b16 %v3900, %v3899
        %v3930 = vpack.c.b16 %v3902, %v3901
        %v3931 = vpack.c.b16 %v3904, %v3903
        %v3932 = vpack.c.b16 %v3906, %v3905
        %v3933 = vpack.c.b16 %v3908, %v3907
        %v3934 = vpack.c.b16 %v3910, %v3909
        %v3935 = vpack.c.b16 %v3912, %v3911
        %v3936 = vpack.c.b16 %v3914, %v3913
        %v3937 = vpack.c.b16 %v3916, %v3915
        %v3938 = vpack.c.b16 %v3918, %v3917
        %v3939 = vpack.c.b16 %v3920, %v3919
        %v3940 = vpack.c.b16 %v3922, %v3921
        %v3941 = vpack.c.b16 %v3924, %v3923
        %v3942 = vpack.c.b16 %v3926, %v3925
        %v3944 = vsel %vm722, %v3927, 0
        %v3947 = vsel %vm722, %v3928, 0
        %v3950 = vsel %vm722, %v3929, 0
        %v3953 = vsel %vm722, %v3930, 0
        %v3956 = vsel %vm722, %v3931, 0
        %v3959 = vsel %vm722, %v3932, 0
        %v3962 = vsel %vm722, %v3933, 0
        %v3965 = vsel %vm722, %v3934, 0
        %v3968 = vsel %vm722, %v3935, 0
        %v3971 = vsel %vm722, %v3936, 0
        %v3974 = vsel %vm722, %v3937, 0
        %v3977 = vsel %vm722, %v3938, 0
        %v3980 = vsel %vm722, %v3939, 0
        %v3983 = vsel %vm722, %v3940, 0
        %v3986 = vsel %vm722, %v3941, 0
        %v3989 = vsel %vm722, %v3942, 0
        %v3992 = vsel %vm771, %v3894, 0
        %3994 = vmatprep.subr.bf16.mxu0 0
        %3995 = vmatpush1.bf16.msra.mxu0 %v3992
        %3996 = vmatprep.subr.bf16.mxu0 0
        %3997 = vmatpush1.bf16.msra.mxu0 0
        %3998 = vmatprep.subr.bf16.mxu0 0
        %3999 = vmatpush1.bf16.msra.mxu0 0
        %4000 = vmatprep.subr.bf16.mxu0 0
        %4001 = vmatpush1.bf16.msra.mxu0 0
        %4002 = vmatprep.subr.bf16.mxu0 0
        %4003 = vmatpush1.bf16.msra.mxu0 0
        %4004 = vmatprep.subr.bf16.mxu0 0
        %4005 = vmatpush1.bf16.msra.mxu0 0
        %4006 = vmatprep.subr.bf16.mxu0 0
        %4007 = vmatpush1.bf16.msra.mxu0 0
        %4008 = vmatprep.subr.bf16.mxu0 0
        %4009 = vmatpush1.bf16.msra.mxu0 0
        %4010 = vmatprep.subr.bf16.mxu0 0
        %4011 = vmatpush1.bf16.msra.mxu0 0
        %4012 = vmatprep.subr.bf16.mxu0 0
        %4013 = vmatpush1.bf16.msra.mxu0 0
        %4014 = vmatprep.subr.bf16.mxu0 0
        %4015 = vmatpush1.bf16.msra.mxu0 0
        %4016 = vmatprep.subr.bf16.mxu0 0
        %4017 = vmatpush1.bf16.msra.mxu0 0
        %4018 = vmatprep.subr.bf16.mxu0 0
        %4019 = vmatpush1.bf16.msra.mxu0 0
        %4020 = vmatprep.subr.bf16.mxu0 0
        %4021 = vmatpush1.bf16.msra.mxu0 0
        %4022 = vmatprep.subr.bf16.mxu0 0
        %4023 = vmatpush1.bf16.msra.mxu0 0
        %4024 = vmatprep.subr.bf16.mxu0 0
        %4025 = vmatpush1.bf16.msra.mxu0 0
        %4026 = vmatprep.mubr.bf16.mxu0 0
        %4027 = vmatmul.mubr.bf16.gmra.mrb[0].mxu0 %v3944
        %v4028 = vpop.f32.mrb[0].mxu0
        %v4029 = vadd.f32 0.0, %v4028
        %v4030 = vpop.f32.mrb[0].mxu0
        %v4031 = vpop.f32.mrb[0].mxu0
        %v4032 = vadd.f32 0.0, %v4031
        %v4033 = vpop.f32.mrb[0].mxu0
        %4034 = vmatprep.mubr.bf16.mxu0 0
        %4035 = vmatmul.mubr.bf16.gmra.mrb[0].mxu0 %v3947
        %v4036 = vpop.f32.mrb[0].mxu0
        %v4037 = vadd.f32 0.0, %v4036
        %v4038 = vpop.f32.mrb[0].mxu0
        %v4039 = vpop.f32.mrb[0].mxu0
        %v4040 = vadd.f32 0.0, %v4039
        %v4041 = vpop.f32.mrb[0].mxu0
        %4042 = vmatprep.mubr.bf16.mxu0 0
        %4043 = vmatmul.mubr.bf16.gmra.mrb[0].mxu0 %v3950
        %v4044 = vpop.f32.mrb[0].mxu0
        %v4045 = vadd.f32 0.0, %v4044
        %v4046 = vpop.f32.mrb[0].mxu0
        %v4047 = vpop.f32.mrb[0].mxu0
        %v4048 = vadd.f32 0.0, %v4047
        %v4049 = vpop.f32.mrb[0].mxu0
        %4050 = vmatprep.mubr.bf16.mxu0 0
        %4051 = vmatmul.mubr.bf16.gmra.mrb[0].mxu0 %v3953
        %v4052 = vpop.f32.mrb[0].mxu0
        %v4053 = vadd.f32 0.0, %v4052
        %v4054 = vpop.f32.mrb[0].mxu0
        %v4055 = vpop.f32.mrb[0].mxu0
        %v4056 = vadd.f32 0.0, %v4055
        %v4057 = vpop.f32.mrb[0].mxu0
        %4058 = vmatprep.mubr.bf16.mxu0 0
        %4059 = vmatmul.mubr.bf16.gmra.mrb[0].mxu0 %v3956
        %v4060 = vpop.f32.mrb[0].mxu0
        %v4061 = vadd.f32 0.0, %v4060
        %v4062 = vpop.f32.mrb[0].mxu0
        %v4063 = vpop.f32.mrb[0].mxu0
        %v4064 = vadd.f32 0.0, %v4063
        %v4065 = vpop.f32.mrb[0].mxu0
        %4066 = vmatprep.mubr.bf16.mxu0 0
        %4067 = vmatmul.mubr.bf16.gmra.mrb[0].mxu0 %v3959
        %v4068 = vpop.f32.mrb[0].mxu0
        %v4069 = vadd.f32 0.0, %v4068
        %v4070 = vpop.f32.mrb[0].mxu0
        %v4071 = vpop.f32.mrb[0].mxu0
        %v4072 = vadd.f32 0.0, %v4071
        %v4073 = vpop.f32.mrb[0].mxu0
        %4074 = vmatprep.mubr.bf16.mxu0 0
        %4075 = vmatmul.mubr.bf16.gmra.mrb[0].mxu0 %v3962
        %v4076 = vpop.f32.mrb[0].mxu0
        %v4077 = vadd.f32 0.0, %v4076
        %v4078 = vpop.f32.mrb[0].mxu0
        %v4079 = vpop.f32.mrb[0].mxu0
        %v4080 = vadd.f32 0.0, %v4079
        %v4081 = vpop.f32.mrb[0].mxu0
        %4082 = vmatprep.mubr.bf16.mxu0 0
        %4083 = vmatmul.mubr.bf16.gmra.mrb[0].mxu0 %v3965
        %v4084 = vpop.f32.mrb[0].mxu0
        %v4085 = vadd.f32 0.0, %v4084
        %v4086 = vpop.f32.mrb[0].mxu0
        %v4087 = vpop.f32.mrb[0].mxu0
        %v4088 = vadd.f32 0.0, %v4087
        %v4089 = vpop.f32.mrb[0].mxu0
        %4090 = vmatprep.mubr.bf16.mxu0 0
        %4091 = vmatmul.mubr.bf16.gmra.mrb[0].mxu0 %v3968
        %v4092 = vpop.f32.mrb[0].mxu0
        %v4093 = vadd.f32 0.0, %v4092
        %v4094 = vpop.f32.mrb[0].mxu0
        %v4095 = vpop.f32.mrb[0].mxu0
        %v4096 = vadd.f32 0.0, %v4095
        %v4097 = vpop.f32.mrb[0].mxu0
        %4098 = vmatprep.mubr.bf16.mxu0 0
        %4099 = vmatmul.mubr.bf16.gmra.mrb[0].mxu0 %v3971
        %v4100 = vpop.f32.mrb[0].mxu0
        %v4101 = vadd.f32 0.0, %v4100
        %v4102 = vpop.f32.mrb[0].mxu0
        %v4103 = vpop.f32.mrb[0].mxu0
        %v4104 = vadd.f32 0.0, %v4103
        %v4105 = vpop.f32.mrb[0].mxu0
        %4106 = vmatprep.mubr.bf16.mxu0 0
        %4107 = vmatmul.mubr.bf16.gmra.mrb[0].mxu0 %v3974
        %v4108 = vpop.f32.mrb[0].mxu0
        %v4109 = vadd.f32 0.0, %v4108
        %v4110 = vpop.f32.mrb[0].mxu0
        %v4111 = vpop.f32.mrb[0].mxu0
        %v4112 = vadd.f32 0.0, %v4111
        %v4113 = vpop.f32.mrb[0].mxu0
        %4114 = vmatprep.mubr.bf16.mxu0 0
        %4115 = vmatmul.mubr.bf16.gmra.mrb[0].mxu0 %v3977
        %v4116 = vpop.f32.mrb[0].mxu0
        %v4117 = vadd.f32 0.0, %v4116
        %v4118 = vpop.f32.mrb[0].mxu0
        %v4119 = vpop.f32.mrb[0].mxu0
        %v4120 = vadd.f32 0.0, %v4119
        %v4121 = vpop.f32.mrb[0].mxu0
        %4122 = vmatprep.mubr.bf16.mxu0 0
        %4123 = vmatmul.mubr.bf16.gmra.mrb[0].mxu0 %v3980
        %v4124 = vpop.f32.mrb[0].mxu0
        %v4125 = vadd.f32 0.0, %v4124
        %v4126 = vpop.f32.mrb[0].mxu0
        %v4127 = vpop.f32.mrb[0].mxu0
        %v4128 = vadd.f32 0.0, %v4127
        %v4129 = vpop.f32.mrb[0].mxu0
        %4130 = vmatprep.mubr.bf16.mxu0 0
        %4131 = vmatmul.mubr.bf16.gmra.mrb[0].mxu0 %v3983
        %v4132 = vpop.f32.mrb[0].mxu0
        %v4133 = vadd.f32 0.0, %v4132
        %v4134 = vpop.f32.mrb[0].mxu0
        %v4135 = vpop.f32.mrb[0].mxu0
        %v4136 = vadd.f32 0.0, %v4135
        %v4137 = vpop.f32.mrb[0].mxu0
        %4138 = vmatprep.mubr.bf16.mxu0 0
        %4139 = vmatmul.mubr.bf16.gmra.mrb[0].mxu0 %v3986
        %v4140 = vpop.f32.mrb[0].mxu0
        %v4141 = vadd.f32 0.0, %v4140
        %v4142 = vpop.f32.mrb[0].mxu0
        %v4143 = vpop.f32.mrb[0].mxu0
        %v4144 = vadd.f32 0.0, %v4143
        %v4145 = vpop.f32.mrb[0].mxu0
        %4146 = vmatprep.mubr.bf16.mxu0 0
        %4147 = vmatmul.mubr.bf16.gmra.mrb[0].mxu0 %v3989
        %v4148 = vpop.f32.mrb[0].mxu0
        %v4149 = vadd.f32 0.0, %v4148
        %v4150 = vpop.f32.mrb[0].mxu0
        %v4151 = vpop.f32.mrb[0].mxu0
        %v4152 = vadd.f32 0.0, %v4151
        %v4153 = vpop.f32.mrb[0].mxu0
        %4154 = vdwg.mxu0
        %v4155 = vadd.f32 %v3477, %v4029
        %v4156 = vadd.f32 %v3478, %v4032
        %v4157 = vadd.f32 %v3479, %v4037
        %v4158 = vadd.f32 %v3480, %v4040
        %v4159 = vadd.f32 %v3481, %v4045
        %v4160 = vadd.f32 %v3482, %v4048
        %v4161 = vadd.f32 %v3483, %v4053
        %v4162 = vadd.f32 %v3484, %v4056
        %v4163 = vadd.f32 %v3485, %v4061
        %v4164 = vadd.f32 %v3486, %v4064
        %v4165 = vadd.f32 %v3487, %v4069
        %v4166 = vadd.f32 %v3488, %v4072
        %v4167 = vadd.f32 %v3489, %v4077
        %v4168 = vadd.f32 %v3490, %v4080
        %v4169 = vadd.f32 %v3491, %v4085
        %v4170 = vadd.f32 %v3492, %v4088
        %v4171 = vadd.f32 %v3493, %v4093
        %v4172 = vadd.f32 %v3494, %v4096
        %v4173 = vadd.f32 %v3495, %v4101
        %v4174 = vadd.f32 %v3496, %v4104
        %v4175 = vadd.f32 %v3497, %v4109
        %v4176 = vadd.f32 %v3498, %v4112
        %v4177 = vadd.f32 %v3499, %v4117
        %v4178 = vadd.f32 %v3500, %v4120
        %v4179 = vadd.f32 %v3501, %v4125
        %v4180 = vadd.f32 %v3502, %v4128
        %v4181 = vadd.f32 %v3503, %v4133
        %v4182 = vadd.f32 %v3504, %v4136
        %v4183 = vadd.f32 %v3505, %v4141
        %v4184 = vadd.f32 %v3506, %v4144
        %v4185 = vadd.f32 %v3507, %v4149
        %v4186 = vadd.f32 %v3508, %v4152
        %v4203 = vrot.slane %v3135, 5
        %v4204 = vrot.slane %v4203, 4
        %v4205 = vrot.slane %v3136, 5
        %v4206 = vsel %vm1246, %v4204, %v4205
        %v4207 = vrot.slane %v4205, 4
        %v4208 = vrot.slane %v3137, 5
        %v4209 = vsel %vm1246, %v4207, %v4208
        %v4210 = vrot.slane %v3138, 5
        %v4211 = vrot.slane %v4210, 4
        %v4212 = vrot.slane %v3139, 5
        %v4213 = vsel %vm1246, %v4211, %v4212
        %v4214 = vrot.slane %v4212, 4
        %v4215 = vrot.slane %v3140, 5
        %v4216 = vsel %vm1246, %v4214, %v4215
        %v4217 = vrot.slane %v3141, 5
        %v4218 = vrot.slane %v4217, 4
        %v4219 = vrot.slane %v3142, 5
        %v4220 = vsel %vm1246, %v4218, %v4219
        %v4221 = vrot.slane %v4219, 4
        %v4222 = vrot.slane %v3143, 5
        %v4223 = vsel %vm1246, %v4221, %v4222
        %v4224 = vrot.slane %v3144, 5
        %v4225 = vrot.slane %v4224, 4
        %v4226 = vrot.slane %v3145, 5
        %v4227 = vsel %vm1246, %v4225, %v4226
        %v4228 = vrot.slane %v4226, 4
        %v4229 = vrot.slane %v3146, 5
        %v4230 = vsel %vm1246, %v4228, %v4229
        %v4231 = vrot.slane %v3147, 5
        %v4232 = vrot.slane %v4231, 4
        %v4233 = vrot.slane %v3148, 5
        %v4234 = vsel %vm1246, %v4232, %v4233
        %v4235 = vrot.slane %v4233, 4
        %v4236 = vrot.slane %v3149, 5
        %v4237 = vsel %vm1246, %v4235, %v4236
        %v4238 = vrot.slane %v3150, 5
        %v4239 = vrot.slane %v4238, 4
        %v4240 = vrot.slane %v3151, 5
        %v4241 = vsel %vm1246, %v4239, %v4240
        %v4242 = vrot.slane %v4240, 4
        %v4243 = vrot.slane %v3152, 5
        %v4244 = vsel %vm1246, %v4242, %v4243
        %v4245 = vrot.slane %v3153, 5
        %v4246 = vrot.slane %v4245, 4
        %v4247 = vrot.slane %v3154, 5
        %v4248 = vsel %vm1246, %v4246, %v4247
        %v4249 = vrot.slane %v4247, 4
        %v4250 = vrot.slane %v3155, 5
        %v4251 = vsel %vm1246, %v4249, %v4250
        %v4252 = vrot.slane %v3156, 5
        %v4253 = vrot.slane %v4252, 4
        %v4254 = vrot.slane %v3157, 5
        %v4255 = vsel %vm1246, %v4253, %v4254
        %v4256 = vrot.slane %v4254, 4
        %v4257 = vrot.slane %v3158, 5
        %v4258 = vsel %vm1246, %v4256, %v4257
        %v4259 = vrot.slane %v3159, 5
        %v4260 = vrot.slane %v4259, 4
        %v4261 = vrot.slane %v3160, 5
        %v4262 = vsel %vm1246, %v4260, %v4261
        %v4263 = vrot.slane %v4261, 4
        %v4264 = vrot.slane %v3161, 5
        %v4265 = vsel %vm1246, %v4263, %v4264
        %v4266 = vrot.slane %v3162, 5
        %v4267 = vrot.slane %v4266, 4
        %v4268 = vrot.slane %v3163, 5
        %v4269 = vsel %vm1246, %v4267, %v4268
        %v4270 = vrot.slane %v4268, 4
        %v4271 = vrot.slane %v3164, 5
        %v4272 = vsel %vm1246, %v4270, %v4271
        %v4273 = vrot.slane %v3165, 5
        %v4274 = vrot.slane %v4273, 4
        %v4275 = vrot.slane %v3166, 5
        %v4276 = vsel %vm1246, %v4274, %v4275
        %v4277 = vrot.slane %v4275, 4
        %v4278 = vrot.slane %v3167, 5
        %v4279 = vsel %vm1246, %v4277, %v4278
        %v4280 = vrot.slane %v3168, 5
        %v4281 = vrot.slane %v4280, 4
        %v4282 = vrot.slane %v3169, 5
        %v4283 = vsel %vm1246, %v4281, %v4282
        %v4284 = vrot.slane %v4282, 4
        %v4285 = vrot.slane %v3170, 5
        %v4286 = vsel %vm1246, %v4284, %v4285
        %v4287 = vrot.slane %v3171, 5
        %v4288 = vrot.slane %v4287, 4
        %v4289 = vrot.slane %v3172, 5
        %v4290 = vsel %vm1246, %v4288, %v4289
        %v4291 = vrot.slane %v4289, 4
        %v4292 = vrot.slane %v3173, 5
        %v4293 = vsel %vm1246, %v4291, %v4292
        %v4294 = vrot.slane %v3174, 5
        %v4295 = vrot.slane %v4294, 4
        %v4296 = vrot.slane %v3175, 5
        %v4297 = vsel %vm1246, %v4295, %v4296
        %v4298 = vrot.slane %v4296, 4
        %v4299 = vrot.slane %v3176, 5
        %v4300 = vsel %vm1246, %v4298, %v4299
        %v4301 = vrot.slane %v3177, 5
        %v4302 = vrot.slane %v4301, 4
        %v4303 = vrot.slane %v3178, 5
        %v4304 = vsel %vm1246, %v4302, %v4303
        %v4305 = vrot.slane %v4303, 4
        %v4306 = vrot.slane %v3179, 5
        %v4307 = vsel %vm1246, %v4305, %v4306
        %v4308 = vrot.slane %v3180, 5
        %v4309 = vrot.slane %v4308, 4
        %v4310 = vrot.slane %v3181, 5
        %v4311 = vsel %vm1246, %v4309, %v4310
        %v4312 = vrot.slane %v4310, 4
        %v4313 = vrot.slane %v3182, 5
        %v4314 = vsel %vm1246, %v4312, %v4313
        %s4315 = scalar_lea.vmem [#allocation5], 32
        %v4316 = vld [vmem:[%s4315] sm:$0xf]
        %v4317 = vunpack.c.l.b16 %v4206
        %v4318 = vunpack.c.l.b16 %v4209
        %v4319 = vunpack.c.l.b16 %v4213
        %v4320 = vunpack.c.l.b16 %v4216
        %v4321 = vunpack.c.l.b16 %v4220
        %v4322 = vunpack.c.l.b16 %v4223
        %v4323 = vunpack.c.l.b16 %v4227
        %v4324 = vunpack.c.l.b16 %v4230
        %v4325 = vunpack.c.l.b16 %v4234
        %v4326 = vunpack.c.l.b16 %v4237
        %v4327 = vunpack.c.l.b16 %v4241
        %v4328 = vunpack.c.l.b16 %v4244
        %v4329 = vunpack.c.l.b16 %v4248
        %v4330 = vunpack.c.l.b16 %v4251
        %v4331 = vunpack.c.l.b16 %v4255
        %v4332 = vunpack.c.l.b16 %v4258
        %v4333 = vunpack.c.l.b16 %v4262
        %v4334 = vunpack.c.l.b16 %v4265
        %v4335 = vunpack.c.l.b16 %v4269
        %v4336 = vunpack.c.l.b16 %v4272
        %v4337 = vunpack.c.l.b16 %v4276
        %v4338 = vunpack.c.l.b16 %v4279
        %v4339 = vunpack.c.l.b16 %v4283
        %v4340 = vunpack.c.l.b16 %v4286
        %v4341 = vunpack.c.l.b16 %v4290
        %v4342 = vunpack.c.l.b16 %v4293
        %v4343 = vunpack.c.l.b16 %v4297
        %v4344 = vunpack.c.l.b16 %v4300
        %v4345 = vunpack.c.l.b16 %v4304
        %v4346 = vunpack.c.l.b16 %v4307
        %v4347 = vunpack.c.l.b16 %v4311
        %v4348 = vunpack.c.l.b16 %v4314
        %v4349 = vpack.c.b16 %v4318, %v4317
        %v4350 = vpack.c.b16 %v4320, %v4319
        %v4351 = vpack.c.b16 %v4322, %v4321
        %v4352 = vpack.c.b16 %v4324, %v4323
        %v4353 = vpack.c.b16 %v4326, %v4325
        %v4354 = vpack.c.b16 %v4328, %v4327
        %v4355 = vpack.c.b16 %v4330, %v4329
        %v4356 = vpack.c.b16 %v4332, %v4331
        %v4357 = vpack.c.b16 %v4334, %v4333
        %v4358 = vpack.c.b16 %v4336, %v4335
        %v4359 = vpack.c.b16 %v4338, %v4337
        %v4360 = vpack.c.b16 %v4340, %v4339
        %v4361 = vpack.c.b16 %v4342, %v4341
        %v4362 = vpack.c.b16 %v4344, %v4343
        %v4363 = vpack.c.b16 %v4346, %v4345
        %v4364 = vpack.c.b16 %v4348, %v4347
        %v4366 = vsel %vm722, %v4349, 0
        %v4369 = vsel %vm722, %v4350, 0
        %v4372 = vsel %vm722, %v4351, 0
        %v4375 = vsel %vm722, %v4352, 0
        %v4378 = vsel %vm722, %v4353, 0
        %v4381 = vsel %vm722, %v4354, 0
        %v4384 = vsel %vm722, %v4355, 0
        %v4387 = vsel %vm722, %v4356, 0
        %v4390 = vsel %vm722, %v4357, 0
        %v4393 = vsel %vm722, %v4358, 0
        %v4396 = vsel %vm722, %v4359, 0
        %v4399 = vsel %vm722, %v4360, 0
        %v4402 = vsel %vm722, %v4361, 0
        %v4405 = vsel %vm722, %v4362, 0
        %v4408 = vsel %vm722, %v4363, 0
        %v4411 = vsel %vm722, %v4364, 0
        %v4414 = vsel %vm771, %v4316, 0
        %4416 = vmatprep.subr.bf16.mxu0 0
        %4417 = vmatpush1.bf16.msra.mxu0 %v4414
        %4418 = vmatprep.subr.bf16.mxu0 0
        %4419 = vmatpush1.bf16.msra.mxu0 0
        %4420 = vmatprep.subr.bf16.mxu0 0
        %4421 = vmatpush1.bf16.msra.mxu0 0
        %4422 = vmatprep.subr.bf16.mxu0 0
        %4423 = vmatpush1.bf16.msra.mxu0 0
        %4424 = vmatprep.subr.bf16.mxu0 0
        %4425 = vmatpush1.bf16.msra.mxu0 0
        %4426 = vmatprep.subr.bf16.mxu0 0
        %4427 = vmatpush1.bf16.msra.mxu0 0
        %4428 = vmatprep.subr.bf16.mxu0 0
        %4429 = vmatpush1.bf16.msra.mxu0 0
        %4430 = vmatprep.subr.bf16.mxu0 0
        %4431 = vmatpush1.bf16.msra.mxu0 0
        %4432 = vmatprep.subr.bf16.mxu0 0
        %4433 = vmatpush1.bf16.msra.mxu0 0
        %4434 = vmatprep.subr.bf16.mxu0 0
        %4435 = vmatpush1.bf16.msra.mxu0 0
        %4436 = vmatprep.subr.bf16.mxu0 0
        %4437 = vmatpush1.bf16.msra.mxu0 0
        %4438 = vmatprep.subr.bf16.mxu0 0
        %4439 = vmatpush1.bf16.msra.mxu0 0
        %4440 = vmatprep.subr.bf16.mxu0 0
        %4441 = vmatpush1.bf16.msra.mxu0 0
        %4442 = vmatprep.subr.bf16.mxu0 0
        %4443 = vmatpush1.bf16.msra.mxu0 0
        %4444 = vmatprep.subr.bf16.mxu0 0
        %4445 = vmatpush1.bf16.msra.mxu0 0
        %4446 = vmatprep.subr.bf16.mxu0 0
        %4447 = vmatpush1.bf16.msra.mxu0 0
        %4448 = vmatprep.mubr.bf16.mxu0 0
        %4449 = vmatmul.mubr.bf16.gmra.mrb[0].mxu0 %v4366
        %v4450 = vpop.f32.mrb[0].mxu0
        %v4451 = vadd.f32 0.0, %v4450
        %v4452 = vpop.f32.mrb[0].mxu0
        %v4453 = vpop.f32.mrb[0].mxu0
        %v4454 = vadd.f32 0.0, %v4453
        %v4455 = vpop.f32.mrb[0].mxu0
        %4456 = vmatprep.mubr.bf16.mxu0 0
        %4457 = vmatmul.mubr.bf16.gmra.mrb[0].mxu0 %v4369
        %v4458 = vpop.f32.mrb[0].mxu0
        %v4459 = vadd.f32 0.0, %v4458
        %v4460 = vpop.f32.mrb[0].mxu0
        %v4461 = vpop.f32.mrb[0].mxu0
        %v4462 = vadd.f32 0.0, %v4461
        %v4463 = vpop.f32.mrb[0].mxu0
        %4464 = vmatprep.mubr.bf16.mxu0 0
        %4465 = vmatmul.mubr.bf16.gmra.mrb[0].mxu0 %v4372
        %v4466 = vpop.f32.mrb[0].mxu0
        %v4467 = vadd.f32 0.0, %v4466
        %v4468 = vpop.f32.mrb[0].mxu0
        %v4469 = vpop.f32.mrb[0].mxu0
        %v4470 = vadd.f32 0.0, %v4469
        %v4471 = vpop.f32.mrb[0].mxu0
        %4472 = vmatprep.mubr.bf16.mxu0 0
        %4473 = vmatmul.mubr.bf16.gmra.mrb[0].mxu0 %v4375
        %v4474 = vpop.f32.mrb[0].mxu0
        %v4475 = vadd.f32 0.0, %v4474
        %v4476 = vpop.f32.mrb[0].mxu0
        %v4477 = vpop.f32.mrb[0].mxu0
        %v4478 = vadd.f32 0.0, %v4477
        %v4479 = vpop.f32.mrb[0].mxu0
        %4480 = vmatprep.mubr.bf16.mxu0 0
        %4481 = vmatmul.mubr.bf16.gmra.mrb[0].mxu0 %v4378
        %v4482 = vpop.f32.mrb[0].mxu0
        %v4483 = vadd.f32 0.0, %v4482
        %v4484 = vpop.f32.mrb[0].mxu0
        %v4485 = vpop.f32.mrb[0].mxu0
        %v4486 = vadd.f32 0.0, %v4485
        %v4487 = vpop.f32.mrb[0].mxu0
        %4488 = vmatprep.mubr.bf16.mxu0 0
        %4489 = vmatmul.mubr.bf16.gmra.mrb[0].mxu0 %v4381
        %v4490 = vpop.f32.mrb[0].mxu0
        %v4491 = vadd.f32 0.0, %v4490
        %v4492 = vpop.f32.mrb[0].mxu0
        %v4493 = vpop.f32.mrb[0].mxu0
        %v4494 = vadd.f32 0.0, %v4493
        %v4495 = vpop.f32.mrb[0].mxu0
        %4496 = vmatprep.mubr.bf16.mxu0 0
        %4497 = vmatmul.mubr.bf16.gmra.mrb[0].mxu0 %v4384
        %v4498 = vpop.f32.mrb[0].mxu0
        %v4499 = vadd.f32 0.0, %v4498
        %v4500 = vpop.f32.mrb[0].mxu0
        %v4501 = vpop.f32.mrb[0].mxu0
        %v4502 = vadd.f32 0.0, %v4501
        %v4503 = vpop.f32.mrb[0].mxu0
        %4504 = vmatprep.mubr.bf16.mxu0 0
        %4505 = vmatmul.mubr.bf16.gmra.mrb[0].mxu0 %v4387
        %v4506 = vpop.f32.mrb[0].mxu0
        %v4507 = vadd.f32 0.0, %v4506
        %v4508 = vpop.f32.mrb[0].mxu0
        %v4509 = vpop.f32.mrb[0].mxu0
        %v4510 = vadd.f32 0.0, %v4509
        %v4511 = vpop.f32.mrb[0].mxu0
        %4512 = vmatprep.mubr.bf16.mxu0 0
        %4513 = vmatmul.mubr.bf16.gmra.mrb[0].mxu0 %v4390
        %v4514 = vpop.f32.mrb[0].mxu0
        %v4515 = vadd.f32 0.0, %v4514
        %v4516 = vpop.f32.mrb[0].mxu0
        %v4517 = vpop.f32.mrb[0].mxu0
        %v4518 = vadd.f32 0.0, %v4517
        %v4519 = vpop.f32.mrb[0].mxu0
        %4520 = vmatprep.mubr.bf16.mxu0 0
        %4521 = vmatmul.mubr.bf16.gmra.mrb[0].mxu0 %v4393
        %v4522 = vpop.f32.mrb[0].mxu0
        %v4523 = vadd.f32 0.0, %v4522
        %v4524 = vpop.f32.mrb[0].mxu0
        %v4525 = vpop.f32.mrb[0].mxu0
        %v4526 = vadd.f32 0.0, %v4525
        %v4527 = vpop.f32.mrb[0].mxu0
        %4528 = vmatprep.mubr.bf16.mxu0 0
        %4529 = vmatmul.mubr.bf16.gmra.mrb[0].mxu0 %v4396
        %v4530 = vpop.f32.mrb[0].mxu0
        %v4531 = vadd.f32 0.0, %v4530
        %v4532 = vpop.f32.mrb[0].mxu0
        %v4533 = vpop.f32.mrb[0].mxu0
        %v4534 = vadd.f32 0.0, %v4533
        %v4535 = vpop.f32.mrb[0].mxu0
        %4536 = vmatprep.mubr.bf16.mxu0 0
        %4537 = vmatmul.mubr.bf16.gmra.mrb[0].mxu0 %v4399
        %v4538 = vpop.f32.mrb[0].mxu0
        %v4539 = vadd.f32 0.0, %v4538
        %v4540 = vpop.f32.mrb[0].mxu0
        %v4541 = vpop.f32.mrb[0].mxu0
        %v4542 = vadd.f32 0.0, %v4541
        %v4543 = vpop.f32.mrb[0].mxu0
        %4544 = vmatprep.mubr.bf16.mxu0 0
        %4545 = vmatmul.mubr.bf16.gmra.mrb[0].mxu0 %v4402
        %v4546 = vpop.f32.mrb[0].mxu0
        %v4547 = vadd.f32 0.0, %v4546
        %v4548 = vpop.f32.mrb[0].mxu0
        %v4549 = vpop.f32.mrb[0].mxu0
        %v4550 = vadd.f32 0.0, %v4549
        %v4551 = vpop.f32.mrb[0].mxu0
        %4552 = vmatprep.mubr.bf16.mxu0 0
        %4553 = vmatmul.mubr.bf16.gmra.mrb[0].mxu0 %v4405
        %v4554 = vpop.f32.mrb[0].mxu0
        %v4555 = vadd.f32 0.0, %v4554
        %v4556 = vpop.f32.mrb[0].mxu0
        %v4557 = vpop.f32.mrb[0].mxu0
        %v4558 = vadd.f32 0.0, %v4557
        %v4559 = vpop.f32.mrb[0].mxu0
        %4560 = vmatprep.mubr.bf16.mxu0 0
        %4561 = vmatmul.mubr.bf16.gmra.mrb[0].mxu0 %v4408
        %v4562 = vpop.f32.mrb[0].mxu0
        %v4563 = vadd.f32 0.0, %v4562
        %v4564 = vpop.f32.mrb[0].mxu0
        %v4565 = vpop.f32.mrb[0].mxu0
        %v4566 = vadd.f32 0.0, %v4565
        %v4567 = vpop.f32.mrb[0].mxu0
        %4568 = vmatprep.mubr.bf16.mxu0 0
        %4569 = vmatmul.mubr.bf16.gmra.mrb[0].mxu0 %v4411
        %v4570 = vpop.f32.mrb[0].mxu0
        %v4571 = vadd.f32 0.0, %v4570
        %v4572 = vpop.f32.mrb[0].mxu0
        %v4573 = vpop.f32.mrb[0].mxu0
        %v4574 = vadd.f32 0.0, %v4573
        %v4575 = vpop.f32.mrb[0].mxu0
        %4576 = vdwg.mxu0
        %v4577 = vadd.f32 %v4155, %v4451
        %v4578 = vadd.f32 %v4156, %v4454
        %v4579 = vadd.f32 %v4157, %v4459
        %v4580 = vadd.f32 %v4158, %v4462
        %v4581 = vadd.f32 %v4159, %v4467
        %v4582 = vadd.f32 %v4160, %v4470
        %v4583 = vadd.f32 %v4161, %v4475
        %v4584 = vadd.f32 %v4162, %v4478
        %v4585 = vadd.f32 %v4163, %v4483
        %v4586 = vadd.f32 %v4164, %v4486
        %v4587 = vadd.f32 %v4165, %v4491
        %v4588 = vadd.f32 %v4166, %v4494
        %v4589 = vadd.f32 %v4167, %v4499
        %v4590 = vadd.f32 %v4168, %v4502
        %v4591 = vadd.f32 %v4169, %v4507
        %v4592 = vadd.f32 %v4170, %v4510
        %v4593 = vadd.f32 %v4171, %v4515
        %v4594 = vadd.f32 %v4172, %v4518
        %v4595 = vadd.f32 %v4173, %v4523
        %v4596 = vadd.f32 %v4174, %v4526
        %v4597 = vadd.f32 %v4175, %v4531
        %v4598 = vadd.f32 %v4176, %v4534
        %v4599 = vadd.f32 %v4177, %v4539
        %v4600 = vadd.f32 %v4178, %v4542
        %v4601 = vadd.f32 %v4179, %v4547
        %v4602 = vadd.f32 %v4180, %v4550
        %v4603 = vadd.f32 %v4181, %v4555
        %v4604 = vadd.f32 %v4182, %v4558
        %v4605 = vadd.f32 %v4183, %v4563
        %v4606 = vadd.f32 %v4184, %v4566
        %v4607 = vadd.f32 %v4185, %v4571
        %v4608 = vadd.f32 %v4186, %v4574
        %v4609 = vld [vmem:[#allocation7] sm:$0x1]
        %v4611 = vlaneseq
        %v4612 = vshrl.u32 %v4611, 7
        %v4613 = vsub.s32 0, %v4612
        %v4614 = vrot.slane %v4609, %v4613
        %v4616 = vadd.f32 %v4577, %v4614
        %v4617 = vadd.f32 %v4578, %v4614
        %v4618 = vadd.f32 %v4579, %v4614
        %v4619 = vadd.f32 %v4580, %v4614
        %v4620 = vadd.f32 %v4581, %v4614
        %v4621 = vadd.f32 %v4582, %v4614
        %v4622 = vadd.f32 %v4583, %v4614
        %v4623 = vadd.f32 %v4584, %v4614
        %v4624 = vadd.f32 %v4585, %v4614
        %v4625 = vadd.f32 %v4586, %v4614
        %v4626 = vadd.f32 %v4587, %v4614
        %v4627 = vadd.f32 %v4588, %v4614
        %v4628 = vadd.f32 %v4589, %v4614
        %v4629 = vadd.f32 %v4590, %v4614
        %v4630 = vadd.f32 %v4591, %v4614
        %v4631 = vadd.f32 %v4592, %v4614
        %v4632 = vadd.f32 %v4593, %v4614
        %v4633 = vadd.f32 %v4594, %v4614
        %v4634 = vadd.f32 %v4595, %v4614
        %v4635 = vadd.f32 %v4596, %v4614
        %v4636 = vadd.f32 %v4597, %v4614
        %v4637 = vadd.f32 %v4598, %v4614
        %v4638 = vadd.f32 %v4599, %v4614
        %v4639 = vadd.f32 %v4600, %v4614
        %v4640 = vadd.f32 %v4601, %v4614
        %v4641 = vadd.f32 %v4602, %v4614
        %v4642 = vadd.f32 %v4603, %v4614
        %v4643 = vadd.f32 %v4604, %v4614
        %v4644 = vadd.f32 %v4605, %v4614
        %v4645 = vadd.f32 %v4606, %v4614
        %v4646 = vadd.f32 %v4607, %v4614
        %v4647 = vadd.f32 %v4608, %v4614
        %v4648 = vmax.f32 %v4616, 0.0
        %v4649 = vmax.f32 %v4617, 0.0
        %v4650 = vmax.f32 %v4618, 0.0
        %v4651 = vmax.f32 %v4619, 0.0
        %v4652 = vmax.f32 %v4620, 0.0
        %v4653 = vmax.f32 %v4621, 0.0
        %v4654 = vmax.f32 %v4622, 0.0
        %v4655 = vmax.f32 %v4623, 0.0
        %v4656 = vmax.f32 %v4624, 0.0
        %v4657 = vmax.f32 %v4625, 0.0
        %v4658 = vmax.f32 %v4626, 0.0
        %v4659 = vmax.f32 %v4627, 0.0
        %v4660 = vmax.f32 %v4628, 0.0
        %v4661 = vmax.f32 %v4629, 0.0
        %v4662 = vmax.f32 %v4630, 0.0
        %v4663 = vmax.f32 %v4631, 0.0
        %v4664 = vmax.f32 %v4632, 0.0
        %v4665 = vmax.f32 %v4633, 0.0
        %v4666 = vmax.f32 %v4634, 0.0
        %v4667 = vmax.f32 %v4635, 0.0
        %v4668 = vmax.f32 %v4636, 0.0
        %v4669 = vmax.f32 %v4637, 0.0
        %v4670 = vmax.f32 %v4638, 0.0
        %v4671 = vmax.f32 %v4639, 0.0
        %v4672 = vmax.f32 %v4640, 0.0
        %v4673 = vmax.f32 %v4641, 0.0
        %v4674 = vmax.f32 %v4642, 0.0
        %v4675 = vmax.f32 %v4643, 0.0
        %v4676 = vmax.f32 %v4644, 0.0
        %v4677 = vmax.f32 %v4645, 0.0
        %v4678 = vmax.f32 %v4646, 0.0
        %v4679 = vmax.f32 %v4647, 0.0
        %4680 = vst [vmem:[%s229] sm:$0xff] %v4648
        %4681 = vst [vmem:[%s229 + $0x8] sm:$0xff] %v4649
        %4682 = vst [vmem:[%s229 + $0x10] sm:$0xff] %v4650
        %4683 = vst [vmem:[%s229 + $0x18] sm:$0xff] %v4651
        %4684 = vst [vmem:[%s229 + $0x20] sm:$0xff] %v4652
        %4685 = vst [vmem:[%s229 + $0x28] sm:$0xff] %v4653
        %4686 = vst [vmem:[%s229 + $0x30] sm:$0xff] %v4654
        %4687 = vst [vmem:[%s229 + $0x38] sm:$0xff] %v4655
        %4688 = vst [vmem:[%s229 + $0x40] sm:$0xff] %v4656
        %4689 = vst [vmem:[%s229 + $0x48] sm:$0xff] %v4657
        %4690 = vst [vmem:[%s229 + $0x50] sm:$0xff] %v4658
        %4691 = vst [vmem:[%s229 + $0x58] sm:$0xff] %v4659
        %4692 = vst [vmem:[%s229 + $0x60] sm:$0xff] %v4660
        %4693 = vst [vmem:[%s229 + $0x68] sm:$0xff] %v4661
        %4694 = vst [vmem:[%s229 + $0x70] sm:$0xff] %v4662
        %4695 = vst [vmem:[%s229 + $0x78] sm:$0xff] %v4663
        %4696 = vst [vmem:[%s229 + $0x80] sm:$0xff] %v4664
        %4697 = vst [vmem:[%s229 + $0x88] sm:$0xff] %v4665
        %4698 = vst [vmem:[%s229 + $0x90] sm:$0xff] %v4666
        %4699 = vst [vmem:[%s229 + $0x98] sm:$0xff] %v4667
        %4700 = vst [vmem:[%s229 + $0xa0] sm:$0xff] %v4668
        %4701 = vst [vmem:[%s229 + $0xa8] sm:$0xff] %v4669
        %4702 = vst [vmem:[%s229 + $0xb0] sm:$0xff] %v4670
        %4703 = vst [vmem:[%s229 + $0xb8] sm:$0xff] %v4671
        %4704 = vst [vmem:[%s229 + $0xc0] sm:$0xff] %v4672
        %4705 = vst [vmem:[%s229 + $0xc8] sm:$0xff] %v4673
        %4706 = vst [vmem:[%s229 + $0xd0] sm:$0xff] %v4674
        %4707 = vst [vmem:[%s229 + $0xd8] sm:$0xff] %v4675
        %4708 = vst [vmem:[%s229 + $0xe0] sm:$0xff] %v4676
        %4709 = vst [vmem:[%s229 + $0xe8] sm:$0xff] %v4677
        %4710 = vst [vmem:[%s229 + $0xf0] sm:$0xff] %v4678
        %4711 = vst [vmem:[%s229 + $0xf8] sm:$0xff] %v4679
        %s4712 = sand.u32 %s111, 1
        %s4713 = scalar_lea.sflag [#allocation4], %s4712
        %s4714 = sand.u32 %s111, 1
        %s4715 = smul.addr %s4714, 256
        %s4716 = scalar_lea.vmem [#allocation8], %s4715
        // Predicated region
        $region45: #{tpu_custom_call.1} parent=31 // pred_check
          %p4717 = pneg %p121
        $region46: #{tpu_custom_call.1} parent=31 // pred_check_branch
          %4719 = sbr.rel (%p4717) target = $region48
        $region47: #{tpu_custom_call.1} parent=31 // pred_region
          %s4720 = smul.u32 16, %s26
          %s4722 = ssub.s32 4096, 4096
          %4723 = vsyncadd %s4713, %s4722
          %s4724 = smul.addr %s4720, 2
          %s4725 = smul.addr %s25, 32
          %s4726 = sadd.s32 %s4724, %s4725
          %s4727 = smul.addr %s4726, 128
          %s4728 = scalar_lea.hbm %s3, %s4727
          %s4729 = sshll.u32 %s4716, 4
          %s4730 = int_to_ptr.vmem [resolvable:$true] %s4729
          %4735 = dma.vmem_to_hbm [thread:$0]  %s4730, 4096, %s4728, %s4713, 128, 128, 8
        $region48: #{tpu_custom_call.1} parent=31 // pred_fallthru
          _
      $region32: #{tpu_custom_call.1} parent=5 // pred_fallthru
        _
      %p4736 = scmp.le.s32.totalorder 2, %s16
      // Predicated region
      $region49: #{tpu_custom_call.1} parent=5 // pred_check
        %p4737 = pneg %p4736
      $region50: #{tpu_custom_call.1} parent=5 // pred_check_branch
        %4739 = sbr.rel (%p4737) target = $region52
      $region51: #{tpu_custom_call.1} parent=5 // pred_region
        %s4740 = ssub.s32 %s16, 2
        // Predicated region
        $region53: #{tpu_custom_call.1} parent=51 // pred_check
          %p4741 = pneg %p127
        $region54: #{tpu_custom_call.1} parent=51 // pred_check_branch
          %4743 = sbr.rel (%p4741) target = $region56
        $region55: #{tpu_custom_call.1} parent=51 // pred_region
          %s4744 = sand.u32 %s112, 1
          %s4745 = scalar_lea.sflag [#allocation4], %s4744
          %s4746 = sand.u32 %s112, 1
          %s4747 = smul.addr %s4746, 256
          %s4748 = scalar_lea.vmem [#allocation8], %s4747
          %4749 = dma.done %s4745, 4096
        $region56: #{tpu_custom_call.1} parent=51 // pred_fallthru
          _
      $region52: #{tpu_custom_call.1} parent=5 // pred_fallthru
        _
    $region6: #{tpu_custom_call.1} parent=1 // loop_footer
      %s20 = sadd.s32 1, %s16
    $region7: #{tpu_custom_call.1} parent=1 // loop_footer_branch
      %15 = sbr.rel target = $region3
    $region8: #{tpu_custom_call.1} parent=1 // loop_exit
      _
    %4750 = vsyncpa [#allocation3], 1
    %s4751 = scalar_lea.sflag [#allocation3], 1
    %4752 = vsyncpa %s4751, 1
    %4753 = vsyncpa [#allocation6], 1
    %4754 = vsyncpa [#allocation4], 1
    %s4755 = scalar_lea.sflag [#allocation4], 1
    %4756 = vsyncpa %s4755, 1

</llo_original>
